<compile_context>
chip_gen: v6e
topology: v6e:2x2x1
jax: 0.10.0
libtpu: 0.0.40
codegen_flags: <defaults>
</compile_context>

<pallas_src>
import functools
import math

import numpy as np
import jax
import jax.numpy as jnp
from jax.experimental import pallas as pl
from jax.experimental.pallas import tpu as pltpu

LANE = 128  # lane-dense output pad


# ----------------------------------------------------------------------------- fused Pallas kernel

def _fused_double_critic_kernel(*refs, seq, c_in, d_model, n_layers, top_k, activation):
    """One grid program = one batch element of the whole DoubleCritic forward."""
    out_ref = refs[-1]
    (obs_ref, act_ref,
     p_both_ref, a_ma_ref, corr_a_ref, corr_m_ref, corr_b_ref, last_ref,
     w_ct_ref, w_c0_ref, w_c2_ref) = refs[:11]
    pos = 11
    layer_refs = []
    for _ in range(n_layers):
        layer_refs.append(refs[pos:pos + 10])
        pos += 10
    norm_g_ref, norm_b_ref = refs[pos:pos + 2]
    pos += 2
    wa_ref, ba_ref, wo_ref, bo_ref = refs[pos:pos + 4]

    L, D, C = seq, d_model, c_in
    f32 = jnp.float32

    def mm(a, b):                       # a @ b on the MXU, f32 accumulation
        return jax.lax.dot_general(a, b, (((1,), (0,)), ((), ())),
                                   preferred_element_type=f32)

    def mm_tb(a, b):                    # a @ b.T (contract the feature dims)
        return jax.lax.dot_general(a, b, (((1,), (1,)), ((), ())),
                                   preferred_element_type=f32)

    # Load all constants / weights once (tens of KB, VMEM-resident, hoisted out of the layer loop).
    p_both = p_both_ref[...]            # (2L, L): stacked circular shift-by-(-1) / shift-by-(+1)
    a_ma = a_ma_ref[...]                # (L, L) series_decomp moving-average matrix
    corr_a = corr_a_ref[...]            # (L, L*L) circular-correlation spread (1/D folded in)
    corr_m = corr_m_ref[...]            # (L, L*L) row selector
    corr_b = corr_b_ref[...]            # (L*L, L) tau gather
    last_w = last_ref[...]              # (L, 1): 1/n on the last min(10, L) timesteps
    w_ct = w_ct_ref[...]                # (C+mark, D): center conv tap stacked over time embed
    w_c0, w_c2 = w_c0_ref[...], w_c2_ref[...]
    gamma, beta = norm_g_ref[...], norm_b_ref[...]
    wa, ba = wa_ref[...], ba_ref[...]
    wo_row, bo = wo_ref[...], bo_ref[...]
    layers = [tuple(r[...] for r in group) for group in layer_refs]

    lane = jax.lax.broadcasted_iota(jnp.int32, (1, L), 1)
    rows = jax.lax.broadcasted_iota(jnp.int32, (L, L), 0)
    cols = jax.lax.broadcasted_iota(jnp.int32, (L, L), 1)

    ob = obs_ref[0]                                      # (L, c_in + mark)
    x_enc = ob[:, :C]                                    # (L, c_in)

    # DataEmbedding_wo_pos: TokenEmbedding Conv1d(k=3, circular, no bias) + TimeFeatureEmbedding.
    # Center tap + time embedding share one matmul on the raw obs rows; the +/-1 circular shifts
    # are one stacked permutation matmul; dropout(p=0) == identity.
    xs = mm(p_both, x_enc)                               # (2L, C): rows 0:L prev-shift, L:2L next-shift
    x = mm(ob, w_ct) + mm(xs[0:L, :], w_c0) + mm(xs[L:2 * L, :], w_c2)   # (L, D)

    for (w_q, b_q, w_k, b_k, w_v, b_v, w_ao, b_ao, w_ff1, w_ff2) in layers:
        # Separate Q/K/V projections (one MXU push each; avoids sub-tile lane-slice relayouts).
        q = mm(x, w_q) + b_q
        k = mm(x, w_k) + b_k
        v = mm(x, w_v) + b_v

        # ---- AutoCorrelation (mask_flag=False), inference-mode time-delay aggregation ----
        # mean_value[tau] = (1/D) * sum_t q[t,:].k[(t-tau)%L,:]  (exact rfft/irfft identity).
        # Loop-free: skew[t, j] = gmat[t, (t-j)%L]/D via two matmuls + one mask; mv = colsum(skew).
        gmat = mm_tb(q, k)                               # (L, L)
        skew = mm(mm(gmat, corr_a) * corr_m, corr_b)     # (L, L)
        mv = jnp.sum(skew, axis=0, keepdims=True)        # (1, L) == mean_value

        # torch.topk(mean_value, top_k) + softmax over the k scores (top_k = 2 here, unrolled).
        work = mv
        top_w, top_d = [], []
        for _ in range(top_k):
            w_i = jnp.max(work, axis=1, keepdims=True)                               # (1, 1)
            d_i = jnp.min(jnp.where(work >= w_i, lane, L), axis=1, keepdims=True)    # (1, 1) int32
            top_w.append(w_i)
            top_d.append(d_i)
            work = jnp.where(lane == d_i, -3.0e38, work)
        exps = [jnp.exp(w_i - top_w[0]) for w_i in top_w]
        denom = exps[0]
        for e in exps[1:]:
            denom = denom + e
        inv_denom = pl.reciprocal(denom, approx=True)    # EUP slot; divides -> multiplies

        # delays_agg[t,:] = sum_i softmax_i * v[(t + delay_i) % L, :]
        # as a one-hot selection matmul (no cross-lane gather): sel[t, s] = [s == (t+d) mod L].
        w_sel = jnp.zeros((L, L), f32)
        for i in range(top_k):
            diff = cols - rows - top_d[i]                # s - t - delay in [-2L+2, L-1]
            hit = jnp.logical_or(diff == 0, diff == -L).astype(f32)
            w_sel = w_sel + (exps[i] * inv_denom) * hit
        attn = mm(w_sel, v)                              # (L, D)

        # out projection + residual, then the two series_decomp's around the 1x1-conv FFN.
        x = x + mm(attn, w_ao) + b_ao
        x = x - mm(a_ma, x)                              # decomp1 residual
        h = mm(x, w_ff1)                                 # conv1 (1x1, no bias)
        if activation == "relu":
            h = jnp.maximum(h, 0.0)
        else:
            h = jax.nn.gelu(h, approximate=True)  # TODO(synk): torch F.gelu is exact-erf; tanh approx here
        y2 = x + mm(h, w_ff2)                            # conv2 (1x1, no bias)
        x = y2 - mm(a_ma, y2)                            # decomp2 residual

    # Encoder norm: my_Layernorm = LayerNorm(D) then subtract the per-sequence (time) mean.
    mu = jnp.mean(x, axis=1, keepdims=True)
    var = jnp.mean(jnp.square(x - mu), axis=1, keepdims=True)
    x_hat = (x - mu) * jax.lax.rsqrt(var + 1e-5) * gamma + beta
    x_hat = x_hat - jnp.mean(x_hat, axis=0, keepdims=True)

    # enc_out[:, -10:, :].mean(dim=1) as a masked time reduction.
    enc = jnp.sum(x_hat * last_w, axis=0, keepdims=True)           # (1, D)

    # DoubleCritic head: out_layer1(relu(encoder1(obs) + act_layer1(act)));
    # the D->1 projection is a VPU multiply + lane reduction (no 1-wide matmul).
    a_b = act_ref[0]                                               # (1, act_dim)
    x1 = enc + mm(a_b, wa) + ba
    x1 = jnp.maximum(x1, 0.0)
    q_b = jnp.sum(x1 * wo_row, axis=1, keepdims=True) + bo         # (1, 1)
    out_ref[...] = jnp.broadcast_to(q_b[None, :, :], (1, 1, LANE))  # lane-dense store


def _full_spec(shape):
    nd = len(shape)
    return pl.BlockSpec(tuple(shape), lambda b, _nd=nd: (0,) * _nd)


def _batch_spec(shape):
    nd = len(shape)
    return pl.BlockSpec((1,) + tuple(shape[1:]),
                        lambda b, _nd=nd: (b,) + (0,) * (_nd - 1))


def double_critic_forward(packed, obs, act, cfg):
    """q1 = DoubleCritic(obs, act); one fused pallas_call, grid=(B,) parallel over batch."""
    B, L, _ = obs.shape
    top_k = int(cfg.factor * math.log(L))
    kernel = functools.partial(
        _fused_double_critic_kernel,
        seq=L, c_in=cfg.enc_in, d_model=cfg.d_model,
        n_layers=cfg.e_layers, top_k=top_k, activation=cfg.activation)

    obs_f = obs.astype(jnp.float32)
    act_f = act.astype(jnp.float32).reshape(B, 1, -1)
    flat = [obs_f, act_f] + list(packed)
    in_specs = [_batch_spec(obs_f.shape), _batch_spec(act_f.shape)] + \
               [_full_spec(a.shape) for a in packed]

    out = pl.pallas_call(
        kernel,
        out_shape=jax.ShapeDtypeStruct((B, 1, LANE), jnp.float32),
        grid=(B,),
        in_specs=in_specs,
        out_specs=pl.BlockSpec((1, 1, LANE), lambda b: (b, 0, 0)),
        compiler_params=pltpu.CompilerParams(dimension_semantics=("parallel",)),
    )(*flat)
    return out[:, 0, 0]                                            # q1.squeeze()


# ----------------------------------------------------------------------------- constants & params
#
# All constant matrices and all weight-layout work (fusion, transposes, bias reshapes, f32 casts)
# are done ONCE here, outside the forward path.

def build_constants(cfg):
    L, D, k_ma = cfg.seq_len, cfg.d_model, cfg.moving_avg
    # Stacked circular-shift matrix for the kernel-size-3 circular TokenEmbedding conv:
    # rows 0:L select x[(t-1)%L], rows L:2L select x[(t+1)%L].
    p_both = np.zeros((2 * L, L), np.float32)
    for t in range(L):
        p_both[t, (t - 1) % L] = 1.0
        p_both[L + t, (t + 1) % L] = 1.0
    # series_decomp: AvgPool1d(k, stride=1) over an edge-replicated pad, as an (L, L) matrix.
    pad = (k_ma - 1) // 2
    a_ma = np.zeros((L, L), np.float32)
    for t in range(L):
        for j in range(k_ma):
            s = min(max(t + j - pad, 0), L - 1)
            a_ma[t, s] += 1.0 / k_ma
    # Loop-free circular-correlation selectors (column m encodes the pair (t, tau) = (m//L, m%L)):
    #   corr_a[s, m]      = 1/D  iff  s == (t - tau) % L     (spread gmat along tau)
    #   corr_m[t', m]     = 1    iff  t' == t                (keep only the diagonal t' == t)
    #   corr_b[m, j]      = 1    iff  tau == j               (regroup by tau)
    # => ((gmat @ corr_a) * corr_m) @ corr_b == skew,  skew[t, j] = gmat[t, (t-j)%L] / D.
    # TODO(synk): these are O(L^3); for large seq_len switch to a pltpu.roll-skew variant (v7x VMEM).
    corr_a = np.zeros((L, L * L), np.float32)
    corr_m = np.zeros((L, L * L), np.float32)
    corr_b = np.zeros((L * L, L), np.float32)
    for t in range(L):
        for tau in range(L):
            m = t * L + tau
            corr_a[(t - tau) % L, m] = 1.0 / D
            corr_m[t, m] = 1.0
            corr_b[m, tau] = 1.0
    # Mean over the last min(10, L) timesteps.
    n_last = min(10, L)
    last_w = np.zeros((L, 1), np.float32)
    last_w[L - n_last:, 0] = 1.0 / n_last
    return [jnp.asarray(c) for c in (p_both, a_ma, corr_a, corr_m, corr_b, last_w)]


def init_packed_params(key, cfg, act_dim, mark_dim):
    """Random init directly in the fused / pre-laid-out form the kernel consumes.

    Correspondence to the PyTorch module:
      w_ct           : [TokenEmbedding conv tap j=1 ; TimeFeatureEmbedding weight^T] stacked (C+mark, D)
      w_c0 / w_c2    : TokenEmbedding Conv1d(enc_in, d_model, 3, circular, bias=False) taps j=0 / j=2
      w_q/b_q ...    : AutoCorrelationLayer query/key/value/out projections (weight transposed, bias row)
      w_ff1/w_ff2    : EncoderLayer conv1/conv2 (1x1, bias=False)
      norm_g/norm_b  : my_Layernorm LayerNorm affine params
      wa/ba          : DoubleCritic.act_layer1 ; wo_row/bo : DoubleCritic.out_layer1 (row layout)
    """
    D, F, C = cfg.d_model, cfg.d_ff, cfg.enc_in
    keys = iter(jax.random.split(key, 64))

    def rnd(shape, scale=0.1):
        return (scale * jax.random.normal(next(keys), shape)).astype(jnp.float32)

    w_c0, w_c1, w_c2, w_t = rnd((C, D)), rnd((C, D)), rnd((C, D)), rnd((mark_dim, D))
    weights = [jnp.concatenate([w_c1, w_t], axis=0), w_c0, w_c2]    # w_ct, w_c0, w_c2
    for _ in range(cfg.e_layers):
        weights += [
            rnd((D, D)), rnd((1, D)),                               # w_q, b_q
            rnd((D, D)), rnd((1, D)),                               # w_k, b_k
            rnd((D, D)), rnd((1, D)),                               # w_v, b_v
            rnd((D, D)), rnd((1, D)),                               # out projection W, b
            rnd((D, F)), rnd((F, D)),                               # conv1 / conv2 (bias-free)
        ]
    weights += [
        jnp.ones((1, D), jnp.float32), jnp.zeros((1, D), jnp.float32),  # my_Layernorm affine
        rnd((act_dim, D)), rnd((1, D)),                                  # act_layer1
        rnd((1, D)), rnd((1, 1)),                                        # out_layer1 as a row + bias
    ]
    return build_constants(cfg) + weights


# ----------------------------------------------------------------------------- config / main

class Configs:
    seq_len = 16
    label_len = 8
    pred_len = 8
    output_attention = False
    enc_in = 4
    d_model = 32
    embed = "timeF"
    freq = "h"
    dropout = 0.0
    factor = 1
    n_heads = 4
    d_ff = 64
    moving_avg = 25
    activation = "relu"
    e_layers = 1


FREQ_MAP = {"h": 4, "t": 5, "s": 6, "m": 1, "a": 1, "w": 2, "d": 3, "b": 3}


if __name__ == "__main__":
    cfg = Configs()
    act_dim = 8
    B = 2

    key = jax.random.PRNGKey(0)
    kp, ko, ka = jax.random.split(key, 3)
    mark_dim = FREQ_MAP[cfg.freq]
    packed = init_packed_params(kp, cfg, act_dim, mark_dim)

    obs = jax.random.normal(ko, (B, cfg.seq_len, cfg.enc_in + mark_dim), dtype=jnp.float32)
    act = jax.random.normal(ka, (B, act_dim), dtype=jnp.float32)

    fwd = jax.jit(functools.partial(double_critic_forward, cfg=cfg))
    q = fwd(packed, obs, act)
    jax.block_until_ready(q)
    assert q.shape == (B,), q.shape
    assert bool(jnp.all(jnp.isfinite(q)))
    print("KERNEL_OK")
</pallas_src>

<mosaic_0001>
module attributes {stable_mosaic.version = 11 : i64} {
  func.func @_fused_double_critic_kernel(%arg0: i32, %arg1: memref<1x16x8xf32, #tpu.memory_space<vmem>>, %arg2: memref<1x1x8xf32, #tpu.memory_space<vmem>>, %arg3: memref<32x16xf32, #tpu.memory_space<vmem>>, %arg4: memref<16x16xf32, #tpu.memory_space<vmem>>, %arg5: memref<16x256xf32, #tpu.memory_space<vmem>>, %arg6: memref<16x256xf32, #tpu.memory_space<vmem>>, %arg7: memref<256x16xf32, #tpu.memory_space<vmem>>, %arg8: memref<16x1xf32, #tpu.memory_space<vmem>>, %arg9: memref<8x32xf32, #tpu.memory_space<vmem>>, %arg10: memref<4x32xf32, #tpu.memory_space<vmem>>, %arg11: memref<4x32xf32, #tpu.memory_space<vmem>>, %arg12: memref<32x32xf32, #tpu.memory_space<vmem>>, %arg13: memref<1x32xf32, #tpu.memory_space<vmem>>, %arg14: memref<32x32xf32, #tpu.memory_space<vmem>>, %arg15: memref<1x32xf32, #tpu.memory_space<vmem>>, %arg16: memref<32x32xf32, #tpu.memory_space<vmem>>, %arg17: memref<1x32xf32, #tpu.memory_space<vmem>>, %arg18: memref<32x32xf32, #tpu.memory_space<vmem>>, %arg19: memref<1x32xf32, #tpu.memory_space<vmem>>, %arg20: memref<32x64xf32, #tpu.memory_space<vmem>>, %arg21: memref<64x32xf32, #tpu.memory_space<vmem>>, %arg22: memref<1x32xf32, #tpu.memory_space<vmem>>, %arg23: memref<1x32xf32, #tpu.memory_space<vmem>>, %arg24: memref<8x32xf32, #tpu.memory_space<vmem>>, %arg25: memref<1x32xf32, #tpu.memory_space<vmem>>, %arg26: memref<1x32xf32, #tpu.memory_space<vmem>>, %arg27: memref<1x1xf32, #tpu.memory_space<vmem>>, %arg28: memref<1x1x128xf32, #tpu.memory_space<vmem>>) attributes {dimension_semantics = [#tpu.dimension_semantics<parallel>], iteration_bounds = array<i64: 2>, scalar_prefetch = 0 : i64, scratch_operands = 0 : i64, tpu.core_type = #tpu.core_type<tc>, window_params = [{transform_indices = @transform_0, window_bounds = array<i64: 1, 16, 8>}, {transform_indices = @transform_1, window_bounds = array<i64: 1, 1, 8>}, {pipeline_mode = #tpu.pipeline_mode<synchronous>, transform_indices = @transform_2, window_bounds = array<i64: 32, 16>}, {pipeline_mode = #tpu.pipeline_mode<synchronous>, transform_indices = @transform_3, window_bounds = array<i64: 16, 16>}, {pipeline_mode = #tpu.pipeline_mode<synchronous>, transform_indices = @transform_4, window_bounds = array<i64: 16, 256>}, {pipeline_mode = #tpu.pipeline_mode<synchronous>, transform_indices = @transform_5, window_bounds = array<i64: 16, 256>}, {pipeline_mode = #tpu.pipeline_mode<synchronous>, transform_indices = @transform_6, window_bounds = array<i64: 256, 16>}, {pipeline_mode = #tpu.pipeline_mode<synchronous>, transform_indices = @transform_7, window_bounds = array<i64: 16, 1>}, {pipeline_mode = #tpu.pipeline_mode<synchronous>, transform_indices = @transform_8, window_bounds = array<i64: 8, 32>}, {pipeline_mode = #tpu.pipeline_mode<synchronous>, transform_indices = @transform_9, window_bounds = array<i64: 4, 32>}, {pipeline_mode = #tpu.pipeline_mode<synchronous>, transform_indices = @transform_10, window_bounds = array<i64: 4, 32>}, {pipeline_mode = #tpu.pipeline_mode<synchronous>, transform_indices = @transform_11, window_bounds = array<i64: 32, 32>}, {pipeline_mode = #tpu.pipeline_mode<synchronous>, transform_indices = @transform_12, window_bounds = array<i64: 1, 32>}, {pipeline_mode = #tpu.pipeline_mode<synchronous>, transform_indices = @transform_13, window_bounds = array<i64: 32, 32>}, {pipeline_mode = #tpu.pipeline_mode<synchronous>, transform_indices = @transform_14, window_bounds = array<i64: 1, 32>}, {pipeline_mode = #tpu.pipeline_mode<synchronous>, transform_indices = @transform_15, window_bounds = array<i64: 32, 32>}, {pipeline_mode = #tpu.pipeline_mode<synchronous>, transform_indices = @transform_16, window_bounds = array<i64: 1, 32>}, {pipeline_mode = #tpu.pipeline_mode<synchronous>, transform_indices = @transform_17, window_bounds = array<i64: 32, 32>}, {pipeline_mode = #tpu.pipeline_mode<synchronous>, transform_indices = @transform_18, window_bounds = array<i64: 1, 32>}, {pipeline_mode = #tpu.pipeline_mode<synchronous>, transform_indices = @transform_19, window_bounds = array<i64: 32, 64>}, {pipeline_mode = #tpu.pipeline_mode<synchronous>, transform_indices = @transform_20, window_bounds = array<i64: 64, 32>}, {pipeline_mode = #tpu.pipeline_mode<synchronous>, transform_indices = @transform_21, window_bounds = array<i64: 1, 32>}, {pipeline_mode = #tpu.pipeline_mode<synchronous>, transform_indices = @transform_22, window_bounds = array<i64: 1, 32>}, {pipeline_mode = #tpu.pipeline_mode<synchronous>, transform_indices = @transform_23, window_bounds = array<i64: 8, 32>}, {pipeline_mode = #tpu.pipeline_mode<synchronous>, transform_indices = @transform_24, window_bounds = array<i64: 1, 32>}, {pipeline_mode = #tpu.pipeline_mode<synchronous>, transform_indices = @transform_25, window_bounds = array<i64: 1, 32>}, {pipeline_mode = #tpu.pipeline_mode<synchronous>, transform_indices = @transform_26, window_bounds = array<i64: 1, 1>}, {transform_indices = @transform_27, window_bounds = array<i64: 1, 1, 128>}]} {
    %c0 = arith.constant 0 : index
    %c0_0 = arith.constant 0 : index
    %0 = vector.load %arg3[%c0, %c0_0] : memref<32x16xf32, #tpu.memory_space<vmem>>, vector<32x16xf32>
    %c0_1 = arith.constant 0 : index
    %c0_2 = arith.constant 0 : index
    %1 = vector.load %arg4[%c0_1, %c0_2] : memref<16x16xf32, #tpu.memory_space<vmem>>, vector<16x16xf32>
    %c0_3 = arith.constant 0 : index
    %c0_4 = arith.constant 0 : index
    %2 = vector.load %arg5[%c0_3, %c0_4] : memref<16x256xf32, #tpu.memory_space<vmem>>, vector<16x256xf32>
    %c0_5 = arith.constant 0 : index
    %c0_6 = arith.constant 0 : index
    %3 = vector.load %arg6[%c0_5, %c0_6] : memref<16x256xf32, #tpu.memory_space<vmem>>, vector<16x256xf32>
    %c0_7 = arith.constant 0 : index
    %c0_8 = arith.constant 0 : index
    %4 = vector.load %arg7[%c0_7, %c0_8] : memref<256x16xf32, #tpu.memory_space<vmem>>, vector<256x16xf32>
    %c0_9 = arith.constant 0 : index
    %c0_10 = arith.constant 0 : index
    %5 = vector.load %arg8[%c0_9, %c0_10] : memref<16x1xf32, #tpu.memory_space<vmem>>, vector<16x1xf32>
    %c0_11 = arith.constant 0 : index
    %c0_12 = arith.constant 0 : index
    %6 = vector.load %arg9[%c0_11, %c0_12] : memref<8x32xf32, #tpu.memory_space<vmem>>, vector<8x32xf32>
    %c0_13 = arith.constant 0 : index
    %c0_14 = arith.constant 0 : index
    %7 = vector.load %arg10[%c0_13, %c0_14] : memref<4x32xf32, #tpu.memory_space<vmem>>, vector<4x32xf32>
    %c0_15 = arith.constant 0 : index
    %c0_16 = arith.constant 0 : index
    %8 = vector.load %arg11[%c0_15, %c0_16] : memref<4x32xf32, #tpu.memory_space<vmem>>, vector<4x32xf32>
    %c0_17 = arith.constant 0 : index
    %c0_18 = arith.constant 0 : index
    %9 = vector.load %arg22[%c0_17, %c0_18] : memref<1x32xf32, #tpu.memory_space<vmem>>, vector<1x32xf32>
    %c0_19 = arith.constant 0 : index
    %c0_20 = arith.constant 0 : index
    %10 = vector.load %arg23[%c0_19, %c0_20] : memref<1x32xf32, #tpu.memory_space<vmem>>, vector<1x32xf32>
    %c0_21 = arith.constant 0 : index
    %c0_22 = arith.constant 0 : index
    %11 = vector.load %arg24[%c0_21, %c0_22] : memref<8x32xf32, #tpu.memory_space<vmem>>, vector<8x32xf32>
    %c0_23 = arith.constant 0 : index
    %c0_24 = arith.constant 0 : index
    %12 = vector.load %arg25[%c0_23, %c0_24] : memref<1x32xf32, #tpu.memory_space<vmem>>, vector<1x32xf32>
    %c0_25 = arith.constant 0 : index
    %c0_26 = arith.constant 0 : index
    %13 = vector.load %arg26[%c0_25, %c0_26] : memref<1x32xf32, #tpu.memory_space<vmem>>, vector<1x32xf32>
    %c0_27 = arith.constant 0 : index
    %c0_28 = arith.constant 0 : index
    %14 = vector.load %arg27[%c0_27, %c0_28] : memref<1x1xf32, #tpu.memory_space<vmem>>, vector<1x1xf32>
    %c0_29 = arith.constant 0 : index
    %c0_30 = arith.constant 0 : index
    %15 = vector.load %arg12[%c0_29, %c0_30] : memref<32x32xf32, #tpu.memory_space<vmem>>, vector<32x32xf32>
    %c0_31 = arith.constant 0 : index
    %c0_32 = arith.constant 0 : index
    %16 = vector.load %arg13[%c0_31, %c0_32] : memref<1x32xf32, #tpu.memory_space<vmem>>, vector<1x32xf32>
    %c0_33 = arith.constant 0 : index
    %c0_34 = arith.constant 0 : index
    %17 = vector.load %arg14[%c0_33, %c0_34] : memref<32x32xf32, #tpu.memory_space<vmem>>, vector<32x32xf32>
    %c0_35 = arith.constant 0 : index
    %c0_36 = arith.constant 0 : index
    %18 = vector.load %arg15[%c0_35, %c0_36] : memref<1x32xf32, #tpu.memory_space<vmem>>, vector<1x32xf32>
    %c0_37 = arith.constant 0 : index
    %c0_38 = arith.constant 0 : index
    %19 = vector.load %arg16[%c0_37, %c0_38] : memref<32x32xf32, #tpu.memory_space<vmem>>, vector<32x32xf32>
    %c0_39 = arith.constant 0 : index
    %c0_40 = arith.constant 0 : index
    %20 = vector.load %arg17[%c0_39, %c0_40] : memref<1x32xf32, #tpu.memory_space<vmem>>, vector<1x32xf32>
    %c0_41 = arith.constant 0 : index
    %c0_42 = arith.constant 0 : index
    %21 = vector.load %arg18[%c0_41, %c0_42] : memref<32x32xf32, #tpu.memory_space<vmem>>, vector<32x32xf32>
    %c0_43 = arith.constant 0 : index
    %c0_44 = arith.constant 0 : index
    %22 = vector.load %arg19[%c0_43, %c0_44] : memref<1x32xf32, #tpu.memory_space<vmem>>, vector<1x32xf32>
    %c0_45 = arith.constant 0 : index
    %c0_46 = arith.constant 0 : index
    %23 = vector.load %arg20[%c0_45, %c0_46] : memref<32x64xf32, #tpu.memory_space<vmem>>, vector<32x64xf32>
    %c0_47 = arith.constant 0 : index
    %c0_48 = arith.constant 0 : index
    %24 = vector.load %arg21[%c0_47, %c0_48] : memref<64x32xf32, #tpu.memory_space<vmem>>, vector<64x32xf32>
    %25 = tpu.iota {dimensions = array<i32: 1>} : vector<1x16xi32>
    %26 = tpu.iota {dimensions = array<i32: 0>} : vector<16x16xi32>
    %27 = tpu.iota {dimensions = array<i32: 1>} : vector<16x16xi32>
    %c0_49 = arith.constant 0 : index
    %c0_50 = arith.constant 0 : index
    %c0_51 = arith.constant 0 : index
    %28 = vector.load %arg1[%c0_49, %c0_50, %c0_51] : memref<1x16x8xf32, #tpu.memory_space<vmem>>, vector<1x16x8xf32>
    %29 = vector.shape_cast %28 : vector<1x16x8xf32> to vector<16x8xf32>
    %30 = vector.extract_strided_slice %29 {offsets = [0, 0], sizes = [16, 4], strides = [1, 1]} : vector<16x8xf32> to vector<16x4xf32>
    %cst = arith.constant dense<0.000000e+00> : vector<32x4xf32>
    %31 = tpu.matmul %0, %30, %cst {dimension_numbers = #tpu.dot_dimension_numbers<[1], [0], [0], [1], [0, 0, 1, 1], [], []>} : vector<32x16xf32>, vector<16x4xf32>, vector<32x4xf32> -> vector<32x4xf32>
    %cst_52 = arith.constant dense<0.000000e+00> : vector<16x32xf32>
    %32 = tpu.matmul %29, %6, %cst_52 {dimension_numbers = #tpu.dot_dimension_numbers<[1], [0], [0], [1], [0, 0, 1, 1], [], []>} : vector<16x8xf32>, vector<8x32xf32>, vector<16x32xf32> -> vector<16x32xf32>
    %33 = vector.extract_strided_slice %31 {offsets = [0, 0], sizes = [16, 4], strides = [1, 1]} : vector<32x4xf32> to vector<16x4xf32>
    %cst_53 = arith.constant dense<0.000000e+00> : vector<16x32xf32>
    %34 = tpu.matmul %33, %7, %cst_53 {dimension_numbers = #tpu.dot_dimension_numbers<[1], [0], [0], [1], [0, 0, 1, 1], [], []>} : vector<16x4xf32>, vector<4x32xf32>, vector<16x32xf32> -> vector<16x32xf32>
    %35 = arith.addf %32, %34 : vector<16x32xf32>
    %36 = vector.extract_strided_slice %31 {offsets = [16, 0], sizes = [16, 4], strides = [1, 1]} : vector<32x4xf32> to vector<16x4xf32>
    %cst_54 = arith.constant dense<0.000000e+00> : vector<16x32xf32>
    %37 = tpu.matmul %36, %8, %cst_54 {dimension_numbers = #tpu.dot_dimension_numbers<[1], [0], [0], [1], [0, 0, 1, 1], [], []>} : vector<16x4xf32>, vector<4x32xf32>, vector<16x32xf32> -> vector<16x32xf32>
    %38 = arith.addf %35, %37 : vector<16x32xf32>
    %cst_55 = arith.constant dense<0.000000e+00> : vector<16x32xf32>
    %39 = tpu.matmul %38, %15, %cst_55 {dimension_numbers = #tpu.dot_dimension_numbers<[1], [0], [0], [1], [0, 0, 1, 1], [], []>} : vector<16x32xf32>, vector<32x32xf32>, vector<16x32xf32> -> vector<16x32xf32>
    %40 = vector.broadcast %16 : vector<1x32xf32> to vector<16x32xf32>
    %41 = arith.addf %39, %40 : vector<16x32xf32>
    %cst_56 = arith.constant dense<0.000000e+00> : vector<16x32xf32>
    %42 = tpu.matmul %38, %17, %cst_56 {dimension_numbers = #tpu.dot_dimension_numbers<[1], [0], [0], [1], [0, 0, 1, 1], [], []>} : vector<16x32xf32>, vector<32x32xf32>, vector<16x32xf32> -> vector<16x32xf32>
    %43 = vector.broadcast %18 : vector<1x32xf32> to vector<16x32xf32>
    %44 = arith.addf %42, %43 : vector<16x32xf32>
    %cst_57 = arith.constant dense<0.000000e+00> : vector<16x32xf32>
    %45 = tpu.matmul %38, %19, %cst_57 {dimension_numbers = #tpu.dot_dimension_numbers<[1], [0], [0], [1], [0, 0, 1, 1], [], []>} : vector<16x32xf32>, vector<32x32xf32>, vector<16x32xf32> -> vector<16x32xf32>
    %46 = vector.broadcast %20 : vector<1x32xf32> to vector<16x32xf32>
    %47 = arith.addf %45, %46 : vector<16x32xf32>
    %cst_58 = arith.constant dense<0.000000e+00> : vector<16x16xf32>
    %48 = tpu.matmul %41, %44, %cst_58 {dimension_numbers = #tpu.dot_dimension_numbers<[1], [1], [0], [0], [0, 0, 1, 0], [], []>} : vector<16x32xf32>, vector<16x32xf32>, vector<16x16xf32> -> vector<16x16xf32>
    %cst_59 = arith.constant dense<0.000000e+00> : vector<16x256xf32>
    %49 = tpu.matmul %48, %2, %cst_59 {dimension_numbers = #tpu.dot_dimension_numbers<[1], [0], [0], [1], [0, 0, 1, 1], [], []>} : vector<16x16xf32>, vector<16x256xf32>, vector<16x256xf32> -> vector<16x256xf32>
    %50 = arith.mulf %49, %3 : vector<16x256xf32>
    %cst_60 = arith.constant dense<0.000000e+00> : vector<16x16xf32>
    %51 = tpu.matmul %50, %4, %cst_60 {dimension_numbers = #tpu.dot_dimension_numbers<[1], [0], [0], [1], [0, 0, 1, 1], [], []>} : vector<16x256xf32>, vector<256x16xf32>, vector<16x16xf32> -> vector<16x16xf32>
    %cst_61 = arith.constant dense<0.000000e+00> : vector<16xf32>
    %52 = vector.multi_reduction <add>, %51, %cst_61 [0] : vector<16x16xf32> to vector<16xf32>
    %53 = vector.shape_cast %52 : vector<16xf32> to vector<1x16xf32>
    %cst_62 = arith.constant dense<0xFF800000> : vector<1xf32>
    %54 = vector.multi_reduction <maximumf>, %53, %cst_62 [1] : vector<1x16xf32> to vector<1xf32>
    %55 = vector.shape_cast %54 : vector<1xf32> to vector<1x1xf32>
    %56 = vector.broadcast %55 : vector<1x1xf32> to vector<1x16xf32>
    %57 = arith.cmpf oge, %53, %56 : vector<1x16xf32>
    %c16_i32 = arith.constant 16 : i32
    %58 = vector.broadcast %c16_i32 : i32 to vector<1x16xi32>
    %59 = arith.select %57, %25, %58 : vector<1x16xi1>, vector<1x16xi32>
    %cst_63 = arith.constant dense<2147483647> : vector<1xi32>
    %60 = vector.multi_reduction <minsi>, %59, %cst_63 [1] : vector<1x16xi32> to vector<1xi32>
    %61 = vector.shape_cast %60 : vector<1xi32> to vector<1x1xi32>
    %62 = vector.broadcast %61 : vector<1x1xi32> to vector<1x16xi32>
    %63 = arith.cmpi eq, %25, %62 : vector<1x16xi32>
    %cst_64 = arith.constant -3.000000e+38 : f32
    %64 = vector.broadcast %cst_64 : f32 to vector<1x16xf32>
    %65 = arith.select %63, %64, %53 : vector<1x16xi1>, vector<1x16xf32>
    %cst_65 = arith.constant dense<0xFF800000> : vector<1xf32>
    %66 = vector.multi_reduction <maximumf>, %65, %cst_65 [1] : vector<1x16xf32> to vector<1xf32>
    %67 = vector.shape_cast %66 : vector<1xf32> to vector<1x1xf32>
    %68 = vector.broadcast %67 : vector<1x1xf32> to vector<1x16xf32>
    %69 = arith.cmpf oge, %65, %68 : vector<1x16xf32>
    %c16_i32_66 = arith.constant 16 : i32
    %70 = vector.broadcast %c16_i32_66 : i32 to vector<1x16xi32>
    %71 = arith.select %69, %25, %70 : vector<1x16xi1>, vector<1x16xi32>
    %cst_67 = arith.constant dense<2147483647> : vector<1xi32>
    %72 = vector.multi_reduction <minsi>, %71, %cst_67 [1] : vector<1x16xi32> to vector<1xi32>
    %73 = vector.shape_cast %72 : vector<1xi32> to vector<1x1xi32>
    %74 = arith.subf %55, %55 : vector<1x1xf32>
    %75 = math.exp %74 : vector<1x1xf32>
    %76 = arith.subf %67, %55 : vector<1x1xf32>
    %77 = math.exp %76 : vector<1x1xf32>
    %78 = arith.addf %75, %77 : vector<1x1xf32>
    %79 = tpu.reciprocal %78 {approx = true} : vector<1x1xf32> -> vector<1x1xf32>
    %cst_68 = arith.constant 0.000000e+00 : f32
    %80 = vector.broadcast %cst_68 : f32 to vector<16x16xf32>
    %81 = arith.subi %27, %26 : vector<16x16xi32>
    %82 = vector.broadcast %61 : vector<1x1xi32> to vector<16x16xi32>
    %83 = arith.subi %81, %82 : vector<16x16xi32>
    %c0_i32 = arith.constant 0 : i32
    %84 = vector.broadcast %c0_i32 : i32 to vector<16x16xi32>
    %85 = arith.cmpi eq, %83, %84 : vector<16x16xi32>
    %c-16_i32 = arith.constant -16 : i32
    %86 = vector.broadcast %c-16_i32 : i32 to vector<16x16xi32>
    %87 = arith.cmpi eq, %83, %86 : vector<16x16xi32>
    %88 = arith.ori %85, %87 : vector<16x16xi1>
    %89 = arith.extui %88 : vector<16x16xi1> to vector<16x16xi32>
    %90 = arith.sitofp %89 : vector<16x16xi32> to vector<16x16xf32>
    %91 = arith.mulf %75, %79 : vector<1x1xf32>
    %92 = vector.broadcast %91 : vector<1x1xf32> to vector<16x16xf32>
    %93 = arith.mulf %92, %90 : vector<16x16xf32>
    %94 = arith.addf %80, %93 : vector<16x16xf32>
    %95 = arith.subi %27, %26 : vector<16x16xi32>
    %96 = vector.broadcast %73 : vector<1x1xi32> to vector<16x16xi32>
    %97 = arith.subi %95, %96 : vector<16x16xi32>
    %c0_i32_69 = arith.constant 0 : i32
    %98 = vector.broadcast %c0_i32_69 : i32 to vector<16x16xi32>
    %99 = arith.cmpi eq, %97, %98 : vector<16x16xi32>
    %c-16_i32_70 = arith.constant -16 : i32
    %100 = vector.broadcast %c-16_i32_70 : i32 to vector<16x16xi32>
    %101 = arith.cmpi eq, %97, %100 : vector<16x16xi32>
    %102 = arith.ori %99, %101 : vector<16x16xi1>
    %103 = arith.extui %102 : vector<16x16xi1> to vector<16x16xi32>
    %104 = arith.sitofp %103 : vector<16x16xi32> to vector<16x16xf32>
    %105 = arith.mulf %77, %79 : vector<1x1xf32>
    %106 = vector.broadcast %105 : vector<1x1xf32> to vector<16x16xf32>
    %107 = arith.mulf %106, %104 : vector<16x16xf32>
    %108 = arith.addf %94, %107 : vector<16x16xf32>
    %cst_71 = arith.constant dense<0.000000e+00> : vector<16x32xf32>
    %109 = tpu.matmul %108, %47, %cst_71 {dimension_numbers = #tpu.dot_dimension_numbers<[1], [0], [0], [1], [0, 0, 1, 1], [], []>} : vector<16x16xf32>, vector<16x32xf32>, vector<16x32xf32> -> vector<16x32xf32>
    %cst_72 = arith.constant dense<0.000000e+00> : vector<16x32xf32>
    %110 = tpu.matmul %109, %21, %cst_72 {dimension_numbers = #tpu.dot_dimension_numbers<[1], [0], [0], [1], [0, 0, 1, 1], [], []>} : vector<16x32xf32>, vector<32x32xf32>, vector<16x32xf32> -> vector<16x32xf32>
    %111 = arith.addf %38, %110 : vector<16x32xf32>
    %112 = vector.broadcast %22 : vector<1x32xf32> to vector<16x32xf32>
    %113 = arith.addf %111, %112 : vector<16x32xf32>
    %cst_73 = arith.constant dense<0.000000e+00> : vector<16x32xf32>
    %114 = tpu.matmul %1, %113, %cst_73 {dimension_numbers = #tpu.dot_dimension_numbers<[1], [0], [0], [1], [0, 0, 1, 1], [], []>} : vector<16x16xf32>, vector<16x32xf32>, vector<16x32xf32> -> vector<16x32xf32>
    %115 = arith.subf %113, %114 : vector<16x32xf32>
    %cst_74 = arith.constant dense<0.000000e+00> : vector<16x64xf32>
    %116 = tpu.matmul %115, %23, %cst_74 {dimension_numbers = #tpu.dot_dimension_numbers<[1], [0], [0], [1], [0, 0, 1, 1], [], []>} : vector<16x32xf32>, vector<32x64xf32>, vector<16x64xf32> -> vector<16x64xf32>
    %cst_75 = arith.constant 0.000000e+00 : f32
    %117 = vector.broadcast %cst_75 : f32 to vector<16x64xf32>
    %118 = arith.maximumf %116, %117 : vector<16x64xf32>
    %cst_76 = arith.constant dense<0.000000e+00> : vector<16x32xf32>
    %119 = tpu.matmul %118, %24, %cst_76 {dimension_numbers = #tpu.dot_dimension_numbers<[1], [0], [0], [1], [0, 0, 1, 1], [], []>} : vector<16x64xf32>, vector<64x32xf32>, vector<16x32xf32> -> vector<16x32xf32>
    %120 = arith.addf %115, %119 : vector<16x32xf32>
    %cst_77 = arith.constant dense<0.000000e+00> : vector<16x32xf32>
    %121 = tpu.matmul %1, %120, %cst_77 {dimension_numbers = #tpu.dot_dimension_numbers<[1], [0], [0], [1], [0, 0, 1, 1], [], []>} : vector<16x16xf32>, vector<16x32xf32>, vector<16x32xf32> -> vector<16x32xf32>
    %122 = arith.subf %120, %121 : vector<16x32xf32>
    %cst_78 = arith.constant dense<0.000000e+00> : vector<16xf32>
    %123 = vector.multi_reduction <add>, %122, %cst_78 [1] : vector<16x32xf32> to vector<16xf32>
    %124 = vector.shape_cast %123 : vector<16xf32> to vector<16x1xf32>
    %cst_79 = arith.constant 3.200000e+01 : f32
    %125 = vector.broadcast %cst_79 : f32 to vector<16x1xf32>
    %126 = arith.divf %124, %125 : vector<16x1xf32>
    %127 = vector.broadcast %126 : vector<16x1xf32> to vector<16x32xf32>
    %128 = arith.subf %122, %127 : vector<16x32xf32>
    %129 = arith.mulf %128, %128 : vector<16x32xf32>
    %cst_80 = arith.constant dense<0.000000e+00> : vector<16xf32>
    %130 = vector.multi_reduction <add>, %129, %cst_80 [1] : vector<16x32xf32> to vector<16xf32>
    %131 = vector.shape_cast %130 : vector<16xf32> to vector<16x1xf32>
    %cst_81 = arith.constant 3.200000e+01 : f32
    %132 = vector.broadcast %cst_81 : f32 to vector<16x1xf32>
    %133 = arith.divf %131, %132 : vector<16x1xf32>
    %134 = vector.broadcast %126 : vector<16x1xf32> to vector<16x32xf32>
    %135 = arith.subf %122, %134 : vector<16x32xf32>
    %cst_82 = arith.constant 9.99999974E-6 : f32
    %136 = vector.broadcast %cst_82 : f32 to vector<16x1xf32>
    %137 = arith.addf %133, %136 : vector<16x1xf32>
    %138 = math.rsqrt %137 : vector<16x1xf32>
    %139 = vector.broadcast %138 : vector<16x1xf32> to vector<16x32xf32>
    %140 = arith.mulf %135, %139 : vector<16x32xf32>
    %141 = vector.broadcast %9 : vector<1x32xf32> to vector<16x32xf32>
    %142 = arith.mulf %140, %141 : vector<16x32xf32>
    %143 = vector.broadcast %10 : vector<1x32xf32> to vector<16x32xf32>
    %144 = arith.addf %142, %143 : vector<16x32xf32>
    %cst_83 = arith.constant dense<0.000000e+00> : vector<32xf32>
    %145 = vector.multi_reduction <add>, %144, %cst_83 [0] : vector<16x32xf32> to vector<32xf32>
    %146 = vector.shape_cast %145 : vector<32xf32> to vector<1x32xf32>
    %cst_84 = arith.constant 1.600000e+01 : f32
    %147 = vector.broadcast %cst_84 : f32 to vector<1x32xf32>
    %148 = arith.divf %146, %147 : vector<1x32xf32>
    %149 = vector.broadcast %148 : vector<1x32xf32> to vector<16x32xf32>
    %150 = arith.subf %144, %149 : vector<16x32xf32>
    %151 = vector.broadcast %5 : vector<16x1xf32> to vector<16x32xf32>
    %152 = arith.mulf %150, %151 : vector<16x32xf32>
    %cst_85 = arith.constant dense<0.000000e+00> : vector<32xf32>
    %153 = vector.multi_reduction <add>, %152, %cst_85 [0] : vector<16x32xf32> to vector<32xf32>
    %154 = vector.shape_cast %153 : vector<32xf32> to vector<1x32xf32>
    %c0_86 = arith.constant 0 : index
    %c0_87 = arith.constant 0 : index
    %c0_88 = arith.constant 0 : index
    %155 = vector.load %arg2[%c0_86, %c0_87, %c0_88] : memref<1x1x8xf32, #tpu.memory_space<vmem>>, vector<1x1x8xf32>
    %156 = vector.shape_cast %155 : vector<1x1x8xf32> to vector<1x8xf32>
    %cst_89 = arith.constant dense<0.000000e+00> : vector<1x32xf32>
    %157 = tpu.matmul %156, %11, %cst_89 {dimension_numbers = #tpu.dot_dimension_numbers<[1], [0], [0], [1], [0, 0, 1, 1], [], []>} : vector<1x8xf32>, vector<8x32xf32>, vector<1x32xf32> -> vector<1x32xf32>
    %158 = arith.addf %154, %157 : vector<1x32xf32>
    %159 = arith.addf %158, %12 : vector<1x32xf32>
    %cst_90 = arith.constant 0.000000e+00 : f32
    %160 = vector.broadcast %cst_90 : f32 to vector<1x32xf32>
    %161 = arith.maximumf %159, %160 : vector<1x32xf32>
    %162 = arith.mulf %161, %13 : vector<1x32xf32>
    %cst_91 = arith.constant dense<0.000000e+00> : vector<1xf32>
    %163 = vector.multi_reduction <add>, %162, %cst_91 [1] : vector<1x32xf32> to vector<1xf32>
    %164 = vector.shape_cast %163 : vector<1xf32> to vector<1x1xf32>
    %165 = arith.addf %164, %14 : vector<1x1xf32>
    %166 = vector.shape_cast %165 : vector<1x1xf32> to vector<1x1x1xf32>
    %167 = vector.shape_cast %166 : vector<1x1x1xf32> to vector<1x1x1xf32>
    %168 = vector.broadcast %167 : vector<1x1x1xf32> to vector<1x1x128xf32>
    %c0_92 = arith.constant 0 : index
    %c0_93 = arith.constant 0 : index
    %c0_94 = arith.constant 0 : index
    %169 = vector.load %arg28[%c0_92, %c0_93, %c0_94] : memref<1x1x128xf32, #tpu.memory_space<vmem>>, vector<1x1x128xf32>
    tpu.vector_store %arg28[%c0_92, %c0_93, %c0_94], %168 {strides = array<i32>} : memref<1x1x128xf32, #tpu.memory_space<vmem>>, vector<1x1x128xf32>,
    return
  }
  func.func @transform_0(%arg0: i32) -> (i32, i32, i32) {
    %c0_i32 = arith.constant 0 : i32
    %c0_i32_0 = arith.constant 0 : i32
    %c0_i32_1 = arith.constant 0 : i32
    return %arg0, %c0_i32, %c0_i32_0 : i32, i32, i32
  }
  func.func @transform_1(%arg0: i32) -> (i32, i32, i32) {
    %c0_i32 = arith.constant 0 : i32
    %c0_i32_0 = arith.constant 0 : i32
    %c0_i32_1 = arith.constant 0 : i32
    return %arg0, %c0_i32, %c0_i32_0 : i32, i32, i32
  }
  func.func @transform_2(%arg0: i32) -> (i32, i32) {
    %c0_i32 = arith.constant 0 : i32
    %c0_i32_0 = arith.constant 0 : i32
    %c0_i32_1 = arith.constant 0 : i32
    return %c0_i32, %c0_i32_0 : i32, i32
  }
  func.func @transform_3(%arg0: i32) -> (i32, i32) {
    %c0_i32 = arith.constant 0 : i32
    %c0_i32_0 = arith.constant 0 : i32
    %c0_i32_1 = arith.constant 0 : i32
    return %c0_i32, %c0_i32_0 : i32, i32
  }
  func.func @transform_4(%arg0: i32) -> (i32, i32) {
    %c0_i32 = arith.constant 0 : i32
    %c0_i32_0 = arith.constant 0 : i32
    %c0_i32_1 = arith.constant 0 : i32
    return %c0_i32, %c0_i32_0 : i32, i32
  }
  func.func @transform_5(%arg0: i32) -> (i32, i32) {
    %c0_i32 = arith.constant 0 : i32
    %c0_i32_0 = arith.constant 0 : i32
    %c0_i32_1 = arith.constant 0 : i32
    return %c0_i32, %c0_i32_0 : i32, i32
  }
  func.func @transform_6(%arg0: i32) -> (i32, i32) {
    %c0_i32 = arith.constant 0 : i32
    %c0_i32_0 = arith.constant 0 : i32
    %c0_i32_1 = arith.constant 0 : i32
    return %c0_i32, %c0_i32_0 : i32, i32
  }
  func.func @transform_7(%arg0: i32) -> (i32, i32) {
    %c0_i32 = arith.constant 0 : i32
    %c0_i32_0 = arith.constant 0 : i32
    %c0_i32_1 = arith.constant 0 : i32
    return %c0_i32, %c0_i32_0 : i32, i32
  }
  func.func @transform_8(%arg0: i32) -> (i32, i32) {
    %c0_i32 = arith.constant 0 : i32
    %c0_i32_0 = arith.constant 0 : i32
    %c0_i32_1 = arith.constant 0 : i32
    return %c0_i32, %c0_i32_0 : i32, i32
  }
  func.func @transform_9(%arg0: i32) -> (i32, i32) {
    %c0_i32 = arith.constant 0 : i32
    %c0_i32_0 = arith.constant 0 : i32
    %c0_i32_1 = arith.constant 0 : i32
    return %c0_i32, %c0_i32_0 : i32, i32
  }
  func.func @transform_10(%arg0: i32) -> (i32, i32) {
    %c0_i32 = arith.constant 0 : i32
    %c0_i32_0 = arith.constant 0 : i32
    %c0_i32_1 = arith.constant 0 : i32
    return %c0_i32, %c0_i32_0 : i32, i32
  }
  func.func @transform_11(%arg0: i32) -> (i32, i32) {
    %c0_i32 = arith.constant 0 : i32
    %c0_i32_0 = arith.constant 0 : i32
    %c0_i32_1 = arith.constant 0 : i32
    return %c0_i32, %c0_i32_0 : i32, i32
  }
  func.func @transform_12(%arg0: i32) -> (i32, i32) {
    %c0_i32 = arith.constant 0 : i32
    %c0_i32_0 = arith.constant 0 : i32
    %c0_i32_1 = arith.constant 0 : i32
    return %c0_i32, %c0_i32_0 : i32, i32
  }
  func.func @transform_13(%arg0: i32) -> (i32, i32) {
    %c0_i32 = arith.constant 0 : i32
    %c0_i32_0 = arith.constant 0 : i32
    %c0_i32_1 = arith.constant 0 : i32
    return %c0_i32, %c0_i32_0 : i32, i32
  }
  func.func @transform_14(%arg0: i32) -> (i32, i32) {
    %c0_i32 = arith.constant 0 : i32
    %c0_i32_0 = arith.constant 0 : i32
    %c0_i32_1 = arith.constant 0 : i32
    return %c0_i32, %c0_i32_0 : i32, i32
  }
  func.func @transform_15(%arg0: i32) -> (i32, i32) {
    %c0_i32 = arith.constant 0 : i32
    %c0_i32_0 = arith.constant 0 : i32
    %c0_i32_1 = arith.constant 0 : i32
    return %c0_i32, %c0_i32_0 : i32, i32
  }
  func.func @transform_16(%arg0: i32) -> (i32, i32) {
    %c0_i32 = arith.constant 0 : i32
    %c0_i32_0 = arith.constant 0 : i32
    %c0_i32_1 = arith.constant 0 : i32
    return %c0_i32, %c0_i32_0 : i32, i32
  }
  func.func @transform_17(%arg0: i32) -> (i32, i32) {
    %c0_i32 = arith.constant 0 : i32
    %c0_i32_0 = arith.constant 0 : i32
    %c0_i32_1 = arith.constant 0 : i32
    return %c0_i32, %c0_i32_0 : i32, i32
  }
  func.func @transform_18(%arg0: i32) -> (i32, i32) {
    %c0_i32 = arith.constant 0 : i32
    %c0_i32_0 = arith.constant 0 : i32
    %c0_i32_1 = arith.constant 0 : i32
    return %c0_i32, %c0_i32_0 : i32, i32
  }
  func.func @transform_19(%arg0: i32) -> (i32, i32) {
    %c0_i32 = arith.constant 0 : i32
    %c0_i32_0 = arith.constant 0 : i32
    %c0_i32_1 = arith.constant 0 : i32
    return %c0_i32, %c0_i32_0 : i32, i32
  }
  func.func @transform_20(%arg0: i32) -> (i32, i32) {
    %c0_i32 = arith.constant 0 : i32
    %c0_i32_0 = arith.constant 0 : i32
    %c0_i32_1 = arith.constant 0 : i32
    return %c0_i32, %c0_i32_0 : i32, i32
  }
  func.func @transform_21(%arg0: i32) -> (i32, i32) {
    %c0_i32 = arith.constant 0 : i32
    %c0_i32_0 = arith.constant 0 : i32
    %c0_i32_1 = arith.constant 0 : i32
    return %c0_i32, %c0_i32_0 : i32, i32
  }
  func.func @transform_22(%arg0: i32) -> (i32, i32) {
    %c0_i32 = arith.constant 0 : i32
    %c0_i32_0 = arith.constant 0 : i32
    %c0_i32_1 = arith.constant 0 : i32
    return %c0_i32, %c0_i32_0 : i32, i32
  }
  func.func @transform_23(%arg0: i32) -> (i32, i32) {
    %c0_i32 = arith.constant 0 : i32
    %c0_i32_0 = arith.constant 0 : i32
    %c0_i32_1 = arith.constant 0 : i32
    return %c0_i32, %c0_i32_0 : i32, i32
  }
  func.func @transform_24(%arg0: i32) -> (i32, i32) {
    %c0_i32 = arith.constant 0 : i32
    %c0_i32_0 = arith.constant 0 : i32
    %c0_i32_1 = arith.constant 0 : i32
    return %c0_i32, %c0_i32_0 : i32, i32
  }
  func.func @transform_25(%arg0: i32) -> (i32, i32) {
    %c0_i32 = arith.constant 0 : i32
    %c0_i32_0 = arith.constant 0 : i32
    %c0_i32_1 = arith.constant 0 : i32
    return %c0_i32, %c0_i32_0 : i32, i32
  }
  func.func @transform_26(%arg0: i32) -> (i32, i32) {
    %c0_i32 = arith.constant 0 : i32
    %c0_i32_0 = arith.constant 0 : i32
    %c0_i32_1 = arith.constant 0 : i32
    return %c0_i32, %c0_i32_0 : i32, i32
  }
  func.func @transform_27(%arg0: i32) -> (i32, i32, i32) {
    %c0_i32 = arith.constant 0 : i32
    %c0_i32_0 = arith.constant 0 : i32
    %c0_i32_1 = arith.constant 0 : i32
    return %arg0, %c0_i32, %c0_i32_0 : i32, i32, i32
  }
}

</mosaic_0001>

<llo_original>
// kernel: double_critic_forward.1
$region0: #{double_critic_forward.1}
  #allocation0 [shape = 'u32[]', space=smem, size = 0x4, offset = 0x4, fixed_abs, tag = 'smem constant byte address 0x4 - core index']
  #allocation1 [shape = 'u32[144,128]{1,0:T(1,128)}', space=vmem, size = 0x12000, scoped, tag = 'internal scratch']
  #allocation2 [shape = 'f32[1,1]{1,0:T(1,128)S(1)}', space=vmem, size = 0x200, scoped, tag = 'scoped memory for double_critic_forward.1']
  %s0 = inlined_call_operand.vmem [shape: f32[2,16,8], index: 0, kind: input, shape index: {}]
  %s1 = inlined_call_operand.vmem [shape: f32[2,1,8], index: 1, kind: input, shape index: {}]
  %s2 = inlined_call_operand.vmem [shape: f32[32,16], index: 2, kind: input, shape index: {}]
  %s3 = inlined_call_operand.vmem [shape: f32[16,16], index: 3, kind: input, shape index: {}]
  %s4 = inlined_call_operand.vmem [shape: f32[16,256], index: 4, kind: input, shape index: {}]
  %s5 = inlined_call_operand.vmem [shape: f32[16,256], index: 5, kind: input, shape index: {}]
  %s6 = inlined_call_operand.vmem [shape: f32[256,16], index: 6, kind: input, shape index: {}]
  %s7 = inlined_call_operand.vmem [shape: f32[16,1], index: 7, kind: input, shape index: {}]
  %s8 = inlined_call_operand.vmem [shape: f32[8,32], index: 8, kind: input, shape index: {}]
  %s9 = inlined_call_operand.vmem [shape: f32[4,32], index: 9, kind: input, shape index: {}]
  %s10 = inlined_call_operand.vmem [shape: f32[4,32], index: 10, kind: input, shape index: {}]
  %s11 = inlined_call_operand.vmem [shape: f32[32,32], index: 11, kind: input, shape index: {}]
  %s12 = inlined_call_operand.vmem [shape: f32[1,32], index: 12, kind: input, shape index: {}]
  %s13 = inlined_call_operand.vmem [shape: f32[32,32], index: 13, kind: input, shape index: {}]
  %s14 = inlined_call_operand.vmem [shape: f32[1,32], index: 14, kind: input, shape index: {}]
  %s15 = inlined_call_operand.vmem [shape: f32[32,32], index: 15, kind: input, shape index: {}]
  %s16 = inlined_call_operand.vmem [shape: f32[1,32], index: 16, kind: input, shape index: {}]
  %s17 = inlined_call_operand.vmem [shape: f32[32,32], index: 17, kind: input, shape index: {}]
  %s18 = inlined_call_operand.vmem [shape: f32[1,32], index: 18, kind: input, shape index: {}]
  %s19 = inlined_call_operand.vmem [shape: f32[32,64], index: 19, kind: input, shape index: {}]
  %s20 = inlined_call_operand.vmem [shape: f32[64,32], index: 20, kind: input, shape index: {}]
  %s21 = inlined_call_operand.vmem [shape: f32[1,32], index: 21, kind: input, shape index: {}]
  %s22 = inlined_call_operand.vmem [shape: f32[1,32], index: 22, kind: input, shape index: {}]
  %s23 = inlined_call_operand.vmem [shape: f32[8,32], index: 23, kind: input, shape index: {}]
  %s24 = inlined_call_operand.vmem [shape: f32[1,32], index: 24, kind: input, shape index: {}]
  %s25 = inlined_call_operand.vmem [shape: f32[1,32], index: 25, kind: input, shape index: {}]
  %s26 = inlined_call_operand.<no memory space> [shape: f32[1,1], index: 26, kind: input, shape index: {}]
  %s27 = inlined_call_operand.vmem [shape: f32[2,1,128], index: 27, kind: output, shape index: {}]
  %s28 = sld [smem:[#allocation0]]
  $region141: #{double_critic_forward.1} parent=0
    _
  %s30 = ssub.s32 1, %s28
  %s31 = scalar_select 0, %s30, %s28
  %v32 = vstv %s26
  %33 = vst [vmem:[#allocation2] sm:$0x1] %v32
  loop: start=0, step=1, limit=4
  $region2: #{double_critic_forward.1} parent=0 // loop_pre_header
    _
  $region3: #{double_critic_forward.1} parent=0 // loop_header
    %s35 = sphi 0, %s39
    %p36 = scmp.ge.s32.totalorder %s35, 4
    %s45 = sphi 0, %s47
    %s48 = sphi 0, %s45
    %s49 = sphi 0, %s48
    %s65 = sphi 0, %s49
    %s71 = sphi 0, %s73
    %s74 = sphi 0, %s71
    %s75 = sphi 0, %s74
    %s91 = sphi 0, %s75
    %s95 = sphi 0, %s95
    %s97 = sphi 0, %s95
    %s98 = sphi 0, %s97
    %s112 = sphi 0, %s98
    %s116 = sphi 0, %s116
    %s118 = sphi 0, %s116
    %s119 = sphi 0, %s118
    %s133 = sphi 0, %s119
    %s137 = sphi 0, %s137
    %s139 = sphi 0, %s137
    %s140 = sphi 0, %s139
    %s154 = sphi 0, %s140
    %s158 = sphi 0, %s158
    %s160 = sphi 0, %s158
    %s161 = sphi 0, %s160
    %s175 = sphi 0, %s161
    %s179 = sphi 0, %s179
    %s181 = sphi 0, %s179
    %s182 = sphi 0, %s181
    %s196 = sphi 0, %s182
    %s200 = sphi 0, %s200
    %s202 = sphi 0, %s200
    %s203 = sphi 0, %s202
    %s217 = sphi 0, %s203
    %s221 = sphi 0, %s221
    %s223 = sphi 0, %s221
    %s224 = sphi 0, %s223
    %s238 = sphi 0, %s224
    %s242 = sphi 0, %s242
    %s244 = sphi 0, %s242
    %s245 = sphi 0, %s244
    %s259 = sphi 0, %s245
    %s263 = sphi 0, %s263
    %s265 = sphi 0, %s263
    %s266 = sphi 0, %s265
    %s280 = sphi 0, %s266
    %s284 = sphi 0, %s284
    %s286 = sphi 0, %s284
    %s287 = sphi 0, %s286
    %s301 = sphi 0, %s287
    %s305 = sphi 0, %s305
    %s307 = sphi 0, %s305
    %s308 = sphi 0, %s307
    %s322 = sphi 0, %s308
    %s326 = sphi 0, %s326
    %s328 = sphi 0, %s326
    %s329 = sphi 0, %s328
    %s343 = sphi 0, %s329
    %s347 = sphi 0, %s347
    %s349 = sphi 0, %s347
    %s350 = sphi 0, %s349
    %s364 = sphi 0, %s350
    %s368 = sphi 0, %s368
    %s370 = sphi 0, %s368
    %s371 = sphi 0, %s370
    %s385 = sphi 0, %s371
    %s389 = sphi 0, %s389
    %s391 = sphi 0, %s389
    %s392 = sphi 0, %s391
    %s406 = sphi 0, %s392
    %s410 = sphi 0, %s410
    %s412 = sphi 0, %s410
    %s413 = sphi 0, %s412
    %s427 = sphi 0, %s413
    %s431 = sphi 0, %s431
    %s433 = sphi 0, %s431
    %s434 = sphi 0, %s433
    %s448 = sphi 0, %s434
    %s452 = sphi 0, %s452
    %s454 = sphi 0, %s452
    %s455 = sphi 0, %s454
    %s469 = sphi 0, %s455
    %s473 = sphi 0, %s473
    %s475 = sphi 0, %s473
    %s476 = sphi 0, %s475
    %s490 = sphi 0, %s476
    %s494 = sphi 0, %s494
    %s496 = sphi 0, %s494
    %s497 = sphi 0, %s496
    %s511 = sphi 0, %s497
    %s515 = sphi 0, %s515
    %s517 = sphi 0, %s515
    %s518 = sphi 0, %s517
    %s532 = sphi 0, %s518
    %s536 = sphi 0, %s536
    %s538 = sphi 0, %s536
    %s539 = sphi 0, %s538
    %s553 = sphi 0, %s539
    %s557 = sphi 0, %s557
    %s559 = sphi 0, %s557
    %s560 = sphi 0, %s559
    %s574 = sphi 0, %s560
    %s578 = sphi 0, %s578
    %s580 = sphi 0, %s578
    %s581 = sphi 0, %s580
    %s595 = sphi 0, %s581
    %s599 = sphi 0, %s599
    %s601 = sphi 0, %s599
    %s602 = sphi 0, %s601
    %s616 = sphi 0, %s602
    %s622 = sphi 0, %s624
    %s625 = sphi 0, %s622
    %s626 = sphi 0, %s625
    %s642 = sphi 0, %s626
  $region4: #{double_critic_forward.1} parent=0 // loop_header_branch
    %38 = sbr.rel (%p36) target = $region8
  $region5: #{double_critic_forward.1} parent=0 // loop_body
    %s40 = ssub.s32 %s35, 1
    %s41 = ssub.s32 %s35, 2
    %s42 = sadd.s32 %s35, 1
    %s43 = ssub.s32 %s35, %s42
    %p44 = scmp.eq.s32.totalorder %s43, 0
    %s46 = sadd.s32 %s45, 1
    %s47 = scalar_select %p44, %s45, %s46
    %p50 = pneg %p44
    %p51 = scmp.eq.s32.totalorder %s35, 1
    %p52 = por %p50, %p51
    %p53 = scmp.ne.s32.totalorder %s45, %s48
    %p54 = scmp.eq.s32.totalorder %s35, 0
    %p55 = por %p53, %p54
    %p56 = scmp.ne.s32.totalorder %s45, %s48
    %p57 = scmp.eq.s32.totalorder %s40, 1
    %p58 = por %p56, %p57
    %p59 = scmp.ne.s32.totalorder %s48, %s49
    %p60 = scmp.eq.s32.totalorder %s40, 0
    %p61 = por %p59, %p60
    %p62 = scmp.ne.s32.totalorder %s48, %s49
    %p63 = scmp.eq.s32.totalorder %s41, 1
    %p64 = por %p62, %p63
    %p66 = scmp.ne.s32.totalorder %s49, %s65
    %p67 = scmp.eq.s32.totalorder %s41, 0
    %p68 = por %p66, %p67
    %s69 = ssub.s32 %s35, %s42
    %p70 = scmp.eq.s32.totalorder %s69, 0
    %s72 = sadd.s32 %s71, 1
    %s73 = scalar_select %p70, %s71, %s72
    %p76 = pneg %p70
    %p77 = scmp.eq.s32.totalorder %s35, 1
    %p78 = por %p76, %p77
    %p79 = scmp.ne.s32.totalorder %s71, %s74
    %p80 = scmp.eq.s32.totalorder %s35, 0
    %p81 = por %p79, %p80
    %p82 = scmp.ne.s32.totalorder %s71, %s74
    %p83 = scmp.eq.s32.totalorder %s40, 1
    %p84 = por %p82, %p83
    %p85 = scmp.ne.s32.totalorder %s74, %s75
    %p86 = scmp.eq.s32.totalorder %s40, 0
    %p87 = por %p85, %p86
    %p88 = scmp.ne.s32.totalorder %s74, %s75
    %p89 = scmp.eq.s32.totalorder %s41, 1
    %p90 = por %p88, %p89
    %p92 = scmp.ne.s32.totalorder %s75, %s91
    %p93 = scmp.eq.s32.totalorder %s41, 0
    %p94 = por %p92, %p93
    %s96 = sadd.s32 %s95, 1
    %p99 = scmp.eq.s32.totalorder %s35, 1
    %p100 = scmp.ne.s32.totalorder %s95, %s97
    %p101 = scmp.eq.s32.totalorder %s35, 0
    %p102 = por %p100, %p101
    %p103 = scmp.ne.s32.totalorder %s95, %s97
    %p104 = scmp.eq.s32.totalorder %s40, 1
    %p105 = por %p103, %p104
    %p106 = scmp.ne.s32.totalorder %s97, %s98
    %p107 = scmp.eq.s32.totalorder %s40, 0
    %p108 = por %p106, %p107
    %p109 = scmp.ne.s32.totalorder %s97, %s98
    %p110 = scmp.eq.s32.totalorder %s41, 1
    %p111 = por %p109, %p110
    %p113 = scmp.ne.s32.totalorder %s98, %s112
    %p114 = scmp.eq.s32.totalorder %s41, 0
    %p115 = por %p113, %p114
    %s117 = sadd.s32 %s116, 1
    %p120 = scmp.eq.s32.totalorder %s35, 1
    %p121 = scmp.ne.s32.totalorder %s116, %s118
    %p122 = scmp.eq.s32.totalorder %s35, 0
    %p123 = por %p121, %p122
    %p124 = scmp.ne.s32.totalorder %s116, %s118
    %p125 = scmp.eq.s32.totalorder %s40, 1
    %p126 = por %p124, %p125
    %p127 = scmp.ne.s32.totalorder %s118, %s119
    %p128 = scmp.eq.s32.totalorder %s40, 0
    %p129 = por %p127, %p128
    %p130 = scmp.ne.s32.totalorder %s118, %s119
    %p131 = scmp.eq.s32.totalorder %s41, 1
    %p132 = por %p130, %p131
    %p134 = scmp.ne.s32.totalorder %s119, %s133
    %p135 = scmp.eq.s32.totalorder %s41, 0
    %p136 = por %p134, %p135
    %s138 = sadd.s32 %s137, 1
    %p141 = scmp.eq.s32.totalorder %s35, 1
    %p142 = scmp.ne.s32.totalorder %s137, %s139
    %p143 = scmp.eq.s32.totalorder %s35, 0
    %p144 = por %p142, %p143
    %p145 = scmp.ne.s32.totalorder %s137, %s139
    %p146 = scmp.eq.s32.totalorder %s40, 1
    %p147 = por %p145, %p146
    %p148 = scmp.ne.s32.totalorder %s139, %s140
    %p149 = scmp.eq.s32.totalorder %s40, 0
    %p150 = por %p148, %p149
    %p151 = scmp.ne.s32.totalorder %s139, %s140
    %p152 = scmp.eq.s32.totalorder %s41, 1
    %p153 = por %p151, %p152
    %p155 = scmp.ne.s32.totalorder %s140, %s154
    %p156 = scmp.eq.s32.totalorder %s41, 0
    %p157 = por %p155, %p156
    %s159 = sadd.s32 %s158, 1
    %p162 = scmp.eq.s32.totalorder %s35, 1
    %p163 = scmp.ne.s32.totalorder %s158, %s160
    %p164 = scmp.eq.s32.totalorder %s35, 0
    %p165 = por %p163, %p164
    %p166 = scmp.ne.s32.totalorder %s158, %s160
    %p167 = scmp.eq.s32.totalorder %s40, 1
    %p168 = por %p166, %p167
    %p169 = scmp.ne.s32.totalorder %s160, %s161
    %p170 = scmp.eq.s32.totalorder %s40, 0
    %p171 = por %p169, %p170
    %p172 = scmp.ne.s32.totalorder %s160, %s161
    %p173 = scmp.eq.s32.totalorder %s41, 1
    %p174 = por %p172, %p173
    %p176 = scmp.ne.s32.totalorder %s161, %s175
    %p177 = scmp.eq.s32.totalorder %s41, 0
    %p178 = por %p176, %p177
    %s180 = sadd.s32 %s179, 1
    %p183 = scmp.eq.s32.totalorder %s35, 1
    %p184 = scmp.ne.s32.totalorder %s179, %s181
    %p185 = scmp.eq.s32.totalorder %s35, 0
    %p186 = por %p184, %p185
    %p187 = scmp.ne.s32.totalorder %s179, %s181
    %p188 = scmp.eq.s32.totalorder %s40, 1
    %p189 = por %p187, %p188
    %p190 = scmp.ne.s32.totalorder %s181, %s182
    %p191 = scmp.eq.s32.totalorder %s40, 0
    %p192 = por %p190, %p191
    %p193 = scmp.ne.s32.totalorder %s181, %s182
    %p194 = scmp.eq.s32.totalorder %s41, 1
    %p195 = por %p193, %p194
    %p197 = scmp.ne.s32.totalorder %s182, %s196
    %p198 = scmp.eq.s32.totalorder %s41, 0
    %p199 = por %p197, %p198
    %s201 = sadd.s32 %s200, 1
    %p204 = scmp.eq.s32.totalorder %s35, 1
    %p205 = scmp.ne.s32.totalorder %s200, %s202
    %p206 = scmp.eq.s32.totalorder %s35, 0
    %p207 = por %p205, %p206
    %p208 = scmp.ne.s32.totalorder %s200, %s202
    %p209 = scmp.eq.s32.totalorder %s40, 1
    %p210 = por %p208, %p209
    %p211 = scmp.ne.s32.totalorder %s202, %s203
    %p212 = scmp.eq.s32.totalorder %s40, 0
    %p213 = por %p211, %p212
    %p214 = scmp.ne.s32.totalorder %s202, %s203
    %p215 = scmp.eq.s32.totalorder %s41, 1
    %p216 = por %p214, %p215
    %p218 = scmp.ne.s32.totalorder %s203, %s217
    %p219 = scmp.eq.s32.totalorder %s41, 0
    %p220 = por %p218, %p219
    %s222 = sadd.s32 %s221, 1
    %p225 = scmp.eq.s32.totalorder %s35, 1
    %p226 = scmp.ne.s32.totalorder %s221, %s223
    %p227 = scmp.eq.s32.totalorder %s35, 0
    %p228 = por %p226, %p227
    %p229 = scmp.ne.s32.totalorder %s221, %s223
    %p230 = scmp.eq.s32.totalorder %s40, 1
    %p231 = por %p229, %p230
    %p232 = scmp.ne.s32.totalorder %s223, %s224
    %p233 = scmp.eq.s32.totalorder %s40, 0
    %p234 = por %p232, %p233
    %p235 = scmp.ne.s32.totalorder %s223, %s224
    %p236 = scmp.eq.s32.totalorder %s41, 1
    %p237 = por %p235, %p236
    %p239 = scmp.ne.s32.totalorder %s224, %s238
    %p240 = scmp.eq.s32.totalorder %s41, 0
    %p241 = por %p239, %p240
    %s243 = sadd.s32 %s242, 1
    %p246 = scmp.eq.s32.totalorder %s35, 1
    %p247 = scmp.ne.s32.totalorder %s242, %s244
    %p248 = scmp.eq.s32.totalorder %s35, 0
    %p249 = por %p247, %p248
    %p250 = scmp.ne.s32.totalorder %s242, %s244
    %p251 = scmp.eq.s32.totalorder %s40, 1
    %p252 = por %p250, %p251
    %p253 = scmp.ne.s32.totalorder %s244, %s245
    %p254 = scmp.eq.s32.totalorder %s40, 0
    %p255 = por %p253, %p254
    %p256 = scmp.ne.s32.totalorder %s244, %s245
    %p257 = scmp.eq.s32.totalorder %s41, 1
    %p258 = por %p256, %p257
    %p260 = scmp.ne.s32.totalorder %s245, %s259
    %p261 = scmp.eq.s32.totalorder %s41, 0
    %p262 = por %p260, %p261
    %s264 = sadd.s32 %s263, 1
    %p267 = scmp.eq.s32.totalorder %s35, 1
    %p268 = scmp.ne.s32.totalorder %s263, %s265
    %p269 = scmp.eq.s32.totalorder %s35, 0
    %p270 = por %p268, %p269
    %p271 = scmp.ne.s32.totalorder %s263, %s265
    %p272 = scmp.eq.s32.totalorder %s40, 1
    %p273 = por %p271, %p272
    %p274 = scmp.ne.s32.totalorder %s265, %s266
    %p275 = scmp.eq.s32.totalorder %s40, 0
    %p276 = por %p274, %p275
    %p277 = scmp.ne.s32.totalorder %s265, %s266
    %p278 = scmp.eq.s32.totalorder %s41, 1
    %p279 = por %p277, %p278
    %p281 = scmp.ne.s32.totalorder %s266, %s280
    %p282 = scmp.eq.s32.totalorder %s41, 0
    %p283 = por %p281, %p282
    %s285 = sadd.s32 %s284, 1
    %p288 = scmp.eq.s32.totalorder %s35, 1
    %p289 = scmp.ne.s32.totalorder %s284, %s286
    %p290 = scmp.eq.s32.totalorder %s35, 0
    %p291 = por %p289, %p290
    %p292 = scmp.ne.s32.totalorder %s284, %s286
    %p293 = scmp.eq.s32.totalorder %s40, 1
    %p294 = por %p292, %p293
    %p295 = scmp.ne.s32.totalorder %s286, %s287
    %p296 = scmp.eq.s32.totalorder %s40, 0
    %p297 = por %p295, %p296
    %p298 = scmp.ne.s32.totalorder %s286, %s287
    %p299 = scmp.eq.s32.totalorder %s41, 1
    %p300 = por %p298, %p299
    %p302 = scmp.ne.s32.totalorder %s287, %s301
    %p303 = scmp.eq.s32.totalorder %s41, 0
    %p304 = por %p302, %p303
    %s306 = sadd.s32 %s305, 1
    %p309 = scmp.eq.s32.totalorder %s35, 1
    %p310 = scmp.ne.s32.totalorder %s305, %s307
    %p311 = scmp.eq.s32.totalorder %s35, 0
    %p312 = por %p310, %p311
    %p313 = scmp.ne.s32.totalorder %s305, %s307
    %p314 = scmp.eq.s32.totalorder %s40, 1
    %p315 = por %p313, %p314
    %p316 = scmp.ne.s32.totalorder %s307, %s308
    %p317 = scmp.eq.s32.totalorder %s40, 0
    %p318 = por %p316, %p317
    %p319 = scmp.ne.s32.totalorder %s307, %s308
    %p320 = scmp.eq.s32.totalorder %s41, 1
    %p321 = por %p319, %p320
    %p323 = scmp.ne.s32.totalorder %s308, %s322
    %p324 = scmp.eq.s32.totalorder %s41, 0
    %p325 = por %p323, %p324
    %s327 = sadd.s32 %s326, 1
    %p330 = scmp.eq.s32.totalorder %s35, 1
    %p331 = scmp.ne.s32.totalorder %s326, %s328
    %p332 = scmp.eq.s32.totalorder %s35, 0
    %p333 = por %p331, %p332
    %p334 = scmp.ne.s32.totalorder %s326, %s328
    %p335 = scmp.eq.s32.totalorder %s40, 1
    %p336 = por %p334, %p335
    %p337 = scmp.ne.s32.totalorder %s328, %s329
    %p338 = scmp.eq.s32.totalorder %s40, 0
    %p339 = por %p337, %p338
    %p340 = scmp.ne.s32.totalorder %s328, %s329
    %p341 = scmp.eq.s32.totalorder %s41, 1
    %p342 = por %p340, %p341
    %p344 = scmp.ne.s32.totalorder %s329, %s343
    %p345 = scmp.eq.s32.totalorder %s41, 0
    %p346 = por %p344, %p345
    %s348 = sadd.s32 %s347, 1
    %p351 = scmp.eq.s32.totalorder %s35, 1
    %p352 = scmp.ne.s32.totalorder %s347, %s349
    %p353 = scmp.eq.s32.totalorder %s35, 0
    %p354 = por %p352, %p353
    %p355 = scmp.ne.s32.totalorder %s347, %s349
    %p356 = scmp.eq.s32.totalorder %s40, 1
    %p357 = por %p355, %p356
    %p358 = scmp.ne.s32.totalorder %s349, %s350
    %p359 = scmp.eq.s32.totalorder %s40, 0
    %p360 = por %p358, %p359
    %p361 = scmp.ne.s32.totalorder %s349, %s350
    %p362 = scmp.eq.s32.totalorder %s41, 1
    %p363 = por %p361, %p362
    %p365 = scmp.ne.s32.totalorder %s350, %s364
    %p366 = scmp.eq.s32.totalorder %s41, 0
    %p367 = por %p365, %p366
    %s369 = sadd.s32 %s368, 1
    %p372 = scmp.eq.s32.totalorder %s35, 1
    %p373 = scmp.ne.s32.totalorder %s368, %s370
    %p374 = scmp.eq.s32.totalorder %s35, 0
    %p375 = por %p373, %p374
    %p376 = scmp.ne.s32.totalorder %s368, %s370
    %p377 = scmp.eq.s32.totalorder %s40, 1
    %p378 = por %p376, %p377
    %p379 = scmp.ne.s32.totalorder %s370, %s371
    %p380 = scmp.eq.s32.totalorder %s40, 0
    %p381 = por %p379, %p380
    %p382 = scmp.ne.s32.totalorder %s370, %s371
    %p383 = scmp.eq.s32.totalorder %s41, 1
    %p384 = por %p382, %p383
    %p386 = scmp.ne.s32.totalorder %s371, %s385
    %p387 = scmp.eq.s32.totalorder %s41, 0
    %p388 = por %p386, %p387
    %s390 = sadd.s32 %s389, 1
    %p393 = scmp.eq.s32.totalorder %s35, 1
    %p394 = scmp.ne.s32.totalorder %s389, %s391
    %p395 = scmp.eq.s32.totalorder %s35, 0
    %p396 = por %p394, %p395
    %p397 = scmp.ne.s32.totalorder %s389, %s391
    %p398 = scmp.eq.s32.totalorder %s40, 1
    %p399 = por %p397, %p398
    %p400 = scmp.ne.s32.totalorder %s391, %s392
    %p401 = scmp.eq.s32.totalorder %s40, 0
    %p402 = por %p400, %p401
    %p403 = scmp.ne.s32.totalorder %s391, %s392
    %p404 = scmp.eq.s32.totalorder %s41, 1
    %p405 = por %p403, %p404
    %p407 = scmp.ne.s32.totalorder %s392, %s406
    %p408 = scmp.eq.s32.totalorder %s41, 0
    %p409 = por %p407, %p408
    %s411 = sadd.s32 %s410, 1
    %p414 = scmp.eq.s32.totalorder %s35, 1
    %p415 = scmp.ne.s32.totalorder %s410, %s412
    %p416 = scmp.eq.s32.totalorder %s35, 0
    %p417 = por %p415, %p416
    %p418 = scmp.ne.s32.totalorder %s410, %s412
    %p419 = scmp.eq.s32.totalorder %s40, 1
    %p420 = por %p418, %p419
    %p421 = scmp.ne.s32.totalorder %s412, %s413
    %p422 = scmp.eq.s32.totalorder %s40, 0
    %p423 = por %p421, %p422
    %p424 = scmp.ne.s32.totalorder %s412, %s413
    %p425 = scmp.eq.s32.totalorder %s41, 1
    %p426 = por %p424, %p425
    %p428 = scmp.ne.s32.totalorder %s413, %s427
    %p429 = scmp.eq.s32.totalorder %s41, 0
    %p430 = por %p428, %p429
    %s432 = sadd.s32 %s431, 1
    %p435 = scmp.eq.s32.totalorder %s35, 1
    %p436 = scmp.ne.s32.totalorder %s431, %s433
    %p437 = scmp.eq.s32.totalorder %s35, 0
    %p438 = por %p436, %p437
    %p439 = scmp.ne.s32.totalorder %s431, %s433
    %p440 = scmp.eq.s32.totalorder %s40, 1
    %p441 = por %p439, %p440
    %p442 = scmp.ne.s32.totalorder %s433, %s434
    %p443 = scmp.eq.s32.totalorder %s40, 0
    %p444 = por %p442, %p443
    %p445 = scmp.ne.s32.totalorder %s433, %s434
    %p446 = scmp.eq.s32.totalorder %s41, 1
    %p447 = por %p445, %p446
    %p449 = scmp.ne.s32.totalorder %s434, %s448
    %p450 = scmp.eq.s32.totalorder %s41, 0
    %p451 = por %p449, %p450
    %s453 = sadd.s32 %s452, 1
    %p456 = scmp.eq.s32.totalorder %s35, 1
    %p457 = scmp.ne.s32.totalorder %s452, %s454
    %p458 = scmp.eq.s32.totalorder %s35, 0
    %p459 = por %p457, %p458
    %p460 = scmp.ne.s32.totalorder %s452, %s454
    %p461 = scmp.eq.s32.totalorder %s40, 1
    %p462 = por %p460, %p461
    %p463 = scmp.ne.s32.totalorder %s454, %s455
    %p464 = scmp.eq.s32.totalorder %s40, 0
    %p465 = por %p463, %p464
    %p466 = scmp.ne.s32.totalorder %s454, %s455
    %p467 = scmp.eq.s32.totalorder %s41, 1
    %p468 = por %p466, %p467
    %p470 = scmp.ne.s32.totalorder %s455, %s469
    %p471 = scmp.eq.s32.totalorder %s41, 0
    %p472 = por %p470, %p471
    %s474 = sadd.s32 %s473, 1
    %p477 = scmp.eq.s32.totalorder %s35, 1
    %p478 = scmp.ne.s32.totalorder %s473, %s475
    %p479 = scmp.eq.s32.totalorder %s35, 0
    %p480 = por %p478, %p479
    %p481 = scmp.ne.s32.totalorder %s473, %s475
    %p482 = scmp.eq.s32.totalorder %s40, 1
    %p483 = por %p481, %p482
    %p484 = scmp.ne.s32.totalorder %s475, %s476
    %p485 = scmp.eq.s32.totalorder %s40, 0
    %p486 = por %p484, %p485
    %p487 = scmp.ne.s32.totalorder %s475, %s476
    %p488 = scmp.eq.s32.totalorder %s41, 1
    %p489 = por %p487, %p488
    %p491 = scmp.ne.s32.totalorder %s476, %s490
    %p492 = scmp.eq.s32.totalorder %s41, 0
    %p493 = por %p491, %p492
    %s495 = sadd.s32 %s494, 1
    %p498 = scmp.eq.s32.totalorder %s35, 1
    %p499 = scmp.ne.s32.totalorder %s494, %s496
    %p500 = scmp.eq.s32.totalorder %s35, 0
    %p501 = por %p499, %p500
    %p502 = scmp.ne.s32.totalorder %s494, %s496
    %p503 = scmp.eq.s32.totalorder %s40, 1
    %p504 = por %p502, %p503
    %p505 = scmp.ne.s32.totalorder %s496, %s497
    %p506 = scmp.eq.s32.totalorder %s40, 0
    %p507 = por %p505, %p506
    %p508 = scmp.ne.s32.totalorder %s496, %s497
    %p509 = scmp.eq.s32.totalorder %s41, 1
    %p510 = por %p508, %p509
    %p512 = scmp.ne.s32.totalorder %s497, %s511
    %p513 = scmp.eq.s32.totalorder %s41, 0
    %p514 = por %p512, %p513
    %s516 = sadd.s32 %s515, 1
    %p519 = scmp.eq.s32.totalorder %s35, 1
    %p520 = scmp.ne.s32.totalorder %s515, %s517
    %p521 = scmp.eq.s32.totalorder %s35, 0
    %p522 = por %p520, %p521
    %p523 = scmp.ne.s32.totalorder %s515, %s517
    %p524 = scmp.eq.s32.totalorder %s40, 1
    %p525 = por %p523, %p524
    %p526 = scmp.ne.s32.totalorder %s517, %s518
    %p527 = scmp.eq.s32.totalorder %s40, 0
    %p528 = por %p526, %p527
    %p529 = scmp.ne.s32.totalorder %s517, %s518
    %p530 = scmp.eq.s32.totalorder %s41, 1
    %p531 = por %p529, %p530
    %p533 = scmp.ne.s32.totalorder %s518, %s532
    %p534 = scmp.eq.s32.totalorder %s41, 0
    %p535 = por %p533, %p534
    %s537 = sadd.s32 %s536, 1
    %p540 = scmp.eq.s32.totalorder %s35, 1
    %p541 = scmp.ne.s32.totalorder %s536, %s538
    %p542 = scmp.eq.s32.totalorder %s35, 0
    %p543 = por %p541, %p542
    %p544 = scmp.ne.s32.totalorder %s536, %s538
    %p545 = scmp.eq.s32.totalorder %s40, 1
    %p546 = por %p544, %p545
    %p547 = scmp.ne.s32.totalorder %s538, %s539
    %p548 = scmp.eq.s32.totalorder %s40, 0
    %p549 = por %p547, %p548
    %p550 = scmp.ne.s32.totalorder %s538, %s539
    %p551 = scmp.eq.s32.totalorder %s41, 1
    %p552 = por %p550, %p551
    %p554 = scmp.ne.s32.totalorder %s539, %s553
    %p555 = scmp.eq.s32.totalorder %s41, 0
    %p556 = por %p554, %p555
    %s558 = sadd.s32 %s557, 1
    %p561 = scmp.eq.s32.totalorder %s35, 1
    %p562 = scmp.ne.s32.totalorder %s557, %s559
    %p563 = scmp.eq.s32.totalorder %s35, 0
    %p564 = por %p562, %p563
    %p565 = scmp.ne.s32.totalorder %s557, %s559
    %p566 = scmp.eq.s32.totalorder %s40, 1
    %p567 = por %p565, %p566
    %p568 = scmp.ne.s32.totalorder %s559, %s560
    %p569 = scmp.eq.s32.totalorder %s40, 0
    %p570 = por %p568, %p569
    %p571 = scmp.ne.s32.totalorder %s559, %s560
    %p572 = scmp.eq.s32.totalorder %s41, 1
    %p573 = por %p571, %p572
    %p575 = scmp.ne.s32.totalorder %s560, %s574
    %p576 = scmp.eq.s32.totalorder %s41, 0
    %p577 = por %p575, %p576
    %s579 = sadd.s32 %s578, 1
    %p582 = scmp.eq.s32.totalorder %s35, 1
    %p583 = scmp.ne.s32.totalorder %s578, %s580
    %p584 = scmp.eq.s32.totalorder %s35, 0
    %p585 = por %p583, %p584
    %p586 = scmp.ne.s32.totalorder %s578, %s580
    %p587 = scmp.eq.s32.totalorder %s40, 1
    %p588 = por %p586, %p587
    %p589 = scmp.ne.s32.totalorder %s580, %s581
    %p590 = scmp.eq.s32.totalorder %s40, 0
    %p591 = por %p589, %p590
    %p592 = scmp.ne.s32.totalorder %s580, %s581
    %p593 = scmp.eq.s32.totalorder %s41, 1
    %p594 = por %p592, %p593
    %p596 = scmp.ne.s32.totalorder %s581, %s595
    %p597 = scmp.eq.s32.totalorder %s41, 0
    %p598 = por %p596, %p597
    %s600 = sadd.s32 %s599, 1
    %p603 = scmp.eq.s32.totalorder %s35, 1
    %p604 = scmp.ne.s32.totalorder %s599, %s601
    %p605 = scmp.eq.s32.totalorder %s35, 0
    %p606 = por %p604, %p605
    %p607 = scmp.ne.s32.totalorder %s599, %s601
    %p608 = scmp.eq.s32.totalorder %s40, 1
    %p609 = por %p607, %p608
    %p610 = scmp.ne.s32.totalorder %s601, %s602
    %p611 = scmp.eq.s32.totalorder %s40, 0
    %p612 = por %p610, %p611
    %p613 = scmp.ne.s32.totalorder %s601, %s602
    %p614 = scmp.eq.s32.totalorder %s41, 1
    %p615 = por %p613, %p614
    %p617 = scmp.ne.s32.totalorder %s602, %s616
    %p618 = scmp.eq.s32.totalorder %s41, 0
    %p619 = por %p617, %p618
    %s620 = ssub.s32 %s35, %s42
    %p621 = scmp.eq.s32.totalorder %s620, 0
    %s623 = sadd.s32 %s622, 1
    %s624 = scalar_select %p621, %s622, %s623
    %p627 = pneg %p621
    %p628 = scmp.eq.s32.totalorder %s35, 1
    %p629 = por %p627, %p628
    %p630 = scmp.ne.s32.totalorder %s622, %s625
    %p631 = scmp.eq.s32.totalorder %s35, 0
    %p632 = por %p630, %p631
    %p633 = scmp.ne.s32.totalorder %s622, %s625
    %p634 = scmp.eq.s32.totalorder %s40, 1
    %p635 = por %p633, %p634
    %p636 = scmp.ne.s32.totalorder %s625, %s626
    %p637 = scmp.eq.s32.totalorder %s40, 0
    %p638 = por %p636, %p637
    %p639 = scmp.ne.s32.totalorder %s625, %s626
    %p640 = scmp.eq.s32.totalorder %s41, 1
    %p641 = por %p639, %p640
    %p643 = scmp.ne.s32.totalorder %s626, %s642
    %p644 = scmp.eq.s32.totalorder %s41, 0
    %p645 = por %p643, %p644
    %p646 = scmp.le.s32.totalorder 1, %s35
    %p647 = scmp.lt.s32.totalorder %s35, 3
    %p648 = pnand %p646, %p647
    %p649 = pneg %p648
    // Predicated region
    $region9: #{double_critic_forward.1} parent=5 // pred_check
      _
    $region10: #{double_critic_forward.1} parent=5 // pred_check_branch
      %651 = sbr.rel (%p648) target = $region12
    $region11: #{double_critic_forward.1} parent=5 // pred_region
      %s652 = ssub.s32 %s35, 1
      // Predicated region
      $region13: #{double_critic_forward.1} parent=11 // pred_check
        %p653 = pneg %p108
      $region14: #{double_critic_forward.1} parent=11 // pred_check_branch
        %655 = sbr.rel (%p653) target = $region16
      $region15: #{double_critic_forward.1} parent=11 // pred_region
        _
      $region16: #{double_critic_forward.1} parent=11 // pred_fallthru
        _
      // Predicated region
      $region17: #{double_critic_forward.1} parent=11 // pred_check
        %p656 = pneg %p129
      $region18: #{double_critic_forward.1} parent=11 // pred_check_branch
        %658 = sbr.rel (%p656) target = $region20
      $region19: #{double_critic_forward.1} parent=11 // pred_region
        _
      $region20: #{double_critic_forward.1} parent=11 // pred_fallthru
        _
      // Predicated region
      $region21: #{double_critic_forward.1} parent=11 // pred_check
        %p659 = pneg %p150
      $region22: #{double_critic_forward.1} parent=11 // pred_check_branch
        %661 = sbr.rel (%p659) target = $region24
      $region23: #{double_critic_forward.1} parent=11 // pred_region
        _
      $region24: #{double_critic_forward.1} parent=11 // pred_fallthru
        _
      // Predicated region
      $region25: #{double_critic_forward.1} parent=11 // pred_check
        %p662 = pneg %p171
      $region26: #{double_critic_forward.1} parent=11 // pred_check_branch
        %664 = sbr.rel (%p662) target = $region28
      $region27: #{double_critic_forward.1} parent=11 // pred_region
        _
      $region28: #{double_critic_forward.1} parent=11 // pred_fallthru
        _
      // Predicated region
      $region29: #{double_critic_forward.1} parent=11 // pred_check
        %p665 = pneg %p192
      $region30: #{double_critic_forward.1} parent=11 // pred_check_branch
        %667 = sbr.rel (%p665) target = $region32
      $region31: #{double_critic_forward.1} parent=11 // pred_region
        _
      $region32: #{double_critic_forward.1} parent=11 // pred_fallthru
        _
      // Predicated region
      $region33: #{double_critic_forward.1} parent=11 // pred_check
        %p668 = pneg %p213
      $region34: #{double_critic_forward.1} parent=11 // pred_check_branch
        %670 = sbr.rel (%p668) target = $region36
      $region35: #{double_critic_forward.1} parent=11 // pred_region
        _
      $region36: #{double_critic_forward.1} parent=11 // pred_fallthru
        _
      // Predicated region
      $region37: #{double_critic_forward.1} parent=11 // pred_check
        %p671 = pneg %p234
      $region38: #{double_critic_forward.1} parent=11 // pred_check_branch
        %673 = sbr.rel (%p671) target = $region40
      $region39: #{double_critic_forward.1} parent=11 // pred_region
        _
      $region40: #{double_critic_forward.1} parent=11 // pred_fallthru
        _
      // Predicated region
      $region41: #{double_critic_forward.1} parent=11 // pred_check
        %p674 = pneg %p255
      $region42: #{double_critic_forward.1} parent=11 // pred_check_branch
        %676 = sbr.rel (%p674) target = $region44
      $region43: #{double_critic_forward.1} parent=11 // pred_region
        _
      $region44: #{double_critic_forward.1} parent=11 // pred_fallthru
        _
      // Predicated region
      $region45: #{double_critic_forward.1} parent=11 // pred_check
        %p677 = pneg %p276
      $region46: #{double_critic_forward.1} parent=11 // pred_check_branch
        %679 = sbr.rel (%p677) target = $region48
      $region47: #{double_critic_forward.1} parent=11 // pred_region
        _
      $region48: #{double_critic_forward.1} parent=11 // pred_fallthru
        _
      // Predicated region
      $region49: #{double_critic_forward.1} parent=11 // pred_check
        %p680 = pneg %p297
      $region50: #{double_critic_forward.1} parent=11 // pred_check_branch
        %682 = sbr.rel (%p680) target = $region52
      $region51: #{double_critic_forward.1} parent=11 // pred_region
        _
      $region52: #{double_critic_forward.1} parent=11 // pred_fallthru
        _
      // Predicated region
      $region53: #{double_critic_forward.1} parent=11 // pred_check
        %p683 = pneg %p318
      $region54: #{double_critic_forward.1} parent=11 // pred_check_branch
        %685 = sbr.rel (%p683) target = $region56
      $region55: #{double_critic_forward.1} parent=11 // pred_region
        _
      $region56: #{double_critic_forward.1} parent=11 // pred_fallthru
        _
      // Predicated region
      $region57: #{double_critic_forward.1} parent=11 // pred_check
        %p686 = pneg %p339
      $region58: #{double_critic_forward.1} parent=11 // pred_check_branch
        %688 = sbr.rel (%p686) target = $region60
      $region59: #{double_critic_forward.1} parent=11 // pred_region
        _
      $region60: #{double_critic_forward.1} parent=11 // pred_fallthru
        _
      // Predicated region
      $region61: #{double_critic_forward.1} parent=11 // pred_check
        %p689 = pneg %p360
      $region62: #{double_critic_forward.1} parent=11 // pred_check_branch
        %691 = sbr.rel (%p689) target = $region64
      $region63: #{double_critic_forward.1} parent=11 // pred_region
        _
      $region64: #{double_critic_forward.1} parent=11 // pred_fallthru
        _
      // Predicated region
      $region65: #{double_critic_forward.1} parent=11 // pred_check
        %p692 = pneg %p381
      $region66: #{double_critic_forward.1} parent=11 // pred_check_branch
        %694 = sbr.rel (%p692) target = $region68
      $region67: #{double_critic_forward.1} parent=11 // pred_region
        _
      $region68: #{double_critic_forward.1} parent=11 // pred_fallthru
        _
      // Predicated region
      $region69: #{double_critic_forward.1} parent=11 // pred_check
        %p695 = pneg %p402
      $region70: #{double_critic_forward.1} parent=11 // pred_check_branch
        %697 = sbr.rel (%p695) target = $region72
      $region71: #{double_critic_forward.1} parent=11 // pred_region
        _
      $region72: #{double_critic_forward.1} parent=11 // pred_fallthru
        _
      // Predicated region
      $region73: #{double_critic_forward.1} parent=11 // pred_check
        %p698 = pneg %p423
      $region74: #{double_critic_forward.1} parent=11 // pred_check_branch
        %700 = sbr.rel (%p698) target = $region76
      $region75: #{double_critic_forward.1} parent=11 // pred_region
        _
      $region76: #{double_critic_forward.1} parent=11 // pred_fallthru
        _
      // Predicated region
      $region77: #{double_critic_forward.1} parent=11 // pred_check
        %p701 = pneg %p444
      $region78: #{double_critic_forward.1} parent=11 // pred_check_branch
        %703 = sbr.rel (%p701) target = $region80
      $region79: #{double_critic_forward.1} parent=11 // pred_region
        _
      $region80: #{double_critic_forward.1} parent=11 // pred_fallthru
        _
      // Predicated region
      $region81: #{double_critic_forward.1} parent=11 // pred_check
        %p704 = pneg %p465
      $region82: #{double_critic_forward.1} parent=11 // pred_check_branch
        %706 = sbr.rel (%p704) target = $region84
      $region83: #{double_critic_forward.1} parent=11 // pred_region
        _
      $region84: #{double_critic_forward.1} parent=11 // pred_fallthru
        _
      // Predicated region
      $region85: #{double_critic_forward.1} parent=11 // pred_check
        %p707 = pneg %p486
      $region86: #{double_critic_forward.1} parent=11 // pred_check_branch
        %709 = sbr.rel (%p707) target = $region88
      $region87: #{double_critic_forward.1} parent=11 // pred_region
        _
      $region88: #{double_critic_forward.1} parent=11 // pred_fallthru
        _
      // Predicated region
      $region89: #{double_critic_forward.1} parent=11 // pred_check
        %p710 = pneg %p507
      $region90: #{double_critic_forward.1} parent=11 // pred_check_branch
        %712 = sbr.rel (%p710) target = $region92
      $region91: #{double_critic_forward.1} parent=11 // pred_region
        _
      $region92: #{double_critic_forward.1} parent=11 // pred_fallthru
        _
      // Predicated region
      $region93: #{double_critic_forward.1} parent=11 // pred_check
        %p713 = pneg %p528
      $region94: #{double_critic_forward.1} parent=11 // pred_check_branch
        %715 = sbr.rel (%p713) target = $region96
      $region95: #{double_critic_forward.1} parent=11 // pred_region
        _
      $region96: #{double_critic_forward.1} parent=11 // pred_fallthru
        _
      // Predicated region
      $region97: #{double_critic_forward.1} parent=11 // pred_check
        %p716 = pneg %p549
      $region98: #{double_critic_forward.1} parent=11 // pred_check_branch
        %718 = sbr.rel (%p716) target = $region100
      $region99: #{double_critic_forward.1} parent=11 // pred_region
        _
      $region100: #{double_critic_forward.1} parent=11 // pred_fallthru
        _
      // Predicated region
      $region101: #{double_critic_forward.1} parent=11 // pred_check
        %p719 = pneg %p570
      $region102: #{double_critic_forward.1} parent=11 // pred_check_branch
        %721 = sbr.rel (%p719) target = $region104
      $region103: #{double_critic_forward.1} parent=11 // pred_region
        _
      $region104: #{double_critic_forward.1} parent=11 // pred_fallthru
        _
      // Predicated region
      $region105: #{double_critic_forward.1} parent=11 // pred_check
        %p722 = pneg %p591
      $region106: #{double_critic_forward.1} parent=11 // pred_check_branch
        %724 = sbr.rel (%p722) target = $region108
      $region107: #{double_critic_forward.1} parent=11 // pred_region
        _
      $region108: #{double_critic_forward.1} parent=11 // pred_fallthru
        _
      // Predicated region
      $region109: #{double_critic_forward.1} parent=11 // pred_check
        %p725 = pneg %p612
      $region110: #{double_critic_forward.1} parent=11 // pred_check_branch
        %727 = sbr.rel (%p725) target = $region112
      $region111: #{double_critic_forward.1} parent=11 // pred_region
        _
      $region112: #{double_critic_forward.1} parent=11 // pred_fallthru
        _
    $region12: #{double_critic_forward.1} parent=5 // pred_fallthru
      _
    %p728 = scmp.lt.s32.totalorder %s35, 2
    // Predicated region
    $region113: #{double_critic_forward.1} parent=5 // pred_check
      %p729 = pneg %p728
    $region114: #{double_critic_forward.1} parent=5 // pred_check_branch
      %731 = sbr.rel (%p729) target = $region116
    $region115: #{double_critic_forward.1} parent=5 // pred_region
      // Predicated region
      $region117: #{double_critic_forward.1} parent=115 // pred_check
        %p732 = pneg %p55
      $region118: #{double_critic_forward.1} parent=115 // pred_check_branch
        %734 = sbr.rel (%p732) target = $region120
      $region119: #{double_critic_forward.1} parent=115 // pred_region
        %p735 = scmp.lt.s32.totalorder %s35, 1
        %s736 = scalar_select %p735, %s35, 1
        %s737 = smul.addr %s736, 2
        %s738 = smul.addr %s737, 8
        %s739 = scalar_lea.vmem %s0, %s738
      $region120: #{double_critic_forward.1} parent=115 // pred_fallthru
        _
      // Predicated region
      $region121: #{double_critic_forward.1} parent=115 // pred_check
        %p740 = pneg %p81
      $region122: #{double_critic_forward.1} parent=115 // pred_check_branch
        %742 = sbr.rel (%p740) target = $region124
      $region123: #{double_critic_forward.1} parent=115 // pred_region
        %p743 = scmp.lt.s32.totalorder %s35, 1
        %s744 = scalar_select %p743, %s35, 1
        %s745 = scalar_lea.vmem %s1, %s744
      $region124: #{double_critic_forward.1} parent=115 // pred_fallthru
        _
    $region116: #{double_critic_forward.1} parent=5 // pred_fallthru
      _
    %p746 = scmp.le.s32.totalorder 1, %s35
    %p747 = scmp.lt.s32.totalorder %s35, 3
    %p748 = pnand %p746, %p747
    %p749 = pneg %p748
    // Predicated region
    $region125: #{double_critic_forward.1} parent=5 // pred_check
      _
    $region126: #{double_critic_forward.1} parent=5 // pred_check_branch
      %751 = sbr.rel (%p748) target = $region128
    $region127: #{double_critic_forward.1} parent=5 // pred_region
      %s752 = ssub.s32 %s35, 1
      %p753 = scmp.lt.s32.totalorder %s40, 1
      %s754 = scalar_select %p753, %s40, 1
      %s755 = smul.addr %s754, 2
      %s756 = smul.addr %s755, 8
      %s757 = scalar_lea.vmem %s0, %s756
      %p758 = pneg %p61
      %p759 = pneg %p58
      %p760 = scmp.lt.s32.totalorder %s40, 1
      %s761 = scalar_select %p760, %s40, 1
      %s762 = scalar_lea.vmem %s1, %s761
      %p763 = pneg %p87
      %p764 = pneg %p84
      %p765 = pneg %p108
      %p766 = pneg %p105
      %p767 = pneg %p129
      %p768 = pneg %p126
      %p769 = pneg %p150
      %p770 = pneg %p147
      %p771 = pneg %p171
      %p772 = pneg %p168
      %p773 = pneg %p192
      %p774 = pneg %p189
      %p775 = pneg %p213
      %p776 = pneg %p210
      %p777 = pneg %p234
      %p778 = pneg %p231
      %p779 = pneg %p255
      %p780 = pneg %p252
      %p781 = pneg %p276
      %p782 = pneg %p273
      %p783 = pneg %p297
      %p784 = pneg %p294
      %p785 = pneg %p318
      %p786 = pneg %p315
      %p787 = pneg %p339
      %p788 = pneg %p336
      %p789 = pneg %p360
      %p790 = pneg %p357
      %p791 = pneg %p381
      %p792 = pneg %p378
      %p793 = pneg %p402
      %p794 = pneg %p399
      %p795 = pneg %p423
      %p796 = pneg %p420
      %p797 = pneg %p444
      %p798 = pneg %p441
      %p799 = pneg %p465
      %p800 = pneg %p462
      %p801 = pneg %p486
      %p802 = pneg %p483
      %p803 = pneg %p507
      %p804 = pneg %p504
      %p805 = pneg %p528
      %p806 = pneg %p525
      %p807 = pneg %p549
      %p808 = pneg %p546
      %p809 = pneg %p570
      %p810 = pneg %p567
      %p811 = pneg %p591
      %p812 = pneg %p588
      %p813 = pneg %p612
      %p814 = pneg %p609
      %p815 = pneg %p638
      %p816 = pneg %p635
      %p817 = scmp.lt.s32.totalorder %s40, 1
      %s818 = scalar_select %p817, %s40, 1
      %s819 = scalar_lea.vmem %s27, %s818
      %p820 = scmp.lt.s32.totalorder %s40, 1
      %s821 = scalar_select %p820, %s40, 1
      %s822 = smul.addr %s821, 2
      %s823 = smul.addr %s822, 8
      %s824 = scalar_lea.vmem %s0, %s823
      %p825 = scmp.lt.s32.totalorder %s40, 1
      %s826 = scalar_select %p825, %s40, 1
      %s827 = scalar_lea.vmem %s1, %s826
      %p828 = scmp.lt.s32.totalorder %s40, 1
      %s829 = scalar_select %p828, %s40, 1
      %s830 = scalar_lea.vmem %s27, %s829
      %v831 = vld [vmem:[%s2] sm:$0xff]
      %v832 = vld [vmem:[%s2 + $0x8] sm:$0xff]
      %v833 = vld [vmem:[%s2 + $0x10] sm:$0xff]
      %v834 = vld [vmem:[%s2 + $0x18] sm:$0xff]
      %v835 = vld [vmem:[%s3] sm:$0xff]
      %v836 = vld [vmem:[%s3 + $0x8] sm:$0xff]
      %v837 = vld [vmem:[%s4] sm:$0xff]
      %v838 = vld [vmem:[%s4 + $0x8] sm:$0xff]
      %v839 = vld [vmem:[%s4 + $0x10] sm:$0xff]
      %v840 = vld [vmem:[%s4 + $0x18] sm:$0xff]
      %v841 = vld [vmem:[%s5] sm:$0xff]
      %v842 = vld [vmem:[%s5 + $0x8] sm:$0xff]
      %v843 = vld [vmem:[%s5 + $0x10] sm:$0xff]
      %v844 = vld [vmem:[%s5 + $0x18] sm:$0xff]
      %v845 = vld [vmem:[%s6] sm:$0xff]
      %v846 = vld [vmem:[%s6 + $0x8] sm:$0xff]
      %v847 = vld [vmem:[%s6 + $0x10] sm:$0xff]
      %v848 = vld [vmem:[%s6 + $0x18] sm:$0xff]
      %v849 = vld [vmem:[%s6 + $0x20] sm:$0xff]
      %v850 = vld [vmem:[%s6 + $0x28] sm:$0xff]
      %v851 = vld [vmem:[%s6 + $0x30] sm:$0xff]
      %v852 = vld [vmem:[%s6 + $0x38] sm:$0xff]
      %v853 = vld [vmem:[%s6 + $0x40] sm:$0xff]
      %v854 = vld [vmem:[%s6 + $0x48] sm:$0xff]
      %v855 = vld [vmem:[%s6 + $0x50] sm:$0xff]
      %v856 = vld [vmem:[%s6 + $0x58] sm:$0xff]
      %v857 = vld [vmem:[%s6 + $0x60] sm:$0xff]
      %v858 = vld [vmem:[%s6 + $0x68] sm:$0xff]
      %v859 = vld [vmem:[%s6 + $0x70] sm:$0xff]
      %v860 = vld [vmem:[%s6 + $0x78] sm:$0xff]
      %v861 = vld [vmem:[%s6 + $0x80] sm:$0xff]
      %v862 = vld [vmem:[%s6 + $0x88] sm:$0xff]
      %v863 = vld [vmem:[%s6 + $0x90] sm:$0xff]
      %v864 = vld [vmem:[%s6 + $0x98] sm:$0xff]
      %v865 = vld [vmem:[%s6 + $0xa0] sm:$0xff]
      %v866 = vld [vmem:[%s6 + $0xa8] sm:$0xff]
      %v867 = vld [vmem:[%s6 + $0xb0] sm:$0xff]
      %v868 = vld [vmem:[%s6 + $0xb8] sm:$0xff]
      %v869 = vld [vmem:[%s6 + $0xc0] sm:$0xff]
      %v870 = vld [vmem:[%s6 + $0xc8] sm:$0xff]
      %v871 = vld [vmem:[%s6 + $0xd0] sm:$0xff]
      %v872 = vld [vmem:[%s6 + $0xd8] sm:$0xff]
      %v873 = vld [vmem:[%s6 + $0xe0] sm:$0xff]
      %v874 = vld [vmem:[%s6 + $0xe8] sm:$0xff]
      %v875 = vld [vmem:[%s6 + $0xf0] sm:$0xff]
      %v876 = vld [vmem:[%s6 + $0xf8] sm:$0xff]
      %v877 = vld [vmem:[%s7] sm:$0xff]
      %v878 = vld [vmem:[%s7 + $0x8] sm:$0xff]
      %v879 = vld [vmem:[%s8] sm:$0xff]
      %v880 = vld [vmem:[%s9] sm:$0xf]
      %v881 = vld [vmem:[%s10] sm:$0xf]
      %v882 = vld [vmem:[%s21] sm:$0x1]
      %v883 = vld [vmem:[%s22] sm:$0x1]
      %v884 = vld [vmem:[%s23] sm:$0xff]
      %v885 = vld [vmem:[%s24] sm:$0x1]
      %v886 = vld [vmem:[%s25] sm:$0x1]
      %v887 = vld [vmem:[#allocation2] sm:$0x1]
      %v888 = vld [vmem:[%s11] sm:$0xff]
      %v889 = vld [vmem:[%s11 + $0x8] sm:$0xff]
      %v890 = vld [vmem:[%s11 + $0x10] sm:$0xff]
      %v891 = vld [vmem:[%s11 + $0x18] sm:$0xff]
      %v892 = vld [vmem:[%s12] sm:$0x1]
      %v893 = vld [vmem:[%s13] sm:$0xff]
      %v894 = vld [vmem:[%s13 + $0x8] sm:$0xff]
      %v895 = vld [vmem:[%s13 + $0x10] sm:$0xff]
      %v896 = vld [vmem:[%s13 + $0x18] sm:$0xff]
      %v897 = vld [vmem:[%s14] sm:$0x1]
      %v898 = vld [vmem:[%s15] sm:$0xff]
      %v899 = vld [vmem:[%s15 + $0x8] sm:$0xff]
      %v900 = vld [vmem:[%s15 + $0x10] sm:$0xff]
      %v901 = vld [vmem:[%s15 + $0x18] sm:$0xff]
      %v902 = vld [vmem:[%s16] sm:$0x1]
      %v903 = vld [vmem:[%s17] sm:$0xff]
      %v904 = vld [vmem:[%s17 + $0x8] sm:$0xff]
      %v905 = vld [vmem:[%s17 + $0x10] sm:$0xff]
      %v906 = vld [vmem:[%s17 + $0x18] sm:$0xff]
      %v907 = vld [vmem:[%s18] sm:$0x1]
      %v908 = vld [vmem:[%s19] sm:$0xff]
      %v909 = vld [vmem:[%s19 + $0x8] sm:$0xff]
      %v910 = vld [vmem:[%s19 + $0x10] sm:$0xff]
      %v911 = vld [vmem:[%s19 + $0x18] sm:$0xff]
      %v912 = vld [vmem:[%s20] sm:$0xff]
      %v913 = vld [vmem:[%s20 + $0x8] sm:$0xff]
      %v914 = vld [vmem:[%s20 + $0x10] sm:$0xff]
      %v915 = vld [vmem:[%s20 + $0x18] sm:$0xff]
      %v916 = vld [vmem:[%s20 + $0x20] sm:$0xff]
      %v917 = vld [vmem:[%s20 + $0x28] sm:$0xff]
      %v918 = vld [vmem:[%s20 + $0x30] sm:$0xff]
      %v919 = vld [vmem:[%s20 + $0x38] sm:$0xff]
      %v920 = vlaneseq
      %v921 = vand.u32 %v920, 127
      %v922 = vlaneseq
      %v923 = vshrl.u32 %v922, 7
      %v924 = vadd.s32 %v923, 8
      %v925 = vld [vmem:[%s824] sm:$0xff]
      %v926 = vld [vmem:[%s824 + $0x8] sm:$0xff]
      %vm927 = vcmask 130048
      %v929 = vsel %vm927, %v831, 0
      %v932 = vsel %vm927, %v832, 0
      %v935 = vsel %vm927, %v833, 0
      %v938 = vsel %vm927, %v834, 0
      %940 = vmatprep.subr.mxu0 0.0
      %941 = vmatpush1.msra.mxu0 0.0
      %942 = vmatprep.subr.mxu0 0.0
      %943 = vmatpush1.msra.mxu0 0.0
      %944 = vmatprep.subr.mxu0 0.0
      %945 = vmatpush1.msra.mxu0 0.0
      %946 = vmatprep.subr.mxu0 0.0
      %947 = vmatpush1.msra.mxu0 0.0
      %948 = vmatprep.subr.mxu0 0.0
      %949 = vmatpush1.msra.mxu0 0.0
      %950 = vmatprep.subr.mxu0 0.0
      %951 = vmatpush1.msra.mxu0 0.0
      %952 = vmatprep.subr.mxu0 0.0
      %953 = vmatpush1.msra.mxu0 0.0
      %954 = vmatprep.subr.mxu0 0.0
      %955 = vmatpush1.msra.mxu0 0.0
      %956 = vmatprep.subr.mxu0 0.0
      %957 = vmatpush1.msra.mxu0 0.0
      %958 = vmatprep.subr.mxu0 0.0
      %959 = vmatpush1.msra.mxu0 0.0
      %960 = vmatprep.subr.mxu0 0.0
      %961 = vmatpush1.msra.mxu0 0.0
      %962 = vmatprep.subr.mxu0 0.0
      %963 = vmatpush1.msra.mxu0 0.0
      %964 = vmatprep.subr.mxu0 0.0
      %965 = vmatpush1.msra.mxu0 0.0
      %966 = vmatprep.subr.mxu0 0.0
      %967 = vmatpush1.msra.mxu0 0.0
      %968 = vmatprep.subr.mxu0 0.0
      %969 = vmatpush1.msra.mxu0 %v926
      %970 = vmatprep.subr.mxu0 0.0
      %971 = vmatpush1.msra.mxu0 %v925
      %972 = vmatprep.subr.mxu0 0.0
      %973 = vmatpush2.msra.mxu0 0.0
      %974 = vmatprep.subr.mxu0 0.0
      %975 = vmatpush2.msra.mxu0 0.0
      %976 = vmatprep.subr.mxu0 0.0
      %977 = vmatpush2.msra.mxu0 0.0
      %978 = vmatprep.subr.mxu0 0.0
      %979 = vmatpush2.msra.mxu0 0.0
      %980 = vmatprep.subr.mxu0 0.0
      %981 = vmatpush2.msra.mxu0 0.0
      %982 = vmatprep.subr.mxu0 0.0
      %983 = vmatpush2.msra.mxu0 0.0
      %984 = vmatprep.subr.mxu0 0.0
      %985 = vmatpush2.msra.mxu0 0.0
      %986 = vmatprep.subr.mxu0 0.0
      %987 = vmatpush2.msra.mxu0 0.0
      %988 = vmatprep.subr.mxu0 0.0
      %989 = vmatpush2.msra.mxu0 0.0
      %990 = vmatprep.subr.mxu0 0.0
      %991 = vmatpush2.msra.mxu0 0.0
      %992 = vmatprep.subr.mxu0 0.0
      %993 = vmatpush2.msra.mxu0 0.0
      %994 = vmatprep.subr.mxu0 0.0
      %995 = vmatpush2.msra.mxu0 0.0
      %996 = vmatprep.subr.mxu0 0.0
      %997 = vmatpush2.msra.mxu0 0.0
      %998 = vmatprep.subr.mxu0 0.0
      %999 = vmatpush2.msra.mxu0 0.0
      %1000 = vmatprep.subr.mxu0 0.0
      %1001 = vmatpush2.msra.mxu0 0.0
      %1002 = vmatprep.subr.mxu0 0.0
      %1003 = vmatpush2.msra.mxu0 0.0
      %1004 = vmatprep.mubr.f32.mxu0 0.0
      %1005 = vmatmul.mubr.f32.gmra.mxu0 %v929
      %v1006 = vpop.f32.mrf.mxu0
      %v1007 = vadd.f32 0.0, %v1006
      %v1008 = vpop.f32.mrf.mxu0
      %1009 = vmatprep.mubr.f32.mxu0 0.0
      %1010 = vmatmul.mubr.f32.gmra.mxu0 %v932
      %v1011 = vpop.f32.mrf.mxu0
      %v1012 = vadd.f32 0.0, %v1011
      %v1013 = vpop.f32.mrf.mxu0
      %1014 = vmatprep.mubr.f32.mxu0 0.0
      %1015 = vmatmul.mubr.f32.gmra.mxu0 %v935
      %v1016 = vpop.f32.mrf.mxu0
      %v1017 = vadd.f32 0.0, %v1016
      %v1018 = vpop.f32.mrf.mxu0
      %1019 = vmatprep.mubr.f32.mxu0 0.0
      %1020 = vmatmul.mubr.f32.gmra.mxu0 %v938
      %v1021 = vpop.f32.mrf.mxu0
      %v1022 = vadd.f32 0.0, %v1021
      %v1023 = vpop.f32.mrf.mxu0
      %1024 = vdwg.mxu0
      %vm1025 = vcmask 31744
      %v1027 = vsel %vm1025, %v1007, 0
      %v1030 = vsel %vm1025, %v1012, 0
      %vm1032 = vcmask 1043456
      %v1034 = vsel %vm1032, %v880, 0
      %1036 = vmatprep.subr.mxu0 0.0
      %1037 = vmatpush1.msra.mxu0 0.0
      %1038 = vmatprep.subr.mxu0 0.0
      %1039 = vmatpush1.msra.mxu0 0.0
      %1040 = vmatprep.subr.mxu0 0.0
      %1041 = vmatpush1.msra.mxu0 0.0
      %1042 = vmatprep.subr.mxu0 0.0
      %1043 = vmatpush1.msra.mxu0 0.0
      %1044 = vmatprep.subr.mxu0 0.0
      %1045 = vmatpush1.msra.mxu0 0.0
      %1046 = vmatprep.subr.mxu0 0.0
      %1047 = vmatpush1.msra.mxu0 0.0
      %1048 = vmatprep.subr.mxu0 0.0
      %1049 = vmatpush1.msra.mxu0 0.0
      %1050 = vmatprep.subr.mxu0 0.0
      %1051 = vmatpush1.msra.mxu0 0.0
      %1052 = vmatprep.subr.mxu0 0.0
      %1053 = vmatpush1.msra.mxu0 0.0
      %1054 = vmatprep.subr.mxu0 0.0
      %1055 = vmatpush1.msra.mxu0 0.0
      %1056 = vmatprep.subr.mxu0 0.0
      %1057 = vmatpush1.msra.mxu0 0.0
      %1058 = vmatprep.subr.mxu0 0.0
      %1059 = vmatpush1.msra.mxu0 0.0
      %1060 = vmatprep.subr.mxu0 0.0
      %1061 = vmatpush1.msra.mxu0 0.0
      %1062 = vmatprep.subr.mxu0 0.0
      %1063 = vmatpush1.msra.mxu0 0.0
      %1064 = vmatprep.subr.mxu0 0.0
      %1065 = vmatpush1.msra.mxu0 0.0
      %1066 = vmatprep.subr.mxu0 0.0
      %1067 = vmatpush1.msra.mxu0 %v1034
      %1068 = vmatprep.subr.mxu0 0.0
      %1069 = vmatpush2.msra.mxu0 0.0
      %1070 = vmatprep.subr.mxu0 0.0
      %1071 = vmatpush2.msra.mxu0 0.0
      %1072 = vmatprep.subr.mxu0 0.0
      %1073 = vmatpush2.msra.mxu0 0.0
      %1074 = vmatprep.subr.mxu0 0.0
      %1075 = vmatpush2.msra.mxu0 0.0
      %1076 = vmatprep.subr.mxu0 0.0
      %1077 = vmatpush2.msra.mxu0 0.0
      %1078 = vmatprep.subr.mxu0 0.0
      %1079 = vmatpush2.msra.mxu0 0.0
      %1080 = vmatprep.subr.mxu0 0.0
      %1081 = vmatpush2.msra.mxu0 0.0
      %1082 = vmatprep.subr.mxu0 0.0
      %1083 = vmatpush2.msra.mxu0 0.0
      %1084 = vmatprep.subr.mxu0 0.0
      %1085 = vmatpush2.msra.mxu0 0.0
      %1086 = vmatprep.subr.mxu0 0.0
      %1087 = vmatpush2.msra.mxu0 0.0
      %1088 = vmatprep.subr.mxu0 0.0
      %1089 = vmatpush2.msra.mxu0 0.0
      %1090 = vmatprep.subr.mxu0 0.0
      %1091 = vmatpush2.msra.mxu0 0.0
      %1092 = vmatprep.subr.mxu0 0.0
      %1093 = vmatpush2.msra.mxu0 0.0
      %1094 = vmatprep.subr.mxu0 0.0
      %1095 = vmatpush2.msra.mxu0 0.0
      %1096 = vmatprep.subr.mxu0 0.0
      %1097 = vmatpush2.msra.mxu0 0.0
      %1098 = vmatprep.subr.mxu0 0.0
      %1099 = vmatpush2.msra.mxu0 0.0
      %1100 = vmatprep.mubr.f32.mxu0 0.0
      %1101 = vmatmul.mubr.f32.gmra.mxu0 %v1027
      %v1102 = vpop.f32.mrf.mxu0
      %v1103 = vadd.f32 0.0, %v1102
      %v1104 = vpop.f32.mrf.mxu0
      %1105 = vmatprep.mubr.f32.mxu0 0.0
      %1106 = vmatmul.mubr.f32.gmra.mxu0 %v1030
      %v1107 = vpop.f32.mrf.mxu0
      %v1108 = vadd.f32 0.0, %v1107
      %v1109 = vpop.f32.mrf.mxu0
      %1110 = vdwg.mxu0
      %vm1111 = vcmask 64512
      %v1113 = vsel %vm1111, %v925, 0
      %v1116 = vsel %vm1111, %v926, 0
      %1118 = vmatprep.subr.mxu0 0.0
      %1119 = vmatpush1.msra.mxu0 0.0
      %1120 = vmatprep.subr.mxu0 0.0
      %1121 = vmatpush1.msra.mxu0 0.0
      %1122 = vmatprep.subr.mxu0 0.0
      %1123 = vmatpush1.msra.mxu0 0.0
      %1124 = vmatprep.subr.mxu0 0.0
      %1125 = vmatpush1.msra.mxu0 0.0
      %1126 = vmatprep.subr.mxu0 0.0
      %1127 = vmatpush1.msra.mxu0 0.0
      %1128 = vmatprep.subr.mxu0 0.0
      %1129 = vmatpush1.msra.mxu0 0.0
      %1130 = vmatprep.subr.mxu0 0.0
      %1131 = vmatpush1.msra.mxu0 0.0
      %1132 = vmatprep.subr.mxu0 0.0
      %1133 = vmatpush1.msra.mxu0 0.0
      %1134 = vmatprep.subr.mxu0 0.0
      %1135 = vmatpush1.msra.mxu0 0.0
      %1136 = vmatprep.subr.mxu0 0.0
      %1137 = vmatpush1.msra.mxu0 0.0
      %1138 = vmatprep.subr.mxu0 0.0
      %1139 = vmatpush1.msra.mxu0 0.0
      %1140 = vmatprep.subr.mxu0 0.0
      %1141 = vmatpush1.msra.mxu0 0.0
      %1142 = vmatprep.subr.mxu0 0.0
      %1143 = vmatpush1.msra.mxu0 0.0
      %1144 = vmatprep.subr.mxu0 0.0
      %1145 = vmatpush1.msra.mxu0 0.0
      %1146 = vmatprep.subr.mxu0 0.0
      %1147 = vmatpush1.msra.mxu0 0.0
      %1148 = vmatprep.subr.mxu0 0.0
      %1149 = vmatpush1.msra.mxu0 %v879
      %1150 = vmatprep.subr.mxu0 0.0
      %1151 = vmatpush2.msra.mxu0 0.0
      %1152 = vmatprep.subr.mxu0 0.0
      %1153 = vmatpush2.msra.mxu0 0.0
      %1154 = vmatprep.subr.mxu0 0.0
      %1155 = vmatpush2.msra.mxu0 0.0
      %1156 = vmatprep.subr.mxu0 0.0
      %1157 = vmatpush2.msra.mxu0 0.0
      %1158 = vmatprep.subr.mxu0 0.0
      %1159 = vmatpush2.msra.mxu0 0.0
      %1160 = vmatprep.subr.mxu0 0.0
      %1161 = vmatpush2.msra.mxu0 0.0
      %1162 = vmatprep.subr.mxu0 0.0
      %1163 = vmatpush2.msra.mxu0 0.0
      %1164 = vmatprep.subr.mxu0 0.0
      %1165 = vmatpush2.msra.mxu0 0.0
      %1166 = vmatprep.subr.mxu0 0.0
      %1167 = vmatpush2.msra.mxu0 0.0
      %1168 = vmatprep.subr.mxu0 0.0
      %1169 = vmatpush2.msra.mxu0 0.0
      %1170 = vmatprep.subr.mxu0 0.0
      %1171 = vmatpush2.msra.mxu0 0.0
      %1172 = vmatprep.subr.mxu0 0.0
      %1173 = vmatpush2.msra.mxu0 0.0
      %1174 = vmatprep.subr.mxu0 0.0
      %1175 = vmatpush2.msra.mxu0 0.0
      %1176 = vmatprep.subr.mxu0 0.0
      %1177 = vmatpush2.msra.mxu0 0.0
      %1178 = vmatprep.subr.mxu0 0.0
      %1179 = vmatpush2.msra.mxu0 0.0
      %1180 = vmatprep.subr.mxu0 0.0
      %1181 = vmatpush2.msra.mxu0 0.0
      %1182 = vmatprep.mubr.f32.mxu0 0.0
      %1183 = vmatmul.mubr.f32.gmra.mxu0 %v1113
      %v1184 = vpop.f32.mrf.mxu0
      %v1185 = vadd.f32 %v1103, %v1184
      %v1186 = vpop.f32.mrf.mxu0
      %1187 = vmatprep.mubr.f32.mxu0 0.0
      %1188 = vmatmul.mubr.f32.gmra.mxu0 %v1116
      %v1189 = vpop.f32.mrf.mxu0
      %v1190 = vadd.f32 %v1108, %v1189
      %v1191 = vpop.f32.mrf.mxu0
      %1192 = vdwg.mxu0
      %v1194 = vsel %vm1025, %v1017, 0
      %v1197 = vsel %vm1025, %v1022, 0
      %v1200 = vsel %vm1032, %v881, 0
      %1202 = vmatprep.subr.mxu0 0.0
      %1203 = vmatpush1.msra.mxu0 0.0
      %1204 = vmatprep.subr.mxu0 0.0
      %1205 = vmatpush1.msra.mxu0 0.0
      %1206 = vmatprep.subr.mxu0 0.0
      %1207 = vmatpush1.msra.mxu0 0.0
      %1208 = vmatprep.subr.mxu0 0.0
      %1209 = vmatpush1.msra.mxu0 0.0
      %1210 = vmatprep.subr.mxu0 0.0
      %1211 = vmatpush1.msra.mxu0 0.0
      %1212 = vmatprep.subr.mxu0 0.0
      %1213 = vmatpush1.msra.mxu0 0.0
      %1214 = vmatprep.subr.mxu0 0.0
      %1215 = vmatpush1.msra.mxu0 0.0
      %1216 = vmatprep.subr.mxu0 0.0
      %1217 = vmatpush1.msra.mxu0 0.0
      %1218 = vmatprep.subr.mxu0 0.0
      %1219 = vmatpush1.msra.mxu0 0.0
      %1220 = vmatprep.subr.mxu0 0.0
      %1221 = vmatpush1.msra.mxu0 0.0
      %1222 = vmatprep.subr.mxu0 0.0
      %1223 = vmatpush1.msra.mxu0 0.0
      %1224 = vmatprep.subr.mxu0 0.0
      %1225 = vmatpush1.msra.mxu0 0.0
      %1226 = vmatprep.subr.mxu0 0.0
      %1227 = vmatpush1.msra.mxu0 0.0
      %1228 = vmatprep.subr.mxu0 0.0
      %1229 = vmatpush1.msra.mxu0 0.0
      %1230 = vmatprep.subr.mxu0 0.0
      %1231 = vmatpush1.msra.mxu0 0.0
      %1232 = vmatprep.subr.mxu0 0.0
      %1233 = vmatpush1.msra.mxu0 %v1200
      %1234 = vmatprep.subr.mxu0 0.0
      %1235 = vmatpush2.msra.mxu0 0.0
      %1236 = vmatprep.subr.mxu0 0.0
      %1237 = vmatpush2.msra.mxu0 0.0
      %1238 = vmatprep.subr.mxu0 0.0
      %1239 = vmatpush2.msra.mxu0 0.0
      %1240 = vmatprep.subr.mxu0 0.0
      %1241 = vmatpush2.msra.mxu0 0.0
      %1242 = vmatprep.subr.mxu0 0.0
      %1243 = vmatpush2.msra.mxu0 0.0
      %1244 = vmatprep.subr.mxu0 0.0
      %1245 = vmatpush2.msra.mxu0 0.0
      %1246 = vmatprep.subr.mxu0 0.0
      %1247 = vmatpush2.msra.mxu0 0.0
      %1248 = vmatprep.subr.mxu0 0.0
      %1249 = vmatpush2.msra.mxu0 0.0
      %1250 = vmatprep.subr.mxu0 0.0
      %1251 = vmatpush2.msra.mxu0 0.0
      %1252 = vmatprep.subr.mxu0 0.0
      %1253 = vmatpush2.msra.mxu0 0.0
      %1254 = vmatprep.subr.mxu0 0.0
      %1255 = vmatpush2.msra.mxu0 0.0
      %1256 = vmatprep.subr.mxu0 0.0
      %1257 = vmatpush2.msra.mxu0 0.0
      %1258 = vmatprep.subr.mxu0 0.0
      %1259 = vmatpush2.msra.mxu0 0.0
      %1260 = vmatprep.subr.mxu0 0.0
      %1261 = vmatpush2.msra.mxu0 0.0
      %1262 = vmatprep.subr.mxu0 0.0
      %1263 = vmatpush2.msra.mxu0 0.0
      %1264 = vmatprep.subr.mxu0 0.0
      %1265 = vmatpush2.msra.mxu0 0.0
      %1266 = vmatprep.mubr.f32.mxu0 0.0
      %1267 = vmatmul.mubr.f32.gmra.mxu0 %v1194
      %v1268 = vpop.f32.mrf.mxu0
      %v1269 = vadd.f32 0.0, %v1268
      %v1270 = vpop.f32.mrf.mxu0
      %1271 = vmatprep.mubr.f32.mxu0 0.0
      %1272 = vmatmul.mubr.f32.gmra.mxu0 %v1197
      %v1273 = vpop.f32.mrf.mxu0
      %v1274 = vadd.f32 0.0, %v1273
      %v1275 = vpop.f32.mrf.mxu0
      %1276 = vdwg.mxu0
      %v1277 = vadd.f32 %v1185, %v1269
      %v1278 = vadd.f32 %v1190, %v1274
      %v1280 = vlaneseq
      %v1281 = vshrl.u32 %v1280, 7
      %v1282 = vsub.s32 0, %v1281
      %v1283 = vrot.slane %v892, %v1282
      %vm1285 = vcmask 261120
      %v1287 = vsel %vm1285, %v1277, 0
      %v1290 = vsel %vm1285, %v1278, 0
      %1292 = vmatprep.subr.mxu0 0.0
      %1293 = vmatpush1.msra.mxu0 0.0
      %1294 = vmatprep.subr.mxu0 0.0
      %1295 = vmatpush1.msra.mxu0 0.0
      %1296 = vmatprep.subr.mxu0 0.0
      %1297 = vmatpush1.msra.mxu0 0.0
      %1298 = vmatprep.subr.mxu0 0.0
      %1299 = vmatpush1.msra.mxu0 0.0
      %1300 = vmatprep.subr.mxu0 0.0
      %1301 = vmatpush1.msra.mxu0 0.0
      %1302 = vmatprep.subr.mxu0 0.0
      %1303 = vmatpush1.msra.mxu0 0.0
      %1304 = vmatprep.subr.mxu0 0.0
      %1305 = vmatpush1.msra.mxu0 0.0
      %1306 = vmatprep.subr.mxu0 0.0
      %1307 = vmatpush1.msra.mxu0 0.0
      %1308 = vmatprep.subr.mxu0 0.0
      %1309 = vmatpush1.msra.mxu0 0.0
      %1310 = vmatprep.subr.mxu0 0.0
      %1311 = vmatpush1.msra.mxu0 0.0
      %1312 = vmatprep.subr.mxu0 0.0
      %1313 = vmatpush1.msra.mxu0 0.0
      %1314 = vmatprep.subr.mxu0 0.0
      %1315 = vmatpush1.msra.mxu0 0.0
      %1316 = vmatprep.subr.mxu0 0.0
      %1317 = vmatpush1.msra.mxu0 %v891
      %1318 = vmatprep.subr.mxu0 0.0
      %1319 = vmatpush1.msra.mxu0 %v890
      %1320 = vmatprep.subr.mxu0 0.0
      %1321 = vmatpush1.msra.mxu0 %v889
      %1322 = vmatprep.subr.mxu0 0.0
      %1323 = vmatpush1.msra.mxu0 %v888
      %1324 = vmatprep.subr.mxu0 0.0
      %1325 = vmatpush2.msra.mxu0 0.0
      %1326 = vmatprep.subr.mxu0 0.0
      %1327 = vmatpush2.msra.mxu0 0.0
      %1328 = vmatprep.subr.mxu0 0.0
      %1329 = vmatpush2.msra.mxu0 0.0
      %1330 = vmatprep.subr.mxu0 0.0
      %1331 = vmatpush2.msra.mxu0 0.0
      %1332 = vmatprep.subr.mxu0 0.0
      %1333 = vmatpush2.msra.mxu0 0.0
      %1334 = vmatprep.subr.mxu0 0.0
      %1335 = vmatpush2.msra.mxu0 0.0
      %1336 = vmatprep.subr.mxu0 0.0
      %1337 = vmatpush2.msra.mxu0 0.0
      %1338 = vmatprep.subr.mxu0 0.0
      %1339 = vmatpush2.msra.mxu0 0.0
      %1340 = vmatprep.subr.mxu0 0.0
      %1341 = vmatpush2.msra.mxu0 0.0
      %1342 = vmatprep.subr.mxu0 0.0
      %1343 = vmatpush2.msra.mxu0 0.0
      %1344 = vmatprep.subr.mxu0 0.0
      %1345 = vmatpush2.msra.mxu0 0.0
      %1346 = vmatprep.subr.mxu0 0.0
      %1347 = vmatpush2.msra.mxu0 0.0
      %1348 = vmatprep.subr.mxu0 0.0
      %1349 = vmatpush2.msra.mxu0 0.0
      %1350 = vmatprep.subr.mxu0 0.0
      %1351 = vmatpush2.msra.mxu0 0.0
      %1352 = vmatprep.subr.mxu0 0.0
      %1353 = vmatpush2.msra.mxu0 0.0
      %1354 = vmatprep.subr.mxu0 0.0
      %1355 = vmatpush2.msra.mxu0 0.0
      %1356 = vmatprep.mubr.f32.mxu0 0.0
      %1357 = vmatmul.mubr.f32.gmra.mxu0 %v1287
      %v1358 = vpop.f32.mrf.mxu0
      %v1359 = vadd.f32 %v1283, %v1358
      %v1360 = vpop.f32.mrf.mxu0
      %1361 = vmatprep.mubr.f32.mxu0 0.0
      %1362 = vmatmul.mubr.f32.gmra.mxu0 %v1290
      %v1363 = vpop.f32.mrf.mxu0
      %v1364 = vadd.f32 %v1283, %v1363
      %v1365 = vpop.f32.mrf.mxu0
      %1366 = vdwg.mxu0
      %v1368 = vlaneseq
      %v1369 = vshrl.u32 %v1368, 7
      %v1370 = vsub.s32 0, %v1369
      %v1371 = vrot.slane %v897, %v1370
      %1373 = vmatprep.subr.mxu0 0.0
      %1374 = vmatpush1.msra.mxu0 0.0
      %1375 = vmatprep.subr.mxu0 0.0
      %1376 = vmatpush1.msra.mxu0 0.0
      %1377 = vmatprep.subr.mxu0 0.0
      %1378 = vmatpush1.msra.mxu0 0.0
      %1379 = vmatprep.subr.mxu0 0.0
      %1380 = vmatpush1.msra.mxu0 0.0
      %1381 = vmatprep.subr.mxu0 0.0
      %1382 = vmatpush1.msra.mxu0 0.0
      %1383 = vmatprep.subr.mxu0 0.0
      %1384 = vmatpush1.msra.mxu0 0.0
      %1385 = vmatprep.subr.mxu0 0.0
      %1386 = vmatpush1.msra.mxu0 0.0
      %1387 = vmatprep.subr.mxu0 0.0
      %1388 = vmatpush1.msra.mxu0 0.0
      %1389 = vmatprep.subr.mxu0 0.0
      %1390 = vmatpush1.msra.mxu0 0.0
      %1391 = vmatprep.subr.mxu0 0.0
      %1392 = vmatpush1.msra.mxu0 0.0
      %1393 = vmatprep.subr.mxu0 0.0
      %1394 = vmatpush1.msra.mxu0 0.0
      %1395 = vmatprep.subr.mxu0 0.0
      %1396 = vmatpush1.msra.mxu0 0.0
      %1397 = vmatprep.subr.mxu0 0.0
      %1398 = vmatpush1.msra.mxu0 %v896
      %1399 = vmatprep.subr.mxu0 0.0
      %1400 = vmatpush1.msra.mxu0 %v895
      %1401 = vmatprep.subr.mxu0 0.0
      %1402 = vmatpush1.msra.mxu0 %v894
      %1403 = vmatprep.subr.mxu0 0.0
      %1404 = vmatpush1.msra.mxu0 %v893
      %1405 = vmatprep.subr.mxu0 0.0
      %1406 = vmatpush2.msra.mxu0 0.0
      %1407 = vmatprep.subr.mxu0 0.0
      %1408 = vmatpush2.msra.mxu0 0.0
      %1409 = vmatprep.subr.mxu0 0.0
      %1410 = vmatpush2.msra.mxu0 0.0
      %1411 = vmatprep.subr.mxu0 0.0
      %1412 = vmatpush2.msra.mxu0 0.0
      %1413 = vmatprep.subr.mxu0 0.0
      %1414 = vmatpush2.msra.mxu0 0.0
      %1415 = vmatprep.subr.mxu0 0.0
      %1416 = vmatpush2.msra.mxu0 0.0
      %1417 = vmatprep.subr.mxu0 0.0
      %1418 = vmatpush2.msra.mxu0 0.0
      %1419 = vmatprep.subr.mxu0 0.0
      %1420 = vmatpush2.msra.mxu0 0.0
      %1421 = vmatprep.subr.mxu0 0.0
      %1422 = vmatpush2.msra.mxu0 0.0
      %1423 = vmatprep.subr.mxu0 0.0
      %1424 = vmatpush2.msra.mxu0 0.0
      %1425 = vmatprep.subr.mxu0 0.0
      %1426 = vmatpush2.msra.mxu0 0.0
      %1427 = vmatprep.subr.mxu0 0.0
      %1428 = vmatpush2.msra.mxu0 0.0
      %1429 = vmatprep.subr.mxu0 0.0
      %1430 = vmatpush2.msra.mxu0 0.0
      %1431 = vmatprep.subr.mxu0 0.0
      %1432 = vmatpush2.msra.mxu0 0.0
      %1433 = vmatprep.subr.mxu0 0.0
      %1434 = vmatpush2.msra.mxu0 0.0
      %1435 = vmatprep.subr.mxu0 0.0
      %1436 = vmatpush2.msra.mxu0 0.0
      %1437 = vmatprep.mubr.f32.mxu0 0.0
      %1438 = vmatmul.mubr.f32.gmra.mxu0 %v1287
      %v1439 = vpop.f32.mrf.mxu0
      %v1440 = vadd.f32 %v1371, %v1439
      %v1441 = vpop.f32.mrf.mxu0
      %1442 = vmatprep.mubr.f32.mxu0 0.0
      %1443 = vmatmul.mubr.f32.gmra.mxu0 %v1290
      %v1444 = vpop.f32.mrf.mxu0
      %v1445 = vadd.f32 %v1371, %v1444
      %v1446 = vpop.f32.mrf.mxu0
      %1447 = vdwg.mxu0
      %v1449 = vlaneseq
      %v1450 = vshrl.u32 %v1449, 7
      %v1451 = vsub.s32 0, %v1450
      %v1452 = vrot.slane %v902, %v1451
      %1454 = vmatprep.subr.mxu0 0.0
      %1455 = vmatpush1.msra.mxu0 0.0
      %1456 = vmatprep.subr.mxu0 0.0
      %1457 = vmatpush1.msra.mxu0 0.0
      %1458 = vmatprep.subr.mxu0 0.0
      %1459 = vmatpush1.msra.mxu0 0.0
      %1460 = vmatprep.subr.mxu0 0.0
      %1461 = vmatpush1.msra.mxu0 0.0
      %1462 = vmatprep.subr.mxu0 0.0
      %1463 = vmatpush1.msra.mxu0 0.0
      %1464 = vmatprep.subr.mxu0 0.0
      %1465 = vmatpush1.msra.mxu0 0.0
      %1466 = vmatprep.subr.mxu0 0.0
      %1467 = vmatpush1.msra.mxu0 0.0
      %1468 = vmatprep.subr.mxu0 0.0
      %1469 = vmatpush1.msra.mxu0 0.0
      %1470 = vmatprep.subr.mxu0 0.0
      %1471 = vmatpush1.msra.mxu0 0.0
      %1472 = vmatprep.subr.mxu0 0.0
      %1473 = vmatpush1.msra.mxu0 0.0
      %1474 = vmatprep.subr.mxu0 0.0
      %1475 = vmatpush1.msra.mxu0 0.0
      %1476 = vmatprep.subr.mxu0 0.0
      %1477 = vmatpush1.msra.mxu0 0.0
      %1478 = vmatprep.subr.mxu0 0.0
      %1479 = vmatpush1.msra.mxu0 %v901
      %1480 = vmatprep.subr.mxu0 0.0
      %1481 = vmatpush1.msra.mxu0 %v900
      %1482 = vmatprep.subr.mxu0 0.0
      %1483 = vmatpush1.msra.mxu0 %v899
      %1484 = vmatprep.subr.mxu0 0.0
      %1485 = vmatpush1.msra.mxu0 %v898
      %1486 = vmatprep.subr.mxu0 0.0
      %1487 = vmatpush2.msra.mxu0 0.0
      %1488 = vmatprep.subr.mxu0 0.0
      %1489 = vmatpush2.msra.mxu0 0.0
      %1490 = vmatprep.subr.mxu0 0.0
      %1491 = vmatpush2.msra.mxu0 0.0
      %1492 = vmatprep.subr.mxu0 0.0
      %1493 = vmatpush2.msra.mxu0 0.0
      %1494 = vmatprep.subr.mxu0 0.0
      %1495 = vmatpush2.msra.mxu0 0.0
      %1496 = vmatprep.subr.mxu0 0.0
      %1497 = vmatpush2.msra.mxu0 0.0
      %1498 = vmatprep.subr.mxu0 0.0
      %1499 = vmatpush2.msra.mxu0 0.0
      %1500 = vmatprep.subr.mxu0 0.0
      %1501 = vmatpush2.msra.mxu0 0.0
      %1502 = vmatprep.subr.mxu0 0.0
      %1503 = vmatpush2.msra.mxu0 0.0
      %1504 = vmatprep.subr.mxu0 0.0
      %1505 = vmatpush2.msra.mxu0 0.0
      %1506 = vmatprep.subr.mxu0 0.0
      %1507 = vmatpush2.msra.mxu0 0.0
      %1508 = vmatprep.subr.mxu0 0.0
      %1509 = vmatpush2.msra.mxu0 0.0
      %1510 = vmatprep.subr.mxu0 0.0
      %1511 = vmatpush2.msra.mxu0 0.0
      %1512 = vmatprep.subr.mxu0 0.0
      %1513 = vmatpush2.msra.mxu0 0.0
      %1514 = vmatprep.subr.mxu0 0.0
      %1515 = vmatpush2.msra.mxu0 0.0
      %1516 = vmatprep.subr.mxu0 0.0
      %1517 = vmatpush2.msra.mxu0 0.0
      %1518 = vmatprep.mubr.f32.mxu0 0.0
      %1519 = vmatmul.mubr.f32.gmra.mxu0 %v1287
      %v1520 = vpop.f32.mrf.mxu0
      %v1521 = vadd.f32 %v1452, %v1520
      %v1522 = vpop.f32.mrf.mxu0
      %1523 = vmatprep.mubr.f32.mxu0 0.0
      %1524 = vmatmul.mubr.f32.gmra.mxu0 %v1290
      %v1525 = vpop.f32.mrf.mxu0
      %v1526 = vadd.f32 %v1452, %v1525
      %v1527 = vpop.f32.mrf.mxu0
      %1528 = vdwg.mxu0
      %v1530 = vsel %vm1285, %v1359, 0
      %v1533 = vsel %vm1285, %v1364, 0
      %v1536 = vsel %vm1285, %v1440, 0
      %v1539 = vsel %vm1285, %v1445, 0
      %1541 = vmatprep.subr.mxu0 0.0
      %1542 = vmatpush1.xpose.msra.mxu0 0.0
      %1543 = vmatprep.subr.mxu0 0.0
      %1544 = vmatpush1.xpose.msra.mxu0 0.0
      %1545 = vmatprep.subr.mxu0 0.0
      %1546 = vmatpush1.xpose.msra.mxu0 0.0
      %1547 = vmatprep.subr.mxu0 0.0
      %1548 = vmatpush1.xpose.msra.mxu0 0.0
      %1549 = vmatprep.subr.mxu0 0.0
      %1550 = vmatpush1.xpose.msra.mxu0 0.0
      %1551 = vmatprep.subr.mxu0 0.0
      %1552 = vmatpush1.xpose.msra.mxu0 0.0
      %1553 = vmatprep.subr.mxu0 0.0
      %1554 = vmatpush1.xpose.msra.mxu0 0.0
      %1555 = vmatprep.subr.mxu0 0.0
      %1556 = vmatpush1.xpose.msra.mxu0 0.0
      %1557 = vmatprep.subr.mxu0 0.0
      %1558 = vmatpush1.xpose.msra.mxu0 0.0
      %1559 = vmatprep.subr.mxu0 0.0
      %1560 = vmatpush1.xpose.msra.mxu0 0.0
      %1561 = vmatprep.subr.mxu0 0.0
      %1562 = vmatpush1.xpose.msra.mxu0 0.0
      %1563 = vmatprep.subr.mxu0 0.0
      %1564 = vmatpush1.xpose.msra.mxu0 0.0
      %1565 = vmatprep.subr.mxu0 0.0
      %1566 = vmatpush1.xpose.msra.mxu0 0.0
      %1567 = vmatprep.subr.mxu0 0.0
      %1568 = vmatpush1.xpose.msra.mxu0 0.0
      %1569 = vmatprep.subr.mxu0 0.0
      %1570 = vmatpush1.xpose.msra.mxu0 %v1539
      %1571 = vmatprep.subr.mxu0 0.0
      %1572 = vmatpush1.xpose.msra.mxu0 %v1536
      %1573 = vmatprep.subr.mxu0 0.0
      %1574 = vmatpush2.xpose.msra.mxu0 0.0
      %1575 = vmatprep.subr.mxu0 0.0
      %1576 = vmatpush2.xpose.msra.mxu0 0.0
      %1577 = vmatprep.subr.mxu0 0.0
      %1578 = vmatpush2.xpose.msra.mxu0 0.0
      %1579 = vmatprep.subr.mxu0 0.0
      %1580 = vmatpush2.xpose.msra.mxu0 0.0
      %1581 = vmatprep.subr.mxu0 0.0
      %1582 = vmatpush2.xpose.msra.mxu0 0.0
      %1583 = vmatprep.subr.mxu0 0.0
      %1584 = vmatpush2.xpose.msra.mxu0 0.0
      %1585 = vmatprep.subr.mxu0 0.0
      %1586 = vmatpush2.xpose.msra.mxu0 0.0
      %1587 = vmatprep.subr.mxu0 0.0
      %1588 = vmatpush2.xpose.msra.mxu0 0.0
      %1589 = vmatprep.subr.mxu0 0.0
      %1590 = vmatpush2.xpose.msra.mxu0 0.0
      %1591 = vmatprep.subr.mxu0 0.0
      %1592 = vmatpush2.xpose.msra.mxu0 0.0
      %1593 = vmatprep.subr.mxu0 0.0
      %1594 = vmatpush2.xpose.msra.mxu0 0.0
      %1595 = vmatprep.subr.mxu0 0.0
      %1596 = vmatpush2.xpose.msra.mxu0 0.0
      %1597 = vmatprep.subr.mxu0 0.0
      %1598 = vmatpush2.xpose.msra.mxu0 0.0
      %1599 = vmatprep.subr.mxu0 0.0
      %1600 = vmatpush2.xpose.msra.mxu0 0.0
      %1601 = vmatprep.subr.mxu0 0.0
      %1602 = vmatpush2.xpose.msra.mxu0 0.0
      %1603 = vmatprep.subr.mxu0 0.0
      %1604 = vmatpush2.xpose.msra.mxu0 0.0
      %1605 = vmatprep.mubr.f32.mxu0 0.0
      %1606 = vmatmul.mubr.f32.gmra.mxu0 %v1530
      %v1607 = vpop.f32.mrf.mxu0
      %v1608 = vadd.f32 0.0, %v1607
      %v1609 = vpop.f32.mrf.mxu0
      %1610 = vmatprep.mubr.f32.mxu0 0.0
      %1611 = vmatmul.mubr.f32.gmra.mxu0 %v1533
      %v1612 = vpop.f32.mrf.mxu0
      %v1613 = vadd.f32 0.0, %v1612
      %v1614 = vpop.f32.mrf.mxu0
      %1615 = vdwg.mxu0
      %v1617 = vsel %vm927, %v1608, 0
      %v1620 = vsel %vm927, %v1613, 0
      %1622 = vmatprep.subr.mxu0 0.0
      %1623 = vmatpush1.msra.mxu0 0.0
      %1624 = vmatprep.subr.mxu0 0.0
      %1625 = vmatpush1.msra.mxu0 0.0
      %1626 = vmatprep.subr.mxu0 0.0
      %1627 = vmatpush1.msra.mxu0 0.0
      %1628 = vmatprep.subr.mxu0 0.0
      %1629 = vmatpush1.msra.mxu0 0.0
      %1630 = vmatprep.subr.mxu0 0.0
      %1631 = vmatpush1.msra.mxu0 0.0
      %1632 = vmatprep.subr.mxu0 0.0
      %1633 = vmatpush1.msra.mxu0 0.0
      %1634 = vmatprep.subr.mxu0 0.0
      %1635 = vmatpush1.msra.mxu0 0.0
      %1636 = vmatprep.subr.mxu0 0.0
      %1637 = vmatpush1.msra.mxu0 0.0
      %1638 = vmatprep.subr.mxu0 0.0
      %1639 = vmatpush1.msra.mxu0 0.0
      %1640 = vmatprep.subr.mxu0 0.0
      %1641 = vmatpush1.msra.mxu0 0.0
      %1642 = vmatprep.subr.mxu0 0.0
      %1643 = vmatpush1.msra.mxu0 0.0
      %1644 = vmatprep.subr.mxu0 0.0
      %1645 = vmatpush1.msra.mxu0 0.0
      %1646 = vmatprep.subr.mxu0 0.0
      %1647 = vmatpush1.msra.mxu0 0.0
      %1648 = vmatprep.subr.mxu0 0.0
      %1649 = vmatpush1.msra.mxu0 0.0
      %1650 = vmatprep.subr.mxu0 %v840
      %1651 = vmatpush1.msra.mxu0 %v839
      %1652 = vmatprep.subr.mxu0 %v838
      %1653 = vmatpush1.msra.mxu0 %v837
      %1654 = vmatprep.subr.mxu0 0.0
      %1655 = vmatpush2.msra.mxu0 0.0
      %1656 = vmatprep.subr.mxu0 0.0
      %1657 = vmatpush2.msra.mxu0 0.0
      %1658 = vmatprep.subr.mxu0 0.0
      %1659 = vmatpush2.msra.mxu0 0.0
      %1660 = vmatprep.subr.mxu0 0.0
      %1661 = vmatpush2.msra.mxu0 0.0
      %1662 = vmatprep.subr.mxu0 0.0
      %1663 = vmatpush2.msra.mxu0 0.0
      %1664 = vmatprep.subr.mxu0 0.0
      %1665 = vmatpush2.msra.mxu0 0.0
      %1666 = vmatprep.subr.mxu0 0.0
      %1667 = vmatpush2.msra.mxu0 0.0
      %1668 = vmatprep.subr.mxu0 0.0
      %1669 = vmatpush2.msra.mxu0 0.0
      %1670 = vmatprep.subr.mxu0 0.0
      %1671 = vmatpush2.msra.mxu0 0.0
      %1672 = vmatprep.subr.mxu0 0.0
      %1673 = vmatpush2.msra.mxu0 0.0
      %1674 = vmatprep.subr.mxu0 0.0
      %1675 = vmatpush2.msra.mxu0 0.0
      %1676 = vmatprep.subr.mxu0 0.0
      %1677 = vmatpush2.msra.mxu0 0.0
      %1678 = vmatprep.subr.mxu0 0.0
      %1679 = vmatpush2.msra.mxu0 0.0
      %1680 = vmatprep.subr.mxu0 0.0
      %1681 = vmatpush2.msra.mxu0 0.0
      %1682 = vmatprep.subr.mxu0 0.0
      %1683 = vmatpush2.msra.mxu0 0.0
      %1684 = vmatprep.subr.mxu0 0.0
      %1685 = vmatpush2.msra.mxu0 0.0
      %1686 = vmatprep.mubr.f32.mxu0 0.0
      %1687 = vmatmul.mubr.f32.gmra.mxu0 %v1617
      %v1688 = vpop.f32.mrf.mxu0
      %v1689 = vadd.f32 0.0, %v1688
      %v1690 = vpop.f32.mrf.mxu0
      %v1691 = vadd.f32 0.0, %v1690
      %1692 = vmatprep.mubr.f32.mxu0 0.0
      %1693 = vmatmul.mubr.f32.gmra.mxu0 %v1620
      %v1694 = vpop.f32.mrf.mxu0
      %v1695 = vadd.f32 0.0, %v1694
      %v1696 = vpop.f32.mrf.mxu0
      %v1697 = vadd.f32 0.0, %v1696
      %1698 = vdwg.mxu0
      %v1699 = vmul.f32 %v1689, %v841
      %v1700 = vmul.f32 %v1691, %v842
      %v1701 = vmul.f32 %v1695, %v843
      %v1702 = vmul.f32 %v1697, %v844
      %1703 = vmatprep.subr.mxu0 0.0
      %1704 = vmatpush1.msra.mxu0 %v860
      %1705 = vmatprep.subr.mxu0 0.0
      %1706 = vmatpush1.msra.mxu0 %v859
      %1707 = vmatprep.subr.mxu0 0.0
      %1708 = vmatpush1.msra.mxu0 %v858
      %1709 = vmatprep.subr.mxu0 0.0
      %1710 = vmatpush1.msra.mxu0 %v857
      %1711 = vmatprep.subr.mxu0 0.0
      %1712 = vmatpush1.msra.mxu0 %v856
      %1713 = vmatprep.subr.mxu0 0.0
      %1714 = vmatpush1.msra.mxu0 %v855
      %1715 = vmatprep.subr.mxu0 0.0
      %1716 = vmatpush1.msra.mxu0 %v854
      %1717 = vmatprep.subr.mxu0 0.0
      %1718 = vmatpush1.msra.mxu0 %v853
      %1719 = vmatprep.subr.mxu0 0.0
      %1720 = vmatpush1.msra.mxu0 %v852
      %1721 = vmatprep.subr.mxu0 0.0
      %1722 = vmatpush1.msra.mxu0 %v851
      %1723 = vmatprep.subr.mxu0 0.0
      %1724 = vmatpush1.msra.mxu0 %v850
      %1725 = vmatprep.subr.mxu0 0.0
      %1726 = vmatpush1.msra.mxu0 %v849
      %1727 = vmatprep.subr.mxu0 0.0
      %1728 = vmatpush1.msra.mxu0 %v848
      %1729 = vmatprep.subr.mxu0 0.0
      %1730 = vmatpush1.msra.mxu0 %v847
      %1731 = vmatprep.subr.mxu0 0.0
      %1732 = vmatpush1.msra.mxu0 %v846
      %1733 = vmatprep.subr.mxu0 0.0
      %1734 = vmatpush1.msra.mxu0 %v845
      %1735 = vmatprep.subr.mxu0 0.0
      %1736 = vmatpush2.msra.mxu0 %v876
      %1737 = vmatprep.subr.mxu0 0.0
      %1738 = vmatpush2.msra.mxu0 %v875
      %1739 = vmatprep.subr.mxu0 0.0
      %1740 = vmatpush2.msra.mxu0 %v874
      %1741 = vmatprep.subr.mxu0 0.0
      %1742 = vmatpush2.msra.mxu0 %v873
      %1743 = vmatprep.subr.mxu0 0.0
      %1744 = vmatpush2.msra.mxu0 %v872
      %1745 = vmatprep.subr.mxu0 0.0
      %1746 = vmatpush2.msra.mxu0 %v871
      %1747 = vmatprep.subr.mxu0 0.0
      %1748 = vmatpush2.msra.mxu0 %v870
      %1749 = vmatprep.subr.mxu0 0.0
      %1750 = vmatpush2.msra.mxu0 %v869
      %1751 = vmatprep.subr.mxu0 0.0
      %1752 = vmatpush2.msra.mxu0 %v868
      %1753 = vmatprep.subr.mxu0 0.0
      %1754 = vmatpush2.msra.mxu0 %v867
      %1755 = vmatprep.subr.mxu0 0.0
      %1756 = vmatpush2.msra.mxu0 %v866
      %1757 = vmatprep.subr.mxu0 0.0
      %1758 = vmatpush2.msra.mxu0 %v865
      %1759 = vmatprep.subr.mxu0 0.0
      %1760 = vmatpush2.msra.mxu0 %v864
      %1761 = vmatprep.subr.mxu0 0.0
      %1762 = vmatpush2.msra.mxu0 %v863
      %1763 = vmatprep.subr.mxu0 0.0
      %1764 = vmatpush2.msra.mxu0 %v862
      %1765 = vmatprep.subr.mxu0 0.0
      %1766 = vmatpush2.msra.mxu0 %v861
      %1767 = vmatprep.mubr.f32.mxu0 %v1700
      %1768 = vmatmul.mubr.f32.gmra.mxu0 %v1699
      %v1769 = vpop.f32.mrf.mxu0
      %v1770 = vadd.f32 0.0, %v1769
      %v1771 = vpop.f32.mrf.mxu0
      %1772 = vmatprep.mubr.f32.mxu0 %v1702
      %1773 = vmatmul.mubr.f32.gmra.mxu0 %v1701
      %v1774 = vpop.f32.mrf.mxu0
      %v1775 = vadd.f32 0.0, %v1774
      %v1776 = vpop.f32.mrf.mxu0
      %1777 = vdwg.mxu0
      %v1778 = vsel %vm927, %v1770, 0.0
      %v1779 = vsel %vm927, %v1775, 0.0
      %v1780 = vadd.f32 %v1778, %v1779
      %v1781 = vrot.slane %v1780, 4
      %v1782 = vadd.f32 %v1780, %v1781
      %v1783 = vrot.slane %v1782, 2
      %v1784 = vadd.f32 %v1782, %v1783
      %v1785 = vrot.slane %v1784, 1
      %v1786 = vadd.f32 %v1784, %v1785
      %v1787 = vsel %vm927, %v1786, -inf
      %1788 = vmax.xlane.f32.xlu0 %v1787
      %v1789 = vpop.xlane.xlu0 %1788
      %vm1790 = vcmp.ge.f32.partialorder %v1786, %v1789
      %v1791 = vsel %vm1790, %v921, 16
      %v1792 = vsel %vm927, %v1791, 2147483647
      %v1793 = vand.u32 %v1792, 65535
      %v1794 = vshra.s32 %v1792, 16
      %v1795 = vcvt.s32.f32 %v1793
      %v1796 = vcvt.s32.f32 %v1794
      %1797 = vmin.xlane.f32.xlu0 %v1796
      %v1798 = vpop.xlane.xlu0 %1797
      %vm1799 = vcmp.eq.f32.partialorder %v1796, %v1798
      %v1800 = vsel %vm1799, %v1795, inf
      %1801 = vmin.xlane.f32.xlu0 %v1800
      %v1802 = vpop.xlane.xlu0 %1801
      %v1803 = vcvt.f32.s32 %v1802
      %v1804 = vcvt.f32.s32 %v1798
      %v1805 = vshll.u32 %v1804, 16
      %v1806 = vadd.s32 %v1805, %v1803
      %vm1807 = vcmp.eq.s32.totalorder %v921, %v1806
      %v1808 = vsel %vm1807, -3e+38, %v1786
      %v1809 = vsel %vm927, %v1808, -inf
      %1810 = vmax.xlane.f32.xlu0 %v1809
      %v1811 = vpop.xlane.xlu0 %1810
      %vm1812 = vcmp.ge.f32.partialorder %v1808, %v1811
      %v1813 = vsel %vm1812, %v921, 16
      %v1814 = vsel %vm927, %v1813, 2147483647
      %v1815 = vand.u32 %v1814, 65535
      %v1816 = vshra.s32 %v1814, 16
      %v1817 = vcvt.s32.f32 %v1815
      %v1818 = vcvt.s32.f32 %v1816
      %1819 = vmin.xlane.f32.xlu0 %v1818
      %v1820 = vpop.xlane.xlu0 %1819
      %vm1821 = vcmp.eq.f32.partialorder %v1818, %v1820
      %v1822 = vsel %vm1821, %v1817, inf
      %1823 = vmin.xlane.f32.xlu0 %v1822
      %v1824 = vpop.xlane.xlu0 %1823
      %v1825 = vcvt.f32.s32 %v1824
      %v1826 = vcvt.f32.s32 %v1820
      %v1827 = vshll.u32 %v1826, 16
      %v1828 = vadd.s32 %v1827, %v1825
      %v1829 = vsub.f32 %v1789, %v1789
      %v1830 = vmul.f32 %v1829, 1.442695
      %v1831 = vpow.pop %v1830
      %v1832 = vsub.f32 %v1811, %v1789
      %v1833 = vmul.f32 %v1832, 1.442695
      %v1834 = vpow.pop %v1833
      %v1835 = vadd.f32 %v1831, %v1834
      %v1836 = vrcp.pop %v1835
      %v1837 = vsub.s32 %v921, %v923
      %v1838 = vsub.s32 %v921, %v924
      %v1839 = vsub.s32 %v1837, %v1806
      %v1840 = vsub.s32 %v1838, %v1806
      %vm1841 = vcmp.eq.s32.totalorder %v1839, 0
      %vm1842 = vcmp.eq.s32.totalorder %v1840, 0
      %vm1843 = vcmp.eq.s32.totalorder %v1839, 4294967280
      %vm1844 = vcmp.eq.s32.totalorder %v1840, 4294967280
      %vm1845 = vmor %vm1841, %vm1843
      %vm1846 = vmor %vm1842, %vm1844
      %v1847 = vsel %vm1845, 1, 0
      %v1848 = vsel %vm1846, 1, 0
      %v1849 = vcvt.s32.f32 %v1847
      %v1850 = vcvt.s32.f32 %v1848
      %v1851 = vmul.f32 %v1831, %v1836
      %v1852 = vmul.f32 %v1851, %v1849
      %v1853 = vmul.f32 %v1851, %v1850
      %v1854 = vadd.f32 %v1852, 0.0
      %v1855 = vadd.f32 %v1853, 0.0
      %v1856 = vsub.s32 %v1837, %v1828
      %v1857 = vsub.s32 %v1838, %v1828
      %vm1858 = vcmp.eq.s32.totalorder %v1856, 0
      %vm1859 = vcmp.eq.s32.totalorder %v1857, 0
      %vm1860 = vcmp.eq.s32.totalorder %v1856, 4294967280
      %vm1861 = vcmp.eq.s32.totalorder %v1857, 4294967280
      %vm1862 = vmor %vm1858, %vm1860
      %vm1863 = vmor %vm1859, %vm1861
      %v1864 = vsel %vm1862, 1, 0
      %v1865 = vsel %vm1863, 1, 0
      %v1866 = vcvt.s32.f32 %v1864
      %v1867 = vcvt.s32.f32 %v1865
      %v1868 = vmul.f32 %v1834, %v1836
      %v1869 = vmul.f32 %v1868, %v1866
      %v1870 = vmul.f32 %v1868, %v1867
      %v1871 = vadd.f32 %v1854, %v1869
      %v1872 = vadd.f32 %v1855, %v1870
      %v1874 = vsel %vm927, %v1871, 0
      %v1877 = vsel %vm927, %v1872, 0
      %1879 = vmatprep.subr.mxu0 0.0
      %1880 = vmatpush1.msra.mxu0 0.0
      %1881 = vmatprep.subr.mxu0 0.0
      %1882 = vmatpush1.msra.mxu0 0.0
      %1883 = vmatprep.subr.mxu0 0.0
      %1884 = vmatpush1.msra.mxu0 0.0
      %1885 = vmatprep.subr.mxu0 0.0
      %1886 = vmatpush1.msra.mxu0 0.0
      %1887 = vmatprep.subr.mxu0 0.0
      %1888 = vmatpush1.msra.mxu0 0.0
      %1889 = vmatprep.subr.mxu0 0.0
      %1890 = vmatpush1.msra.mxu0 0.0
      %1891 = vmatprep.subr.mxu0 0.0
      %1892 = vmatpush1.msra.mxu0 0.0
      %1893 = vmatprep.subr.mxu0 0.0
      %1894 = vmatpush1.msra.mxu0 0.0
      %1895 = vmatprep.subr.mxu0 0.0
      %1896 = vmatpush1.msra.mxu0 0.0
      %1897 = vmatprep.subr.mxu0 0.0
      %1898 = vmatpush1.msra.mxu0 0.0
      %1899 = vmatprep.subr.mxu0 0.0
      %1900 = vmatpush1.msra.mxu0 0.0
      %1901 = vmatprep.subr.mxu0 0.0
      %1902 = vmatpush1.msra.mxu0 0.0
      %1903 = vmatprep.subr.mxu0 0.0
      %1904 = vmatpush1.msra.mxu0 0.0
      %1905 = vmatprep.subr.mxu0 0.0
      %1906 = vmatpush1.msra.mxu0 0.0
      %1907 = vmatprep.subr.mxu0 0.0
      %1908 = vmatpush1.msra.mxu0 %v1526
      %1909 = vmatprep.subr.mxu0 0.0
      %1910 = vmatpush1.msra.mxu0 %v1521
      %1911 = vmatprep.subr.mxu0 0.0
      %1912 = vmatpush2.msra.mxu0 0.0
      %1913 = vmatprep.subr.mxu0 0.0
      %1914 = vmatpush2.msra.mxu0 0.0
      %1915 = vmatprep.subr.mxu0 0.0
      %1916 = vmatpush2.msra.mxu0 0.0
      %1917 = vmatprep.subr.mxu0 0.0
      %1918 = vmatpush2.msra.mxu0 0.0
      %1919 = vmatprep.subr.mxu0 0.0
      %1920 = vmatpush2.msra.mxu0 0.0
      %1921 = vmatprep.subr.mxu0 0.0
      %1922 = vmatpush2.msra.mxu0 0.0
      %1923 = vmatprep.subr.mxu0 0.0
      %1924 = vmatpush2.msra.mxu0 0.0
      %1925 = vmatprep.subr.mxu0 0.0
      %1926 = vmatpush2.msra.mxu0 0.0
      %1927 = vmatprep.subr.mxu0 0.0
      %1928 = vmatpush2.msra.mxu0 0.0
      %1929 = vmatprep.subr.mxu0 0.0
      %1930 = vmatpush2.msra.mxu0 0.0
      %1931 = vmatprep.subr.mxu0 0.0
      %1932 = vmatpush2.msra.mxu0 0.0
      %1933 = vmatprep.subr.mxu0 0.0
      %1934 = vmatpush2.msra.mxu0 0.0
      %1935 = vmatprep.subr.mxu0 0.0
      %1936 = vmatpush2.msra.mxu0 0.0
      %1937 = vmatprep.subr.mxu0 0.0
      %1938 = vmatpush2.msra.mxu0 0.0
      %1939 = vmatprep.subr.mxu0 0.0
      %1940 = vmatpush2.msra.mxu0 0.0
      %1941 = vmatprep.subr.mxu0 0.0
      %1942 = vmatpush2.msra.mxu0 0.0
      %1943 = vmatprep.mubr.f32.mxu0 0.0
      %1944 = vmatmul.mubr.f32.gmra.mxu0 %v1874
      %v1945 = vpop.f32.mrf.mxu0
      %v1946 = vadd.f32 0.0, %v1945
      %v1947 = vpop.f32.mrf.mxu0
      %1948 = vmatprep.mubr.f32.mxu0 0.0
      %1949 = vmatmul.mubr.f32.gmra.mxu0 %v1877
      %v1950 = vpop.f32.mrf.mxu0
      %v1951 = vadd.f32 0.0, %v1950
      %v1952 = vpop.f32.mrf.mxu0
      %1953 = vdwg.mxu0
      %v1955 = vsel %vm1285, %v1946, 0
      %v1958 = vsel %vm1285, %v1951, 0
      %1960 = vmatprep.subr.mxu0 0.0
      %1961 = vmatpush1.msra.mxu0 0.0
      %1962 = vmatprep.subr.mxu0 0.0
      %1963 = vmatpush1.msra.mxu0 0.0
      %1964 = vmatprep.subr.mxu0 0.0
      %1965 = vmatpush1.msra.mxu0 0.0
      %1966 = vmatprep.subr.mxu0 0.0
      %1967 = vmatpush1.msra.mxu0 0.0
      %1968 = vmatprep.subr.mxu0 0.0
      %1969 = vmatpush1.msra.mxu0 0.0
      %1970 = vmatprep.subr.mxu0 0.0
      %1971 = vmatpush1.msra.mxu0 0.0
      %1972 = vmatprep.subr.mxu0 0.0
      %1973 = vmatpush1.msra.mxu0 0.0
      %1974 = vmatprep.subr.mxu0 0.0
      %1975 = vmatpush1.msra.mxu0 0.0
      %1976 = vmatprep.subr.mxu0 0.0
      %1977 = vmatpush1.msra.mxu0 0.0
      %1978 = vmatprep.subr.mxu0 0.0
      %1979 = vmatpush1.msra.mxu0 0.0
      %1980 = vmatprep.subr.mxu0 0.0
      %1981 = vmatpush1.msra.mxu0 0.0
      %1982 = vmatprep.subr.mxu0 0.0
      %1983 = vmatpush1.msra.mxu0 0.0
      %1984 = vmatprep.subr.mxu0 0.0
      %1985 = vmatpush1.msra.mxu0 %v906
      %1986 = vmatprep.subr.mxu0 0.0
      %1987 = vmatpush1.msra.mxu0 %v905
      %1988 = vmatprep.subr.mxu0 0.0
      %1989 = vmatpush1.msra.mxu0 %v904
      %1990 = vmatprep.subr.mxu0 0.0
      %1991 = vmatpush1.msra.mxu0 %v903
      %1992 = vmatprep.subr.mxu0 0.0
      %1993 = vmatpush2.msra.mxu0 0.0
      %1994 = vmatprep.subr.mxu0 0.0
      %1995 = vmatpush2.msra.mxu0 0.0
      %1996 = vmatprep.subr.mxu0 0.0
      %1997 = vmatpush2.msra.mxu0 0.0
      %1998 = vmatprep.subr.mxu0 0.0
      %1999 = vmatpush2.msra.mxu0 0.0
      %2000 = vmatprep.subr.mxu0 0.0
      %2001 = vmatpush2.msra.mxu0 0.0
      %2002 = vmatprep.subr.mxu0 0.0
      %2003 = vmatpush2.msra.mxu0 0.0
      %2004 = vmatprep.subr.mxu0 0.0
      %2005 = vmatpush2.msra.mxu0 0.0
      %2006 = vmatprep.subr.mxu0 0.0
      %2007 = vmatpush2.msra.mxu0 0.0
      %2008 = vmatprep.subr.mxu0 0.0
      %2009 = vmatpush2.msra.mxu0 0.0
      %2010 = vmatprep.subr.mxu0 0.0
      %2011 = vmatpush2.msra.mxu0 0.0
      %2012 = vmatprep.subr.mxu0 0.0
      %2013 = vmatpush2.msra.mxu0 0.0
      %2014 = vmatprep.subr.mxu0 0.0
      %2015 = vmatpush2.msra.mxu0 0.0
      %2016 = vmatprep.subr.mxu0 0.0
      %2017 = vmatpush2.msra.mxu0 0.0
      %2018 = vmatprep.subr.mxu0 0.0
      %2019 = vmatpush2.msra.mxu0 0.0
      %2020 = vmatprep.subr.mxu0 0.0
      %2021 = vmatpush2.msra.mxu0 0.0
      %2022 = vmatprep.subr.mxu0 0.0
      %2023 = vmatpush2.msra.mxu0 0.0
      %2024 = vmatprep.mubr.f32.mxu0 0.0
      %2025 = vmatmul.mubr.f32.gmra.mxu0 %v1955
      %v2026 = vpop.f32.mrf.mxu0
      %v2027 = vadd.f32 0.0, %v2026
      %v2028 = vpop.f32.mrf.mxu0
      %2029 = vmatprep.mubr.f32.mxu0 0.0
      %2030 = vmatmul.mubr.f32.gmra.mxu0 %v1958
      %v2031 = vpop.f32.mrf.mxu0
      %v2032 = vadd.f32 0.0, %v2031
      %v2033 = vpop.f32.mrf.mxu0
      %2034 = vdwg.mxu0
      %v2035 = vadd.f32 %v1277, %v2027
      %v2036 = vadd.f32 %v1278, %v2032
      %v2038 = vlaneseq
      %v2039 = vshrl.u32 %v2038, 7
      %v2040 = vsub.s32 0, %v2039
      %v2041 = vrot.slane %v907, %v2040
      %v2043 = vadd.f32 %v2035, %v2041
      %v2044 = vadd.f32 %v2036, %v2041
      %v2046 = vsel %vm927, %v835, 0
      %v2049 = vsel %vm927, %v836, 0
      %2051 = vmatprep.subr.mxu0 0.0
      %2052 = vmatpush1.msra.mxu0 0.0
      %2053 = vmatprep.subr.mxu0 0.0
      %2054 = vmatpush1.msra.mxu0 0.0
      %2055 = vmatprep.subr.mxu0 0.0
      %2056 = vmatpush1.msra.mxu0 0.0
      %2057 = vmatprep.subr.mxu0 0.0
      %2058 = vmatpush1.msra.mxu0 0.0
      %2059 = vmatprep.subr.mxu0 0.0
      %2060 = vmatpush1.msra.mxu0 0.0
      %2061 = vmatprep.subr.mxu0 0.0
      %2062 = vmatpush1.msra.mxu0 0.0
      %2063 = vmatprep.subr.mxu0 0.0
      %2064 = vmatpush1.msra.mxu0 0.0
      %2065 = vmatprep.subr.mxu0 0.0
      %2066 = vmatpush1.msra.mxu0 0.0
      %2067 = vmatprep.subr.mxu0 0.0
      %2068 = vmatpush1.msra.mxu0 0.0
      %2069 = vmatprep.subr.mxu0 0.0
      %2070 = vmatpush1.msra.mxu0 0.0
      %2071 = vmatprep.subr.mxu0 0.0
      %2072 = vmatpush1.msra.mxu0 0.0
      %2073 = vmatprep.subr.mxu0 0.0
      %2074 = vmatpush1.msra.mxu0 0.0
      %2075 = vmatprep.subr.mxu0 0.0
      %2076 = vmatpush1.msra.mxu0 0.0
      %2077 = vmatprep.subr.mxu0 0.0
      %2078 = vmatpush1.msra.mxu0 0.0
      %2079 = vmatprep.subr.mxu0 0.0
      %2080 = vmatpush1.msra.mxu0 %v2044
      %2081 = vmatprep.subr.mxu0 0.0
      %2082 = vmatpush1.msra.mxu0 %v2043
      %2083 = vmatprep.subr.mxu0 0.0
      %2084 = vmatpush2.msra.mxu0 0.0
      %2085 = vmatprep.subr.mxu0 0.0
      %2086 = vmatpush2.msra.mxu0 0.0
      %2087 = vmatprep.subr.mxu0 0.0
      %2088 = vmatpush2.msra.mxu0 0.0
      %2089 = vmatprep.subr.mxu0 0.0
      %2090 = vmatpush2.msra.mxu0 0.0
      %2091 = vmatprep.subr.mxu0 0.0
      %2092 = vmatpush2.msra.mxu0 0.0
      %2093 = vmatprep.subr.mxu0 0.0
      %2094 = vmatpush2.msra.mxu0 0.0
      %2095 = vmatprep.subr.mxu0 0.0
      %2096 = vmatpush2.msra.mxu0 0.0
      %2097 = vmatprep.subr.mxu0 0.0
      %2098 = vmatpush2.msra.mxu0 0.0
      %2099 = vmatprep.subr.mxu0 0.0
      %2100 = vmatpush2.msra.mxu0 0.0
      %2101 = vmatprep.subr.mxu0 0.0
      %2102 = vmatpush2.msra.mxu0 0.0
      %2103 = vmatprep.subr.mxu0 0.0
      %2104 = vmatpush2.msra.mxu0 0.0
      %2105 = vmatprep.subr.mxu0 0.0
      %2106 = vmatpush2.msra.mxu0 0.0
      %2107 = vmatprep.subr.mxu0 0.0
      %2108 = vmatpush2.msra.mxu0 0.0
      %2109 = vmatprep.subr.mxu0 0.0
      %2110 = vmatpush2.msra.mxu0 0.0
      %2111 = vmatprep.subr.mxu0 0.0
      %2112 = vmatpush2.msra.mxu0 0.0
      %2113 = vmatprep.subr.mxu0 0.0
      %2114 = vmatpush2.msra.mxu0 0.0
      %2115 = vmatprep.mubr.f32.mxu0 0.0
      %2116 = vmatmul.mubr.f32.gmra.mxu0 %v2046
      %v2117 = vpop.f32.mrf.mxu0
      %v2118 = vadd.f32 0.0, %v2117
      %v2119 = vpop.f32.mrf.mxu0
      %2120 = vmatprep.mubr.f32.mxu0 0.0
      %2121 = vmatmul.mubr.f32.gmra.mxu0 %v2049
      %v2122 = vpop.f32.mrf.mxu0
      %v2123 = vadd.f32 0.0, %v2122
      %v2124 = vpop.f32.mrf.mxu0
      %2125 = vdwg.mxu0
      %v2126 = vsub.f32 %v2043, %v2118
      %v2127 = vsub.f32 %v2044, %v2123
      %v2129 = vsel %vm1285, %v2126, 0
      %v2132 = vsel %vm1285, %v2127, 0
      %2134 = vmatprep.subr.mxu0 0.0
      %2135 = vmatpush1.msra.mxu0 0.0
      %2136 = vmatprep.subr.mxu0 0.0
      %2137 = vmatpush1.msra.mxu0 0.0
      %2138 = vmatprep.subr.mxu0 0.0
      %2139 = vmatpush1.msra.mxu0 0.0
      %2140 = vmatprep.subr.mxu0 0.0
      %2141 = vmatpush1.msra.mxu0 0.0
      %2142 = vmatprep.subr.mxu0 0.0
      %2143 = vmatpush1.msra.mxu0 0.0
      %2144 = vmatprep.subr.mxu0 0.0
      %2145 = vmatpush1.msra.mxu0 0.0
      %2146 = vmatprep.subr.mxu0 0.0
      %2147 = vmatpush1.msra.mxu0 0.0
      %2148 = vmatprep.subr.mxu0 0.0
      %2149 = vmatpush1.msra.mxu0 0.0
      %2150 = vmatprep.subr.mxu0 0.0
      %2151 = vmatpush1.msra.mxu0 0.0
      %2152 = vmatprep.subr.mxu0 0.0
      %2153 = vmatpush1.msra.mxu0 0.0
      %2154 = vmatprep.subr.mxu0 0.0
      %2155 = vmatpush1.msra.mxu0 0.0
      %2156 = vmatprep.subr.mxu0 0.0
      %2157 = vmatpush1.msra.mxu0 0.0
      %2158 = vmatprep.subr.mxu0 0.0
      %2159 = vmatpush1.msra.mxu0 %v911
      %2160 = vmatprep.subr.mxu0 0.0
      %2161 = vmatpush1.msra.mxu0 %v910
      %2162 = vmatprep.subr.mxu0 0.0
      %2163 = vmatpush1.msra.mxu0 %v909
      %2164 = vmatprep.subr.mxu0 0.0
      %2165 = vmatpush1.msra.mxu0 %v908
      %2166 = vmatprep.subr.mxu0 0.0
      %2167 = vmatpush2.msra.mxu0 0.0
      %2168 = vmatprep.subr.mxu0 0.0
      %2169 = vmatpush2.msra.mxu0 0.0
      %2170 = vmatprep.subr.mxu0 0.0
      %2171 = vmatpush2.msra.mxu0 0.0
      %2172 = vmatprep.subr.mxu0 0.0
      %2173 = vmatpush2.msra.mxu0 0.0
      %2174 = vmatprep.subr.mxu0 0.0
      %2175 = vmatpush2.msra.mxu0 0.0
      %2176 = vmatprep.subr.mxu0 0.0
      %2177 = vmatpush2.msra.mxu0 0.0
      %2178 = vmatprep.subr.mxu0 0.0
      %2179 = vmatpush2.msra.mxu0 0.0
      %2180 = vmatprep.subr.mxu0 0.0
      %2181 = vmatpush2.msra.mxu0 0.0
      %2182 = vmatprep.subr.mxu0 0.0
      %2183 = vmatpush2.msra.mxu0 0.0
      %2184 = vmatprep.subr.mxu0 0.0
      %2185 = vmatpush2.msra.mxu0 0.0
      %2186 = vmatprep.subr.mxu0 0.0
      %2187 = vmatpush2.msra.mxu0 0.0
      %2188 = vmatprep.subr.mxu0 0.0
      %2189 = vmatpush2.msra.mxu0 0.0
      %2190 = vmatprep.subr.mxu0 0.0
      %2191 = vmatpush2.msra.mxu0 0.0
      %2192 = vmatprep.subr.mxu0 0.0
      %2193 = vmatpush2.msra.mxu0 0.0
      %2194 = vmatprep.subr.mxu0 0.0
      %2195 = vmatpush2.msra.mxu0 0.0
      %2196 = vmatprep.subr.mxu0 0.0
      %2197 = vmatpush2.msra.mxu0 0.0
      %2198 = vmatprep.mubr.f32.mxu0 0.0
      %2199 = vmatmul.mubr.f32.gmra.mxu0 %v2129
      %v2200 = vpop.f32.mrf.mxu0
      %v2201 = vadd.f32 0.0, %v2200
      %v2202 = vpop.f32.mrf.mxu0
      %2203 = vmatprep.mubr.f32.mxu0 0.0
      %2204 = vmatmul.mubr.f32.gmra.mxu0 %v2132
      %v2205 = vpop.f32.mrf.mxu0
      %v2206 = vadd.f32 0.0, %v2205
      %v2207 = vpop.f32.mrf.mxu0
      %2208 = vdwg.mxu0
      %v2209 = vmax.f32 %v2201, 0.0
      %v2210 = vmax.f32 %v2206, 0.0
      %vm2211 = vcmask 523264
      %v2213 = vsel %vm2211, %v2209, 0
      %v2216 = vsel %vm2211, %v2210, 0
      %2218 = vmatprep.subr.mxu0 0.0
      %2219 = vmatpush1.msra.mxu0 0.0
      %2220 = vmatprep.subr.mxu0 0.0
      %2221 = vmatpush1.msra.mxu0 0.0
      %2222 = vmatprep.subr.mxu0 0.0
      %2223 = vmatpush1.msra.mxu0 0.0
      %2224 = vmatprep.subr.mxu0 0.0
      %2225 = vmatpush1.msra.mxu0 0.0
      %2226 = vmatprep.subr.mxu0 0.0
      %2227 = vmatpush1.msra.mxu0 0.0
      %2228 = vmatprep.subr.mxu0 0.0
      %2229 = vmatpush1.msra.mxu0 0.0
      %2230 = vmatprep.subr.mxu0 0.0
      %2231 = vmatpush1.msra.mxu0 0.0
      %2232 = vmatprep.subr.mxu0 0.0
      %2233 = vmatpush1.msra.mxu0 0.0
      %2234 = vmatprep.subr.mxu0 0.0
      %2235 = vmatpush1.msra.mxu0 %v919
      %2236 = vmatprep.subr.mxu0 0.0
      %2237 = vmatpush1.msra.mxu0 %v918
      %2238 = vmatprep.subr.mxu0 0.0
      %2239 = vmatpush1.msra.mxu0 %v917
      %2240 = vmatprep.subr.mxu0 0.0
      %2241 = vmatpush1.msra.mxu0 %v916
      %2242 = vmatprep.subr.mxu0 0.0
      %2243 = vmatpush1.msra.mxu0 %v915
      %2244 = vmatprep.subr.mxu0 0.0
      %2245 = vmatpush1.msra.mxu0 %v914
      %2246 = vmatprep.subr.mxu0 0.0
      %2247 = vmatpush1.msra.mxu0 %v913
      %2248 = vmatprep.subr.mxu0 0.0
      %2249 = vmatpush1.msra.mxu0 %v912
      %2250 = vmatprep.subr.mxu0 0.0
      %2251 = vmatpush2.msra.mxu0 0.0
      %2252 = vmatprep.subr.mxu0 0.0
      %2253 = vmatpush2.msra.mxu0 0.0
      %2254 = vmatprep.subr.mxu0 0.0
      %2255 = vmatpush2.msra.mxu0 0.0
      %2256 = vmatprep.subr.mxu0 0.0
      %2257 = vmatpush2.msra.mxu0 0.0
      %2258 = vmatprep.subr.mxu0 0.0
      %2259 = vmatpush2.msra.mxu0 0.0
      %2260 = vmatprep.subr.mxu0 0.0
      %2261 = vmatpush2.msra.mxu0 0.0
      %2262 = vmatprep.subr.mxu0 0.0
      %2263 = vmatpush2.msra.mxu0 0.0
      %2264 = vmatprep.subr.mxu0 0.0
      %2265 = vmatpush2.msra.mxu0 0.0
      %2266 = vmatprep.subr.mxu0 0.0
      %2267 = vmatpush2.msra.mxu0 0.0
      %2268 = vmatprep.subr.mxu0 0.0
      %2269 = vmatpush2.msra.mxu0 0.0
      %2270 = vmatprep.subr.mxu0 0.0
      %2271 = vmatpush2.msra.mxu0 0.0
      %2272 = vmatprep.subr.mxu0 0.0
      %2273 = vmatpush2.msra.mxu0 0.0
      %2274 = vmatprep.subr.mxu0 0.0
      %2275 = vmatpush2.msra.mxu0 0.0
      %2276 = vmatprep.subr.mxu0 0.0
      %2277 = vmatpush2.msra.mxu0 0.0
      %2278 = vmatprep.subr.mxu0 0.0
      %2279 = vmatpush2.msra.mxu0 0.0
      %2280 = vmatprep.subr.mxu0 0.0
      %2281 = vmatpush2.msra.mxu0 0.0
      %2282 = vmatprep.mubr.f32.mxu0 0.0
      %2283 = vmatmul.mubr.f32.gmra.mxu0 %v2213
      %v2284 = vpop.f32.mrf.mxu0
      %v2285 = vadd.f32 0.0, %v2284
      %v2286 = vpop.f32.mrf.mxu0
      %2287 = vmatprep.mubr.f32.mxu0 0.0
      %2288 = vmatmul.mubr.f32.gmra.mxu0 %v2216
      %v2289 = vpop.f32.mrf.mxu0
      %v2290 = vadd.f32 0.0, %v2289
      %v2291 = vpop.f32.mrf.mxu0
      %2292 = vdwg.mxu0
      %v2293 = vadd.f32 %v2126, %v2285
      %v2294 = vadd.f32 %v2127, %v2290
      %2295 = vmatprep.subr.mxu0 0.0
      %2296 = vmatpush1.msra.mxu0 0.0
      %2297 = vmatprep.subr.mxu0 0.0
      %2298 = vmatpush1.msra.mxu0 0.0
      %2299 = vmatprep.subr.mxu0 0.0
      %2300 = vmatpush1.msra.mxu0 0.0
      %2301 = vmatprep.subr.mxu0 0.0
      %2302 = vmatpush1.msra.mxu0 0.0
      %2303 = vmatprep.subr.mxu0 0.0
      %2304 = vmatpush1.msra.mxu0 0.0
      %2305 = vmatprep.subr.mxu0 0.0
      %2306 = vmatpush1.msra.mxu0 0.0
      %2307 = vmatprep.subr.mxu0 0.0
      %2308 = vmatpush1.msra.mxu0 0.0
      %2309 = vmatprep.subr.mxu0 0.0
      %2310 = vmatpush1.msra.mxu0 0.0
      %2311 = vmatprep.subr.mxu0 0.0
      %2312 = vmatpush1.msra.mxu0 0.0
      %2313 = vmatprep.subr.mxu0 0.0
      %2314 = vmatpush1.msra.mxu0 0.0
      %2315 = vmatprep.subr.mxu0 0.0
      %2316 = vmatpush1.msra.mxu0 0.0
      %2317 = vmatprep.subr.mxu0 0.0
      %2318 = vmatpush1.msra.mxu0 0.0
      %2319 = vmatprep.subr.mxu0 0.0
      %2320 = vmatpush1.msra.mxu0 0.0
      %2321 = vmatprep.subr.mxu0 0.0
      %2322 = vmatpush1.msra.mxu0 0.0
      %2323 = vmatprep.subr.mxu0 0.0
      %2324 = vmatpush1.msra.mxu0 %v2294
      %2325 = vmatprep.subr.mxu0 0.0
      %2326 = vmatpush1.msra.mxu0 %v2293
      %2327 = vmatprep.subr.mxu0 0.0
      %2328 = vmatpush2.msra.mxu0 0.0
      %2329 = vmatprep.subr.mxu0 0.0
      %2330 = vmatpush2.msra.mxu0 0.0
      %2331 = vmatprep.subr.mxu0 0.0
      %2332 = vmatpush2.msra.mxu0 0.0
      %2333 = vmatprep.subr.mxu0 0.0
      %2334 = vmatpush2.msra.mxu0 0.0
      %2335 = vmatprep.subr.mxu0 0.0
      %2336 = vmatpush2.msra.mxu0 0.0
      %2337 = vmatprep.subr.mxu0 0.0
      %2338 = vmatpush2.msra.mxu0 0.0
      %2339 = vmatprep.subr.mxu0 0.0
      %2340 = vmatpush2.msra.mxu0 0.0
      %2341 = vmatprep.subr.mxu0 0.0
      %2342 = vmatpush2.msra.mxu0 0.0
      %2343 = vmatprep.subr.mxu0 0.0
      %2344 = vmatpush2.msra.mxu0 0.0
      %2345 = vmatprep.subr.mxu0 0.0
      %2346 = vmatpush2.msra.mxu0 0.0
      %2347 = vmatprep.subr.mxu0 0.0
      %2348 = vmatpush2.msra.mxu0 0.0
      %2349 = vmatprep.subr.mxu0 0.0
      %2350 = vmatpush2.msra.mxu0 0.0
      %2351 = vmatprep.subr.mxu0 0.0
      %2352 = vmatpush2.msra.mxu0 0.0
      %2353 = vmatprep.subr.mxu0 0.0
      %2354 = vmatpush2.msra.mxu0 0.0
      %2355 = vmatprep.subr.mxu0 0.0
      %2356 = vmatpush2.msra.mxu0 0.0
      %2357 = vmatprep.subr.mxu0 0.0
      %2358 = vmatpush2.msra.mxu0 0.0
      %2359 = vmatprep.mubr.f32.mxu0 0.0
      %2360 = vmatmul.mubr.f32.gmra.mxu0 %v2046
      %v2361 = vpop.f32.mrf.mxu0
      %v2362 = vadd.f32 0.0, %v2361
      %v2363 = vpop.f32.mrf.mxu0
      %2364 = vmatprep.mubr.f32.mxu0 0.0
      %2365 = vmatmul.mubr.f32.gmra.mxu0 %v2049
      %v2366 = vpop.f32.mrf.mxu0
      %v2367 = vadd.f32 0.0, %v2366
      %v2368 = vpop.f32.mrf.mxu0
      %2369 = vdwg.mxu0
      %v2370 = vsub.f32 %v2293, %v2362
      %v2371 = vsub.f32 %v2294, %v2367
      %v2372 = vsel %vm1285, %v2370, 0.0
      %2373 = vadd.xlane.f32.xlu0 %v2372
      %v2374 = vpop.xlane.xlu0 %2373
      %v2375 = vsel %vm1285, %v2371, 0.0
      %2376 = vadd.xlane.f32.xlu0 %v2375
      %v2377 = vpop.xlane.xlu0 %2376
      %v2378 = vrcp.pop 32.0
      %v2379 = vmul.f32 %v2374, %v2378
      %v2380 = vmul.f32 %v2377, %v2378
      %v2381 = vsub.f32 %v2370, %v2379
      %v2382 = vsub.f32 %v2371, %v2380
      %v2383 = vmul.f32 %v2381, %v2381
      %v2384 = vmul.f32 %v2382, %v2382
      %v2385 = vsel %vm1285, %v2383, 0.0
      %2386 = vadd.xlane.f32.xlu0 %v2385
      %v2387 = vpop.xlane.xlu0 %2386
      %v2388 = vsel %vm1285, %v2384, 0.0
      %2389 = vadd.xlane.f32.xlu0 %v2388
      %v2390 = vpop.xlane.xlu0 %2389
      %v2391 = vmul.f32 %v2387, %v2378
      %v2392 = vmul.f32 %v2390, %v2378
      %v2393 = vadd.f32 %v2391, 1e-05
      %v2394 = vadd.f32 %v2392, 1e-05
      %v2395 = vrsqrt.pop %v2393
      %v2396 = vrsqrt.pop %v2394
      %v2397 = vmul.f32 %v2381, %v2395
      %v2398 = vmul.f32 %v2382, %v2396
      %v2400 = vlaneseq
      %v2401 = vshrl.u32 %v2400, 7
      %v2402 = vsub.s32 0, %v2401
      %v2403 = vrot.slane %v882, %v2402
      %v2405 = vmul.f32 %v2397, %v2403
      %v2406 = vmul.f32 %v2398, %v2403
      %v2408 = vlaneseq
      %v2409 = vshrl.u32 %v2408, 7
      %v2410 = vsub.s32 0, %v2409
      %v2411 = vrot.slane %v883, %v2410
      %v2413 = vadd.f32 %v2405, %v2411
      %v2414 = vadd.f32 %v2406, %v2411
      %v2415 = vsel %vm1285, %v2413, 0.0
      %v2416 = vsel %vm1285, %v2414, 0.0
      %v2417 = vadd.f32 %v2415, %v2416
      %v2418 = vrot.slane %v2417, 4
      %v2419 = vadd.f32 %v2417, %v2418
      %v2420 = vrot.slane %v2419, 2
      %v2421 = vadd.f32 %v2419, %v2420
      %v2422 = vrot.slane %v2421, 1
      %v2423 = vadd.f32 %v2421, %v2422
      %v2424 = vrcp.pop 16.0
      %v2425 = vmul.f32 %v2423, %v2424
      %v2426 = vsub.f32 %v2413, %v2425
      %v2427 = vsub.f32 %v2414, %v2425
      %2429 = vset.pattern.permute.xlu0 0
      %2430 = vperm.xlu0 %2429, %v877
      %v2431 = vpop.permute.xlu0 %2430
      %2434 = vset.pattern.permute.xlu0 0
      %2435 = vperm.xlu0 %2434, %v878
      %v2436 = vpop.permute.xlu0 %2435
      %v2438 = vmul.f32 %v2426, %v2431
      %v2439 = vmul.f32 %v2427, %v2436
      %v2440 = vsel %vm1285, %v2438, 0.0
      %v2441 = vsel %vm1285, %v2439, 0.0
      %v2442 = vadd.f32 %v2440, %v2441
      %v2443 = vrot.slane %v2442, 4
      %v2444 = vadd.f32 %v2442, %v2443
      %v2445 = vrot.slane %v2444, 2
      %v2446 = vadd.f32 %v2444, %v2445
      %v2447 = vrot.slane %v2446, 1
      %v2448 = vadd.f32 %v2446, %v2447
      %v2449 = vld [vmem:[%s827] sm:$0x1]
      %v2451 = vsel %vm1111, %v2449, 0
      %2453 = vmatprep.subr.mxu0 0.0
      %2454 = vmatpush1.msra.mxu0 0.0
      %2455 = vmatprep.subr.mxu0 0.0
      %2456 = vmatpush1.msra.mxu0 0.0
      %2457 = vmatprep.subr.mxu0 0.0
      %2458 = vmatpush1.msra.mxu0 0.0
      %2459 = vmatprep.subr.mxu0 0.0
      %2460 = vmatpush1.msra.mxu0 0.0
      %2461 = vmatprep.subr.mxu0 0.0
      %2462 = vmatpush1.msra.mxu0 0.0
      %2463 = vmatprep.subr.mxu0 0.0
      %2464 = vmatpush1.msra.mxu0 0.0
      %2465 = vmatprep.subr.mxu0 0.0
      %2466 = vmatpush1.msra.mxu0 0.0
      %2467 = vmatprep.subr.mxu0 0.0
      %2468 = vmatpush1.msra.mxu0 0.0
      %2469 = vmatprep.subr.mxu0 0.0
      %2470 = vmatpush1.msra.mxu0 0.0
      %2471 = vmatprep.subr.mxu0 0.0
      %2472 = vmatpush1.msra.mxu0 0.0
      %2473 = vmatprep.subr.mxu0 0.0
      %2474 = vmatpush1.msra.mxu0 0.0
      %2475 = vmatprep.subr.mxu0 0.0
      %2476 = vmatpush1.msra.mxu0 0.0
      %2477 = vmatprep.subr.mxu0 0.0
      %2478 = vmatpush1.msra.mxu0 0.0
      %2479 = vmatprep.subr.mxu0 0.0
      %2480 = vmatpush1.msra.mxu0 0.0
      %2481 = vmatprep.subr.mxu0 0.0
      %2482 = vmatpush1.msra.mxu0 0.0
      %2483 = vmatprep.subr.mxu0 0.0
      %2484 = vmatpush1.msra.mxu0 %v884
      %2485 = vmatprep.subr.mxu0 0.0
      %2486 = vmatpush2.msra.mxu0 0.0
      %2487 = vmatprep.subr.mxu0 0.0
      %2488 = vmatpush2.msra.mxu0 0.0
      %2489 = vmatprep.subr.mxu0 0.0
      %2490 = vmatpush2.msra.mxu0 0.0
      %2491 = vmatprep.subr.mxu0 0.0
      %2492 = vmatpush2.msra.mxu0 0.0
      %2493 = vmatprep.subr.mxu0 0.0
      %2494 = vmatpush2.msra.mxu0 0.0
      %2495 = vmatprep.subr.mxu0 0.0
      %2496 = vmatpush2.msra.mxu0 0.0
      %2497 = vmatprep.subr.mxu0 0.0
      %2498 = vmatpush2.msra.mxu0 0.0
      %2499 = vmatprep.subr.mxu0 0.0
      %2500 = vmatpush2.msra.mxu0 0.0
      %2501 = vmatprep.subr.mxu0 0.0
      %2502 = vmatpush2.msra.mxu0 0.0
      %2503 = vmatprep.subr.mxu0 0.0
      %2504 = vmatpush2.msra.mxu0 0.0
      %2505 = vmatprep.subr.mxu0 0.0
      %2506 = vmatpush2.msra.mxu0 0.0
      %2507 = vmatprep.subr.mxu0 0.0
      %2508 = vmatpush2.msra.mxu0 0.0
      %2509 = vmatprep.subr.mxu0 0.0
      %2510 = vmatpush2.msra.mxu0 0.0
      %2511 = vmatprep.subr.mxu0 0.0
      %2512 = vmatpush2.msra.mxu0 0.0
      %2513 = vmatprep.subr.mxu0 0.0
      %2514 = vmatpush2.msra.mxu0 0.0
      %2515 = vmatprep.subr.mxu0 0.0
      %2516 = vmatpush2.msra.mxu0 0.0
      %2517 = vmatprep.mubr.f32.mxu0 0.0
      %2518 = vmatmul.mubr.f32.gmra.mxu0 %v2451
      %v2519 = vpop.f32.mrf.mxu0
      %v2520 = vadd.f32 0.0, %v2519
      %v2521 = vpop.f32.mrf.mxu0
      %2522 = vdwg.mxu0
      %v2523 = vadd.f32 %v2448, %v2520
      %v2524 = vadd.f32 %v2523, %v885
      %v2525 = vmax.f32 %v2524, 0.0
      %v2526 = vmul.f32 %v2525, %v886
      %vm2527 = vcmask 253952
      %v2528 = vsel %vm2527, %v2526, 0.0
      %2529 = vadd.xlane.f32.xlu0 %v2528
      %v2530 = vpop.xlane.xlu0 %2529
      %v2531 = vadd.f32 %v2530, %v887
      %2533 = vset.pattern.permute.xlu0 0
      %2534 = vperm.xlu0 %2533, %v2531
      %v2535 = vpop.permute.xlu0 %2534
      %2537 = vst [vmem:[%s830] sm:$0x1] %v2535
      %p2538 = scmp.lt.s32.totalorder %s40, 1
      %s2539 = scalar_select %p2538, %s40, 1
      %s2540 = scalar_lea.vmem %s27, %s2539
      // Predicated region
      $region129: #{double_critic_forward.1} parent=127 // pred_check
        %p2541 = pneg %p635
      $region130: #{double_critic_forward.1} parent=127 // pred_check_branch
        %2543 = sbr.rel (%p2541) target = $region132
      $region131: #{double_critic_forward.1} parent=127 // pred_region
        _
      $region132: #{double_critic_forward.1} parent=127 // pred_fallthru
        _
    $region128: #{double_critic_forward.1} parent=5 // pred_fallthru
      _
    %p2544 = scmp.le.s32.totalorder 2, %s35
    // Predicated region
    $region133: #{double_critic_forward.1} parent=5 // pred_check
      %p2545 = pneg %p2544
    $region134: #{double_critic_forward.1} parent=5 // pred_check_branch
      %2547 = sbr.rel (%p2545) target = $region136
    $region135: #{double_critic_forward.1} parent=5 // pred_region
      %s2548 = ssub.s32 %s35, 2
      // Predicated region
      $region137: #{double_critic_forward.1} parent=135 // pred_check
        %p2549 = pneg %p641
      $region138: #{double_critic_forward.1} parent=135 // pred_check_branch
        %2551 = sbr.rel (%p2549) target = $region140
      $region139: #{double_critic_forward.1} parent=135 // pred_region
        %p2552 = scmp.lt.s32.totalorder %s41, 1
        %s2553 = scalar_select %p2552, %s41, 1
        %s2554 = scalar_lea.vmem %s27, %s2553
      $region140: #{double_critic_forward.1} parent=135 // pred_fallthru
        _
    $region136: #{double_critic_forward.1} parent=5 // pred_fallthru
      _
  $region6: #{double_critic_forward.1} parent=0 // loop_footer
    %s39 = sadd.s32 1, %s35
  $region7: #{double_critic_forward.1} parent=0 // loop_footer_branch
    %34 = sbr.rel target = $region3
  $region8: #{double_critic_forward.1} parent=0 // loop_exit
    _

</llo_original>
